<compile_context>
chip_gen: v6e
topology: v6e:2x2x1
jax: 0.10.0
libtpu: 0.0.40
codegen_flags: <defaults>
</compile_context>

<pallas_src>
import functools

import jax
import jax.numpy as jnp
from jax import lax
from jax.experimental import pallas as pl
from jax.experimental.pallas import tpu as pltpu

LANE = 128                      # channel / contraction padding granularity
VMEM_LIMIT = 32 * 1024 * 1024   # explicit scoped-VMEM budget (fits v5e/v6e/v7x)


def _round_up(v, m):
    return (v + m - 1) // m * m


# ----------------------------- fused block kernel --------------------------------

def _resnext_kernel(x_ref, *args, projection, stride):
    """One grid step = one image.  Everything between HBM reads of x / weights and the
    HBM write of the block output stays in VMEM."""
    if projection:
        (wa_ref, ba_ref, wb_ref, bb_ref, wc_ref, bc_ref,
         ws_ref, bs_ref, o_ref, slab_ref) = args
    else:
        (wa_ref, ba_ref, wb_ref, bb_ref, wc_ref, bc_ref,
         o_ref, slab_ref) = args

    cin_p = x_ref.shape[-1]
    cb_p = wa_ref.shape[1]
    ho, wo, cout_p = o_ref.shape
    rows = ho * wo
    n_planes = 1 if stride == 1 else 4

    # ---- 1x1 conv (in -> bottleneck) + folded-BN bias + ReLU, kept on-chip ----
    xr = x_ref[...].reshape(n_planes * rows, cin_p)           # bf16
    ha = jnp.dot(xr, wa_ref[...], preferred_element_type=jnp.float32) + ba_ref[...]
    ha = jnp.maximum(ha, 0.0)                                  # f32

    # halo'ed slab in VMEM scratch: zero border, write interior
    slab_ref[...] = jnp.zeros_like(slab_ref)
    if stride == 1:
        slab_ref[1:ho + 1, 1:wo + 1, :] = ha.reshape(ho, wo, cb_p)
    else:
        # planes are (row-parity, col-parity) space-to-depth planes of the activation
        slab_ref[:, 1:ho + 1, 1:wo + 1, :] = ha.reshape(4, ho, wo, cb_p)

    # ---- grouped 3x3 conv: 9 shifted (rows, cb_p) x (cb_p, cb_p) matmuls, f32 acc ----
    acc = jnp.zeros((rows, cb_p), jnp.float32)
    for ky in range(3):
        for kx in range(3):
            dy, dx = ky - 1, kx - 1
            if stride == 1:
                tap = slab_ref[ky:ky + ho, kx:kx + wo, :]
            else:
                plane = (dy & 1) * 2 + (dx & 1)
                rs, cs = (dy + 2) // 2, (dx + 2) // 2
                tap = slab_ref[plane, rs:rs + ho, cs:cs + wo, :]
            tap = tap.reshape(rows, cb_p).astype(jnp.bfloat16)
            acc = acc + jnp.dot(tap, wb_ref[ky * 3 + kx],
                                preferred_element_type=jnp.float32)
    h2 = jnp.maximum(acc + bb_ref[...], 0.0).astype(jnp.bfloat16)

    # ---- trailing 1x1 conv (bottleneck -> out) + folded-BN bias ----
    main = jnp.dot(h2, wc_ref[...], preferred_element_type=jnp.float32) + bc_ref[...]

    # ---- shortcut ----
    if projection:
        # stride 2: the strided 1x1 shortcut reads exactly parity plane (0, 0)
        xs = xr if stride == 1 else x_ref[0].reshape(rows, cin_p)
        short = jnp.dot(xs, ws_ref[...], preferred_element_type=jnp.float32) + bs_ref[...]
    else:
        short = xr.astype(jnp.float32)     # identity: cin == cout, stride == 1

    out = jnp.maximum(main + short, 0.0)   # residual add + ReLU in f32
    o_ref[...] = out.astype(o_ref.dtype).reshape(ho, wo, cout_p)


# ----------------------------- pallas_call wrapper --------------------------------

def _call_block(x_in, w, *, stride, projection, out_spatial):
    n = x_in.shape[0]
    ho, wo = out_spatial
    cb_p = w["wa"].shape[1]
    cout_p = w["wc"].shape[1]

    if stride == 1:
        _, h, ww, cin_p = x_in.shape
        x_spec = pl.BlockSpec((None, h, ww, cin_p), lambda b: (b, 0, 0, 0))
        slab = pltpu.VMEM((ho + 2, wo + 2, cb_p), jnp.float32)
    else:
        _, _, hh, wh, cin_p = x_in.shape
        x_spec = pl.BlockSpec((None, 4, hh, wh, cin_p), lambda b: (b, 0, 0, 0, 0))
        slab = pltpu.VMEM((4, ho + 1, wo + 1, cb_p), jnp.float32)

    def _full(a):
        nd = a.ndim
        return pl.BlockSpec(a.shape, lambda b, _n=nd: (0,) * _n)

    ins = [x_in, w["wa"], w["ba"], w["wb"], w["bb"], w["wc"], w["bc"]]
    if projection:
        ins += [w["ws"], w["bs"]]
    in_specs = [x_spec] + [_full(a) for a in ins[1:]]

    kern = functools.partial(_resnext_kernel, projection=projection, stride=stride)
    return pl.pallas_call(
        kern,
        out_shape=jax.ShapeDtypeStruct((n, ho, wo, cout_p), jnp.bfloat16),
        grid=(n,),
        in_specs=in_specs,
        out_specs=pl.BlockSpec((None, ho, wo, cout_p), lambda b: (b, 0, 0, 0)),
        scratch_shapes=[slab],
        compiler_params=pltpu.CompilerParams(
            dimension_semantics=("parallel",),
            vmem_limit_bytes=VMEM_LIMIT),
    )(*ins)


# ----------------------------- glue (plain JAX) --------------------------------

def _fuse_bn(gamma, beta, mean, var, eps=1e-5):
    scale = gamma / jnp.sqrt(var + eps)
    return scale, beta - mean * scale


def _pad_to(a, rows, cols, dtype):
    a = jnp.pad(a, ((0, rows - a.shape[0]), (0, cols - a.shape[1])))
    return a.astype(dtype)


def _prepare_weights(params, groups, cin, projection):
    """One-time param transform: fold eval-mode BN scales into the weights, pad to lane
    width, and build per-tap block-diagonal grouped-conv weights (9, cb_p, cb_p)."""
    cb = params["wa"].shape[0]
    cout = params["wc"].shape[0]
    cin_p, cb_p, cout_p = (_round_up(c, LANE) for c in (cin, cb, cout))

    w = {}
    sa, ba = _fuse_bn(params["ga"], params["bea"], params["ma"], params["va"])
    w["wa"] = _pad_to(params["wa"][:, :, 0, 0].T * sa[None, :], cin_p, cb_p, jnp.bfloat16)
    w["ba"] = _pad_to(ba[None, :], 1, cb_p, jnp.float32)

    sb, bb = _fuse_bn(params["gb"], params["beb"], params["mb"], params["vb"])
    cpg = cb // groups
    wbd = jnp.zeros((3, 3, cb_p, cb_p), jnp.float32)
    for g in range(groups):             # block-diagonal dense grouped-conv weight
        blk = jnp.transpose(params["wb"][g * cpg:(g + 1) * cpg], (2, 3, 1, 0))
        blk = blk * sb[g * cpg:(g + 1) * cpg][None, None, None, :]
        wbd = wbd.at[:, :, g * cpg:(g + 1) * cpg, g * cpg:(g + 1) * cpg].set(blk)
    w["wb"] = wbd.reshape(9, cb_p, cb_p).astype(jnp.bfloat16)   # tap index = ky*3 + kx
    w["bb"] = _pad_to(bb[None, :], 1, cb_p, jnp.float32)

    sc_, bc = _fuse_bn(params["gc"], params["bec"], params["mc"], params["vc"])
    w["wc"] = _pad_to(params["wc"][:, :, 0, 0].T * sc_[None, :], cb_p, cout_p, jnp.bfloat16)
    w["bc"] = _pad_to(bc[None, :], 1, cout_p, jnp.float32)

    if projection:
        ss, bs = _fuse_bn(params["gs"], params["bes"], params["ms"], params["vs"])
        w["ws"] = _pad_to(params["ws"][:, :, 0, 0].T * ss[None, :], cin_p, cout_p, jnp.bfloat16)
        w["bs"] = _pad_to(bs[None, :], 1, cout_p, jnp.float32)
    return w


def resnext_block_forward_nhwc(x_nhwc, params, stride, groups):
    """Eval-mode ResNextBlock forward, NHWC in -> NHWC bf16 out, single fused kernel."""
    n, h, wd, cin = x_nhwc.shape
    cout = params["wc"].shape[0]
    projection = "ws" in params
    if not projection:
        assert stride == 1 and cin == cout
    ho = (h - 1) // stride + 1
    wo = (wd - 1) // stride + 1
    cin_p = _round_up(cin, LANE)

    weights = _prepare_weights(params, groups, cin, projection)

    x = x_nhwc.astype(jnp.bfloat16)
    if cin_p != cin:
        x = jnp.pad(x, ((0, 0), (0, 0), (0, 0), (0, cin_p - cin)))
    if stride == 2:
        assert h % 2 == 0 and wd % 2 == 0, "stride-2 path assumes even spatial dims"
        # space-to-depth (row/col parity planes): all in-kernel tap reads are contiguous
        x = x.reshape(n, ho, 2, wo, 2, cin_p).transpose(0, 2, 4, 1, 3, 5)
        x = x.reshape(n, 4, ho, wo, cin_p)
    else:
        assert stride == 1

    out = _call_block(x, weights, stride=stride, projection=projection,
                      out_spatial=(ho, wo))
    return out[:, :, :, :cout]


def resnext_block_forward(x_nchw, params, stride, groups):
    """NCHW convenience wrapper (layout glue done in bf16).  Chained blocks should use
    resnext_block_forward_nhwc directly and skip both transposes."""
    x = jnp.transpose(x_nchw.astype(jnp.bfloat16), (0, 2, 3, 1))
    out = resnext_block_forward_nhwc(x, params, stride, groups)
    return jnp.transpose(out, (0, 3, 1, 2))


# ----------------------------- reference & params ------------------------------

def resnext_block_ref(x, params, stride, groups):
    """Reference via lax.conv (same bf16-operand / f32-accumulate precision path)."""
    dn = ("NCHW", "OIHW", "NCHW")

    def conv_bn(inp, wkey, gkey, bekey, mkey, vkey, st, pad, fgc):
        s, b = _fuse_bn(params[gkey], params[bekey], params[mkey], params[vkey])
        wf = params[wkey] * s[:, None, None, None]
        y = lax.conv_general_dilated(inp.astype(jnp.bfloat16), wf.astype(jnp.bfloat16),
                                     (st, st), pad, dimension_numbers=dn,
                                     feature_group_count=fgc,
                                     preferred_element_type=jnp.float32)
        return y + b[None, :, None, None]

    y = jnp.maximum(conv_bn(x, "wa", "ga", "bea", "ma", "va", 1, "VALID", 1), 0.0)
    y = jnp.maximum(conv_bn(y, "wb", "gb", "beb", "mb", "vb", stride,
                            ((1, 1), (1, 1)), groups), 0.0)
    y = conv_bn(y, "wc", "gc", "bec", "mc", "vc", 1, "VALID", 1)
    if "ws" in params:
        sc = conv_bn(x, "ws", "gs", "bes", "ms", "vs", stride, "VALID", 1)
    else:
        sc = x
    return jnp.maximum(y + sc, 0.0)


def _bn_init(keys, c):
    return (jax.random.uniform(keys[0], (c,), jnp.float32, 0.5, 1.5),
            0.1 * jax.random.normal(keys[1], (c,), jnp.float32),
            0.1 * jax.random.normal(keys[2], (c,), jnp.float32),
            jax.random.uniform(keys[3], (c,), jnp.float32, 0.5, 1.5))


def init_params(key, cin, cout, bneck, groups, stride):
    ks = jax.random.split(key, 20)
    p = {}
    p["wa"] = 0.1 * jax.random.normal(ks[0], (bneck, cin, 1, 1), jnp.float32)
    p["ga"], p["bea"], p["ma"], p["va"] = _bn_init(ks[1:5], bneck)
    p["wb"] = 0.1 * jax.random.normal(ks[5], (bneck, bneck // groups, 3, 3), jnp.float32)
    p["gb"], p["beb"], p["mb"], p["vb"] = _bn_init(ks[6:10], bneck)
    p["wc"] = 0.1 * jax.random.normal(ks[10], (cout, bneck, 1, 1), jnp.float32)
    p["gc"], p["bec"], p["mc"], p["vc"] = _bn_init(ks[11:15], cout)
    if cin != cout or stride != 1:
        p["ws"] = 0.1 * jax.random.normal(ks[15], (cout, cin, 1, 1), jnp.float32)
        p["gs"], p["bes"], p["ms"], p["vs"] = _bn_init(ks[16:20], cout)
    return p


if __name__ == "__main__":
    key = jax.random.PRNGKey(0)
    kx1, kp1, kx2, kp2, kx3, kp3 = jax.random.split(key, 6)

    # Case 1: ResNext block1[0]: 64->128, bottleneck 64, groups 16, stride 1 (projection)
    x1 = jax.random.normal(kx1, (2, 64, 16, 16), jnp.float32)
    p1 = init_params(kp1, 64, 128, 64, 16, 1)
    o1 = resnext_block_forward(x1, p1, stride=1, groups=16)
    jax.block_until_ready(o1)
    r1 = resnext_block_ref(x1, p1, 1, 16)
    assert o1.shape == r1.shape == (2, 128, 16, 16)
    assert jnp.allclose(o1, r1, atol=5e-2, rtol=5e-2), float(jnp.max(jnp.abs(o1 - r1)))

    # Case 2: ResNext block2[0]: 128->256, bottleneck 128, groups 16, stride 2 (projection)
    x2 = jax.random.normal(kx2, (2, 128, 16, 16), jnp.float32)
    p2 = init_params(kp2, 128, 256, 128, 16, 2)
    o2 = resnext_block_forward(x2, p2, stride=2, groups=16)
    jax.block_until_ready(o2)
    r2 = resnext_block_ref(x2, p2, 2, 16)
    assert o2.shape == r2.shape == (2, 256, 8, 8)
    assert jnp.allclose(o2, r2, atol=5e-2, rtol=5e-2), float(jnp.max(jnp.abs(o2 - r2)))

    # Case 3: ResNext block1[1]: 128->128, bottleneck 64, groups 16, stride 1 (identity)
    x3 = jax.random.normal(kx3, (2, 128, 16, 16), jnp.float32)
    p3 = init_params(kp3, 128, 128, 64, 16, 1)
    o3 = resnext_block_forward(x3, p3, stride=1, groups=16)
    jax.block_until_ready(o3)
    r3 = resnext_block_ref(x3, p3, 1, 16)
    assert o3.shape == r3.shape == (2, 128, 16, 16)
    assert jnp.allclose(o3, r3, atol=5e-2, rtol=5e-2), float(jnp.max(jnp.abs(o3 - r3)))

    print("KERNEL_OK")
</pallas_src>

<mosaic_0001>
module attributes {stable_mosaic.version = 11 : i64} {
  func.func @_resnext_kernel(%arg0: i32, %arg1: memref<1x16x16x128xbf16, #tpu.memory_space<vmem>>, %arg2: memref<128x128xbf16, #tpu.memory_space<vmem>>, %arg3: memref<1x128xf32, #tpu.memory_space<vmem>>, %arg4: memref<9x128x128xbf16, #tpu.memory_space<vmem>>, %arg5: memref<1x128xf32, #tpu.memory_space<vmem>>, %arg6: memref<128x128xbf16, #tpu.memory_space<vmem>>, %arg7: memref<1x128xf32, #tpu.memory_space<vmem>>, %arg8: memref<128x128xbf16, #tpu.memory_space<vmem>>, %arg9: memref<1x128xf32, #tpu.memory_space<vmem>>, %arg10: memref<1x16x16x128xbf16, #tpu.memory_space<vmem>>, %arg11: memref<18x18x128xf32, #tpu.memory_space<vmem>>) attributes {dimension_semantics = [#tpu.dimension_semantics<parallel>], iteration_bounds = array<i64: 2>, scalar_prefetch = 0 : i64, scratch_operands = 1 : i64, tpu.core_type = #tpu.core_type<tc>, window_params = [{transform_indices = @transform_0, window_bounds = array<i64: 1, 16, 16, 128>}, {pipeline_mode = #tpu.pipeline_mode<synchronous>, transform_indices = @transform_1, window_bounds = array<i64: 128, 128>}, {pipeline_mode = #tpu.pipeline_mode<synchronous>, transform_indices = @transform_2, window_bounds = array<i64: 1, 128>}, {pipeline_mode = #tpu.pipeline_mode<synchronous>, transform_indices = @transform_3, window_bounds = array<i64: 9, 128, 128>}, {pipeline_mode = #tpu.pipeline_mode<synchronous>, transform_indices = @transform_4, window_bounds = array<i64: 1, 128>}, {pipeline_mode = #tpu.pipeline_mode<synchronous>, transform_indices = @transform_5, window_bounds = array<i64: 128, 128>}, {pipeline_mode = #tpu.pipeline_mode<synchronous>, transform_indices = @transform_6, window_bounds = array<i64: 1, 128>}, {pipeline_mode = #tpu.pipeline_mode<synchronous>, transform_indices = @transform_7, window_bounds = array<i64: 128, 128>}, {pipeline_mode = #tpu.pipeline_mode<synchronous>, transform_indices = @transform_8, window_bounds = array<i64: 1, 128>}, {transform_indices = @transform_9, window_bounds = array<i64: 1, 16, 16, 128>}]} {
    %c0 = arith.constant 0 : index
    %c0_0 = arith.constant 0 : index
    %c0_1 = arith.constant 0 : index
    %c0_2 = arith.constant 0 : index
    %0 = vector.load %arg1[%c0, %c0_0, %c0_1, %c0_2] : memref<1x16x16x128xbf16, #tpu.memory_space<vmem>>, vector<1x16x16x128xbf16>
    %1 = vector.shape_cast %0 : vector<1x16x16x128xbf16> to vector<16x16x128xbf16>
    %2 = vector.shape_cast %1 : vector<16x16x128xbf16> to vector<256x128xbf16>
    %c0_3 = arith.constant 0 : index
    %c0_4 = arith.constant 0 : index
    %3 = vector.load %arg2[%c0_3, %c0_4] : memref<128x128xbf16, #tpu.memory_space<vmem>>, vector<128x128xbf16>
    %cst = arith.constant dense<0.000000e+00> : vector<256x128xf32>
    %4 = tpu.matmul %2, %3, %cst {dimension_numbers = #tpu.dot_dimension_numbers<[1], [0], [0], [1], [0, 0, 1, 1], [], []>} : vector<256x128xbf16>, vector<128x128xbf16>, vector<256x128xf32> -> vector<256x128xf32>
    %c0_5 = arith.constant 0 : index
    %c0_6 = arith.constant 0 : index
    %5 = vector.load %arg3[%c0_5, %c0_6] : memref<1x128xf32, #tpu.memory_space<vmem>>, vector<1x128xf32>
    %6 = vector.broadcast %5 : vector<1x128xf32> to vector<256x128xf32>
    %7 = arith.addf %4, %6 : vector<256x128xf32>
    %cst_7 = arith.constant 0.000000e+00 : f32
    %8 = vector.broadcast %cst_7 : f32 to vector<256x128xf32>
    %9 = arith.maximumf %7, %8 : vector<256x128xf32>
    %cst_8 = arith.constant 0.000000e+00 : f32
    %10 = vector.broadcast %cst_8 : f32 to vector<18x18x128xf32>
    %c0_9 = arith.constant 0 : index
    %c0_10 = arith.constant 0 : index
    %c0_11 = arith.constant 0 : index
    %11 = vector.load %arg11[%c0_9, %c0_10, %c0_11] : memref<18x18x128xf32, #tpu.memory_space<vmem>>, vector<18x18x128xf32>
    tpu.vector_store %arg11[%c0_9, %c0_10, %c0_11], %10 {strides = array<i32>} : memref<18x18x128xf32, #tpu.memory_space<vmem>>, vector<18x18x128xf32>,
    %12 = vector.shape_cast %9 : vector<256x128xf32> to vector<16x16x128xf32>
    %c1 = arith.constant 1 : index
    %c1_12 = arith.constant 1 : index
    %c0_13 = arith.constant 0 : index
    %13 = vector.load %arg11[%c1, %c1_12, %c0_13] : memref<18x18x128xf32, #tpu.memory_space<vmem>>, vector<16x16x128xf32>
    tpu.vector_store %arg11[%c1, %c1_12, %c0_13], %12 {strides = array<i32>} : memref<18x18x128xf32, #tpu.memory_space<vmem>>, vector<16x16x128xf32>,
    %cst_14 = arith.constant 0.000000e+00 : f32
    %14 = vector.broadcast %cst_14 : f32 to vector<256x128xf32>
    %c0_15 = arith.constant 0 : index
    %c0_16 = arith.constant 0 : index
    %c0_17 = arith.constant 0 : index
    %15 = vector.load %arg11[%c0_15, %c0_16, %c0_17] : memref<18x18x128xf32, #tpu.memory_space<vmem>>, vector<16x16x128xf32>
    %16 = vector.shape_cast %15 : vector<16x16x128xf32> to vector<256x128xf32>
    %17 = arith.truncf %16 : vector<256x128xf32> to vector<256x128xbf16>
    %c0_18 = arith.constant 0 : index
    %c0_19 = arith.constant 0 : index
    %c0_20 = arith.constant 0 : index
    %18 = vector.load %arg4[%c0_18, %c0_19, %c0_20] : memref<9x128x128xbf16, #tpu.memory_space<vmem>>, vector<1x128x128xbf16>
    %19 = vector.shape_cast %18 : vector<1x128x128xbf16> to vector<128x128xbf16>
    %cst_21 = arith.constant dense<0.000000e+00> : vector<256x128xf32>
    %20 = tpu.matmul %17, %19, %cst_21 {dimension_numbers = #tpu.dot_dimension_numbers<[1], [0], [0], [1], [0, 0, 1, 1], [], []>} : vector<256x128xbf16>, vector<128x128xbf16>, vector<256x128xf32> -> vector<256x128xf32>
    %21 = arith.addf %14, %20 : vector<256x128xf32>
    %c0_22 = arith.constant 0 : index
    %c1_23 = arith.constant 1 : index
    %c0_24 = arith.constant 0 : index
    %22 = vector.load %arg11[%c0_22, %c1_23, %c0_24] : memref<18x18x128xf32, #tpu.memory_space<vmem>>, vector<16x16x128xf32>
    %23 = vector.shape_cast %22 : vector<16x16x128xf32> to vector<256x128xf32>
    %24 = arith.truncf %23 : vector<256x128xf32> to vector<256x128xbf16>
    %c1_25 = arith.constant 1 : index
    %c0_26 = arith.constant 0 : index
    %c0_27 = arith.constant 0 : index
    %25 = vector.load %arg4[%c1_25, %c0_26, %c0_27] : memref<9x128x128xbf16, #tpu.memory_space<vmem>>, vector<1x128x128xbf16>
    %26 = vector.shape_cast %25 : vector<1x128x128xbf16> to vector<128x128xbf16>
    %cst_28 = arith.constant dense<0.000000e+00> : vector<256x128xf32>
    %27 = tpu.matmul %24, %26, %cst_28 {dimension_numbers = #tpu.dot_dimension_numbers<[1], [0], [0], [1], [0, 0, 1, 1], [], []>} : vector<256x128xbf16>, vector<128x128xbf16>, vector<256x128xf32> -> vector<256x128xf32>
    %28 = arith.addf %21, %27 : vector<256x128xf32>
    %c0_29 = arith.constant 0 : index
    %c2 = arith.constant 2 : index
    %c0_30 = arith.constant 0 : index
    %29 = vector.load %arg11[%c0_29, %c2, %c0_30] : memref<18x18x128xf32, #tpu.memory_space<vmem>>, vector<16x16x128xf32>
    %30 = vector.shape_cast %29 : vector<16x16x128xf32> to vector<256x128xf32>
    %31 = arith.truncf %30 : vector<256x128xf32> to vector<256x128xbf16>
    %c2_31 = arith.constant 2 : index
    %c0_32 = arith.constant 0 : index
    %c0_33 = arith.constant 0 : index
    %32 = vector.load %arg4[%c2_31, %c0_32, %c0_33] : memref<9x128x128xbf16, #tpu.memory_space<vmem>>, vector<1x128x128xbf16>
    %33 = vector.shape_cast %32 : vector<1x128x128xbf16> to vector<128x128xbf16>
    %cst_34 = arith.constant dense<0.000000e+00> : vector<256x128xf32>
    %34 = tpu.matmul %31, %33, %cst_34 {dimension_numbers = #tpu.dot_dimension_numbers<[1], [0], [0], [1], [0, 0, 1, 1], [], []>} : vector<256x128xbf16>, vector<128x128xbf16>, vector<256x128xf32> -> vector<256x128xf32>
    %35 = arith.addf %28, %34 : vector<256x128xf32>
    %c1_35 = arith.constant 1 : index
    %c0_36 = arith.constant 0 : index
    %c0_37 = arith.constant 0 : index
    %36 = vector.load %arg11[%c1_35, %c0_36, %c0_37] : memref<18x18x128xf32, #tpu.memory_space<vmem>>, vector<16x16x128xf32>
    %37 = vector.shape_cast %36 : vector<16x16x128xf32> to vector<256x128xf32>
    %38 = arith.truncf %37 : vector<256x128xf32> to vector<256x128xbf16>
    %c3 = arith.constant 3 : index
    %c0_38 = arith.constant 0 : index
    %c0_39 = arith.constant 0 : index
    %39 = vector.load %arg4[%c3, %c0_38, %c0_39] : memref<9x128x128xbf16, #tpu.memory_space<vmem>>, vector<1x128x128xbf16>
    %40 = vector.shape_cast %39 : vector<1x128x128xbf16> to vector<128x128xbf16>
    %cst_40 = arith.constant dense<0.000000e+00> : vector<256x128xf32>
    %41 = tpu.matmul %38, %40, %cst_40 {dimension_numbers = #tpu.dot_dimension_numbers<[1], [0], [0], [1], [0, 0, 1, 1], [], []>} : vector<256x128xbf16>, vector<128x128xbf16>, vector<256x128xf32> -> vector<256x128xf32>
    %42 = arith.addf %35, %41 : vector<256x128xf32>
    %c1_41 = arith.constant 1 : index
    %c1_42 = arith.constant 1 : index
    %c0_43 = arith.constant 0 : index
    %43 = vector.load %arg11[%c1_41, %c1_42, %c0_43] : memref<18x18x128xf32, #tpu.memory_space<vmem>>, vector<16x16x128xf32>
    %44 = vector.shape_cast %43 : vector<16x16x128xf32> to vector<256x128xf32>
    %45 = arith.truncf %44 : vector<256x128xf32> to vector<256x128xbf16>
    %c4 = arith.constant 4 : index
    %c0_44 = arith.constant 0 : index
    %c0_45 = arith.constant 0 : index
    %46 = vector.load %arg4[%c4, %c0_44, %c0_45] : memref<9x128x128xbf16, #tpu.memory_space<vmem>>, vector<1x128x128xbf16>
    %47 = vector.shape_cast %46 : vector<1x128x128xbf16> to vector<128x128xbf16>
    %cst_46 = arith.constant dense<0.000000e+00> : vector<256x128xf32>
    %48 = tpu.matmul %45, %47, %cst_46 {dimension_numbers = #tpu.dot_dimension_numbers<[1], [0], [0], [1], [0, 0, 1, 1], [], []>} : vector<256x128xbf16>, vector<128x128xbf16>, vector<256x128xf32> -> vector<256x128xf32>
    %49 = arith.addf %42, %48 : vector<256x128xf32>
    %c1_47 = arith.constant 1 : index
    %c2_48 = arith.constant 2 : index
    %c0_49 = arith.constant 0 : index
    %50 = vector.load %arg11[%c1_47, %c2_48, %c0_49] : memref<18x18x128xf32, #tpu.memory_space<vmem>>, vector<16x16x128xf32>
    %51 = vector.shape_cast %50 : vector<16x16x128xf32> to vector<256x128xf32>
    %52 = arith.truncf %51 : vector<256x128xf32> to vector<256x128xbf16>
    %c5 = arith.constant 5 : index
    %c0_50 = arith.constant 0 : index
    %c0_51 = arith.constant 0 : index
    %53 = vector.load %arg4[%c5, %c0_50, %c0_51] : memref<9x128x128xbf16, #tpu.memory_space<vmem>>, vector<1x128x128xbf16>
    %54 = vector.shape_cast %53 : vector<1x128x128xbf16> to vector<128x128xbf16>
    %cst_52 = arith.constant dense<0.000000e+00> : vector<256x128xf32>
    %55 = tpu.matmul %52, %54, %cst_52 {dimension_numbers = #tpu.dot_dimension_numbers<[1], [0], [0], [1], [0, 0, 1, 1], [], []>} : vector<256x128xbf16>, vector<128x128xbf16>, vector<256x128xf32> -> vector<256x128xf32>
    %56 = arith.addf %49, %55 : vector<256x128xf32>
    %c2_53 = arith.constant 2 : index
    %c0_54 = arith.constant 0 : index
    %c0_55 = arith.constant 0 : index
    %57 = vector.load %arg11[%c2_53, %c0_54, %c0_55] : memref<18x18x128xf32, #tpu.memory_space<vmem>>, vector<16x16x128xf32>
    %58 = vector.shape_cast %57 : vector<16x16x128xf32> to vector<256x128xf32>
    %59 = arith.truncf %58 : vector<256x128xf32> to vector<256x128xbf16>
    %c6 = arith.constant 6 : index
    %c0_56 = arith.constant 0 : index
    %c0_57 = arith.constant 0 : index
    %60 = vector.load %arg4[%c6, %c0_56, %c0_57] : memref<9x128x128xbf16, #tpu.memory_space<vmem>>, vector<1x128x128xbf16>
    %61 = vector.shape_cast %60 : vector<1x128x128xbf16> to vector<128x128xbf16>
    %cst_58 = arith.constant dense<0.000000e+00> : vector<256x128xf32>
    %62 = tpu.matmul %59, %61, %cst_58 {dimension_numbers = #tpu.dot_dimension_numbers<[1], [0], [0], [1], [0, 0, 1, 1], [], []>} : vector<256x128xbf16>, vector<128x128xbf16>, vector<256x128xf32> -> vector<256x128xf32>
    %63 = arith.addf %56, %62 : vector<256x128xf32>
    %c2_59 = arith.constant 2 : index
    %c1_60 = arith.constant 1 : index
    %c0_61 = arith.constant 0 : index
    %64 = vector.load %arg11[%c2_59, %c1_60, %c0_61] : memref<18x18x128xf32, #tpu.memory_space<vmem>>, vector<16x16x128xf32>
    %65 = vector.shape_cast %64 : vector<16x16x128xf32> to vector<256x128xf32>
    %66 = arith.truncf %65 : vector<256x128xf32> to vector<256x128xbf16>
    %c7 = arith.constant 7 : index
    %c0_62 = arith.constant 0 : index
    %c0_63 = arith.constant 0 : index
    %67 = vector.load %arg4[%c7, %c0_62, %c0_63] : memref<9x128x128xbf16, #tpu.memory_space<vmem>>, vector<1x128x128xbf16>
    %68 = vector.shape_cast %67 : vector<1x128x128xbf16> to vector<128x128xbf16>
    %cst_64 = arith.constant dense<0.000000e+00> : vector<256x128xf32>
    %69 = tpu.matmul %66, %68, %cst_64 {dimension_numbers = #tpu.dot_dimension_numbers<[1], [0], [0], [1], [0, 0, 1, 1], [], []>} : vector<256x128xbf16>, vector<128x128xbf16>, vector<256x128xf32> -> vector<256x128xf32>
    %70 = arith.addf %63, %69 : vector<256x128xf32>
    %c2_65 = arith.constant 2 : index
    %c2_66 = arith.constant 2 : index
    %c0_67 = arith.constant 0 : index
    %71 = vector.load %arg11[%c2_65, %c2_66, %c0_67] : memref<18x18x128xf32, #tpu.memory_space<vmem>>, vector<16x16x128xf32>
    %72 = vector.shape_cast %71 : vector<16x16x128xf32> to vector<256x128xf32>
    %73 = arith.truncf %72 : vector<256x128xf32> to vector<256x128xbf16>
    %c8 = arith.constant 8 : index
    %c0_68 = arith.constant 0 : index
    %c0_69 = arith.constant 0 : index
    %74 = vector.load %arg4[%c8, %c0_68, %c0_69] : memref<9x128x128xbf16, #tpu.memory_space<vmem>>, vector<1x128x128xbf16>
    %75 = vector.shape_cast %74 : vector<1x128x128xbf16> to vector<128x128xbf16>
    %cst_70 = arith.constant dense<0.000000e+00> : vector<256x128xf32>
    %76 = tpu.matmul %73, %75, %cst_70 {dimension_numbers = #tpu.dot_dimension_numbers<[1], [0], [0], [1], [0, 0, 1, 1], [], []>} : vector<256x128xbf16>, vector<128x128xbf16>, vector<256x128xf32> -> vector<256x128xf32>
    %77 = arith.addf %70, %76 : vector<256x128xf32>
    %c0_71 = arith.constant 0 : index
    %c0_72 = arith.constant 0 : index
    %78 = vector.load %arg5[%c0_71, %c0_72] : memref<1x128xf32, #tpu.memory_space<vmem>>, vector<1x128xf32>
    %79 = vector.broadcast %78 : vector<1x128xf32> to vector<256x128xf32>
    %80 = arith.addf %77, %79 : vector<256x128xf32>
    %cst_73 = arith.constant 0.000000e+00 : f32
    %81 = vector.broadcast %cst_73 : f32 to vector<256x128xf32>
    %82 = arith.maximumf %80, %81 : vector<256x128xf32>
    %83 = arith.truncf %82 : vector<256x128xf32> to vector<256x128xbf16>
    %c0_74 = arith.constant 0 : index
    %c0_75 = arith.constant 0 : index
    %84 = vector.load %arg6[%c0_74, %c0_75] : memref<128x128xbf16, #tpu.memory_space<vmem>>, vector<128x128xbf16>
    %cst_76 = arith.constant dense<0.000000e+00> : vector<256x128xf32>
    %85 = tpu.matmul %83, %84, %cst_76 {dimension_numbers = #tpu.dot_dimension_numbers<[1], [0], [0], [1], [0, 0, 1, 1], [], []>} : vector<256x128xbf16>, vector<128x128xbf16>, vector<256x128xf32> -> vector<256x128xf32>
    %c0_77 = arith.constant 0 : index
    %c0_78 = arith.constant 0 : index
    %86 = vector.load %arg7[%c0_77, %c0_78] : memref<1x128xf32, #tpu.memory_space<vmem>>, vector<1x128xf32>
    %87 = vector.broadcast %86 : vector<1x128xf32> to vector<256x128xf32>
    %88 = arith.addf %85, %87 : vector<256x128xf32>
    %c0_79 = arith.constant 0 : index
    %c0_80 = arith.constant 0 : index
    %89 = vector.load %arg8[%c0_79, %c0_80] : memref<128x128xbf16, #tpu.memory_space<vmem>>, vector<128x128xbf16>
    %cst_81 = arith.constant dense<0.000000e+00> : vector<256x128xf32>
    %90 = tpu.matmul %2, %89, %cst_81 {dimension_numbers = #tpu.dot_dimension_numbers<[1], [0], [0], [1], [0, 0, 1, 1], [], []>} : vector<256x128xbf16>, vector<128x128xbf16>, vector<256x128xf32> -> vector<256x128xf32>
    %c0_82 = arith.constant 0 : index
    %c0_83 = arith.constant 0 : index
    %91 = vector.load %arg9[%c0_82, %c0_83] : memref<1x128xf32, #tpu.memory_space<vmem>>, vector<1x128xf32>
    %92 = vector.broadcast %91 : vector<1x128xf32> to vector<256x128xf32>
    %93 = arith.addf %90, %92 : vector<256x128xf32>
    %94 = arith.addf %88, %93 : vector<256x128xf32>
    %cst_84 = arith.constant 0.000000e+00 : f32
    %95 = vector.broadcast %cst_84 : f32 to vector<256x128xf32>
    %96 = arith.maximumf %94, %95 : vector<256x128xf32>
    %97 = arith.truncf %96 : vector<256x128xf32> to vector<256x128xbf16>
    %98 = vector.shape_cast %97 : vector<256x128xbf16> to vector<16x16x128xbf16>
    %c0_85 = arith.constant 0 : index
    %c0_86 = arith.constant 0 : index
    %c0_87 = arith.constant 0 : index
    %c0_88 = arith.constant 0 : index
    %99 = vector.load %arg10[%c0_85, %c0_86, %c0_87, %c0_88] : memref<1x16x16x128xbf16, #tpu.memory_space<vmem>>, vector<1x16x16x128xbf16>
    %100 = vector.shape_cast %99 : vector<1x16x16x128xbf16> to vector<16x16x128xbf16>
    %101 = vector.shape_cast %98 : vector<16x16x128xbf16> to vector<1x16x16x128xbf16>
    tpu.vector_store %arg10[%c0_85, %c0_86, %c0_87, %c0_88], %101 {strides = array<i32>} : memref<1x16x16x128xbf16, #tpu.memory_space<vmem>>, vector<1x16x16x128xbf16>,
    return
  }
  func.func @transform_0(%arg0: i32) -> (i32, i32, i32, i32) {
    %c0_i32 = arith.constant 0 : i32
    %c0_i32_0 = arith.constant 0 : i32
    %c0_i32_1 = arith.constant 0 : i32
    %c0_i32_2 = arith.constant 0 : i32
    return %arg0, %c0_i32, %c0_i32_0, %c0_i32_1 : i32, i32, i32, i32
  }
  func.func @transform_1(%arg0: i32) -> (i32, i32) {
    %c0_i32 = arith.constant 0 : i32
    %c0_i32_0 = arith.constant 0 : i32
    %c0_i32_1 = arith.constant 0 : i32
    return %c0_i32, %c0_i32_0 : i32, i32
  }
  func.func @transform_2(%arg0: i32) -> (i32, i32) {
    %c0_i32 = arith.constant 0 : i32
    %c0_i32_0 = arith.constant 0 : i32
    %c0_i32_1 = arith.constant 0 : i32
    return %c0_i32, %c0_i32_0 : i32, i32
  }
  func.func @transform_3(%arg0: i32) -> (i32, i32, i32) {
    %c0_i32 = arith.constant 0 : i32
    %c0_i32_0 = arith.constant 0 : i32
    %c0_i32_1 = arith.constant 0 : i32
    %c0_i32_2 = arith.constant 0 : i32
    return %c0_i32, %c0_i32_0, %c0_i32_1 : i32, i32, i32
  }
  func.func @transform_4(%arg0: i32) -> (i32, i32) {
    %c0_i32 = arith.constant 0 : i32
    %c0_i32_0 = arith.constant 0 : i32
    %c0_i32_1 = arith.constant 0 : i32
    return %c0_i32, %c0_i32_0 : i32, i32
  }
  func.func @transform_5(%arg0: i32) -> (i32, i32) {
    %c0_i32 = arith.constant 0 : i32
    %c0_i32_0 = arith.constant 0 : i32
    %c0_i32_1 = arith.constant 0 : i32
    return %c0_i32, %c0_i32_0 : i32, i32
  }
  func.func @transform_6(%arg0: i32) -> (i32, i32) {
    %c0_i32 = arith.constant 0 : i32
    %c0_i32_0 = arith.constant 0 : i32
    %c0_i32_1 = arith.constant 0 : i32
    return %c0_i32, %c0_i32_0 : i32, i32
  }
  func.func @transform_7(%arg0: i32) -> (i32, i32) {
    %c0_i32 = arith.constant 0 : i32
    %c0_i32_0 = arith.constant 0 : i32
    %c0_i32_1 = arith.constant 0 : i32
    return %c0_i32, %c0_i32_0 : i32, i32
  }
  func.func @transform_8(%arg0: i32) -> (i32, i32) {
    %c0_i32 = arith.constant 0 : i32
    %c0_i32_0 = arith.constant 0 : i32
    %c0_i32_1 = arith.constant 0 : i32
    return %c0_i32, %c0_i32_0 : i32, i32
  }
  func.func @transform_9(%arg0: i32) -> (i32, i32, i32, i32) {
    %c0_i32 = arith.constant 0 : i32
    %c0_i32_0 = arith.constant 0 : i32
    %c0_i32_1 = arith.constant 0 : i32
    %c0_i32_2 = arith.constant 0 : i32
    return %arg0, %c0_i32, %c0_i32_0, %c0_i32_1 : i32, i32, i32, i32
  }
}

</mosaic_0001>

<llo_original>
// kernel: tpu_custom_call.1
$region0: #{tpu_custom_call.1}
  #allocation0 [shape = 'u32[]', space=smem, size = 0x4, offset = 0x4, fixed_abs, tag = 'smem constant byte address 0x4 - core index']
  #allocation1 [shape = 'u32[144,128]{1,0:T(1,128)}', space=vmem, size = 0x12000, scoped, tag = 'internal scratch']
  #allocation2 [shape = 'f32[18,18,128]{2,1,0:T(8,128)}', space=vmem, size = 0x36000, scoped, tag = 'scratch operand']
  %s0 = inlined_call_operand.hbm [shape: bf16[2,16,16,128], index: 0, kind: input, shape index: {}]
  %s1 = inlined_call_operand.hbm [shape: bf16[128,128], index: 1, kind: input, shape index: {}]
  %s2 = inlined_call_operand.vmem [shape: f32[1,128], index: 2, kind: input, shape index: {}]
  %s3 = inlined_call_operand.hbm [shape: bf16[9,128,128], index: 3, kind: input, shape index: {}]
  %s4 = inlined_call_operand.vmem [shape: f32[1,128], index: 4, kind: input, shape index: {}]
  %s5 = inlined_call_operand.hbm [shape: bf16[128,128], index: 5, kind: input, shape index: {}]
  %s6 = inlined_call_operand.vmem [shape: f32[1,128], index: 6, kind: input, shape index: {}]
  %s7 = inlined_call_operand.hbm [shape: bf16[128,128], index: 7, kind: input, shape index: {}]
  %s8 = inlined_call_operand.vmem [shape: f32[1,128], index: 8, kind: input, shape index: {}]
  %s9 = inlined_call_operand.hbm [shape: bf16[2,16,16,128], index: 9, kind: output, shape index: {}]
  %s10 = sld [smem:[#allocation0]]
  $region89: #{tpu_custom_call.1} parent=0
    _
  %s12 = ssub.s32 1, %s10
  %s13 = scalar_select 0, %s12, %s10
  $region1: #{tpu_custom_call.1} parent=0
    #allocation3 [shape = 'u8[131072]{0}', space=vmem, size = 0x20000, scoped, tag = 'input window, operand 0']
    #allocation4 [shape = 's32[2]{0}', space=sflag, size = 0x8, scoped, tag = 'scoped memory for tpu_custom_call.1']
    #allocation5 [shape = 's32[2]{0}', space=sflag, size = 0x8, scoped, tag = 'scoped memory for tpu_custom_call.1']
    #allocation6 [shape = 'u8[32768]{0}', space=vmem, size = 0x8000, scoped, tag = 'input window, operand 1, single buffered']
    #allocation7 [shape = 's32[1]{0}', space=sflag, size = 0x4, scoped, tag = 'scoped memory for tpu_custom_call.1']
    #allocation8 [shape = 'u8[294912]{0}', space=vmem, size = 0x48000, scoped, tag = 'input window, operand 3, single buffered']
    #allocation9 [shape = 'u8[32768]{0}', space=vmem, size = 0x8000, scoped, tag = 'input window, operand 5, single buffered']
    #allocation10 [shape = 's32[1]{0}', space=sflag, size = 0x4, scoped, tag = 'scoped memory for tpu_custom_call.1']
    #allocation11 [shape = 'u8[32768]{0}', space=vmem, size = 0x8000, scoped, tag = 'input window, operand 7, single buffered']
    #allocation12 [shape = 'u8[131072]{0}', space=vmem, size = 0x20000, scoped, tag = 'output window, operand 0']
    %14 = vsyncpa [#allocation4], 0
    %s15 = scalar_lea.sflag [#allocation4], 1
    %16 = vsyncpa %s15, 0
    %17 = vsyncpa [#allocation7], 0
    %18 = vsyncpa [#allocation10], 0
    %19 = vsyncpa [#allocation5], 0
    %s20 = scalar_lea.sflag [#allocation5], 1
    %21 = vsyncpa %s20, 0
    loop: start=0, step=1, limit=4
    $region2: #{tpu_custom_call.1} parent=1 // loop_pre_header
      _
    $region3: #{tpu_custom_call.1} parent=1 // loop_header
      %s23 = sphi 0, %s27
      %p24 = scmp.ge.s32.totalorder %s23, 4
      %s33 = sphi 0, %s35
      %s36 = sphi 0, %s33
      %s37 = sphi 0, %s36
      %s53 = sphi 0, %s37
      %s57 = sphi 0, %s57
      %s59 = sphi 0, %s57
      %s60 = sphi 0, %s59
      %s74 = sphi 0, %s60
      %s78 = sphi 0, %s78
      %s80 = sphi 0, %s78
      %s81 = sphi 0, %s80
      %s95 = sphi 0, %s81
      %s99 = sphi 0, %s99
      %s101 = sphi 0, %s99
      %s102 = sphi 0, %s101
      %s116 = sphi 0, %s102
      %s120 = sphi 0, %s120
      %s122 = sphi 0, %s120
      %s123 = sphi 0, %s122
      %s137 = sphi 0, %s123
      %s141 = sphi 0, %s141
      %s143 = sphi 0, %s141
      %s144 = sphi 0, %s143
      %s158 = sphi 0, %s144
      %s162 = sphi 0, %s162
      %s164 = sphi 0, %s162
      %s165 = sphi 0, %s164
      %s179 = sphi 0, %s165
      %s183 = sphi 0, %s183
      %s185 = sphi 0, %s183
      %s186 = sphi 0, %s185
      %s200 = sphi 0, %s186
      %s204 = sphi 0, %s204
      %s206 = sphi 0, %s204
      %s207 = sphi 0, %s206
      %s221 = sphi 0, %s207
      %s227 = sphi 0, %s229
      %s230 = sphi 0, %s227
      %s231 = sphi 0, %s230
      %s247 = sphi 0, %s231
    $region4: #{tpu_custom_call.1} parent=1 // loop_header_branch
      %26 = sbr.rel (%p24) target = $region8
    $region5: #{tpu_custom_call.1} parent=1 // loop_body
      %s28 = ssub.s32 %s23, 1
      %s29 = ssub.s32 %s23, 2
      %s30 = sadd.s32 %s23, 1
      %s31 = ssub.s32 %s23, %s30
      %p32 = scmp.eq.s32.totalorder %s31, 0
      %s34 = sadd.s32 %s33, 1
      %s35 = scalar_select %p32, %s33, %s34
      %p38 = pneg %p32
      %p39 = scmp.eq.s32.totalorder %s23, 1
      %p40 = por %p38, %p39
      %p41 = scmp.ne.s32.totalorder %s33, %s36
      %p42 = scmp.eq.s32.totalorder %s23, 0
      %p43 = por %p41, %p42
      %p44 = scmp.ne.s32.totalorder %s33, %s36
      %p45 = scmp.eq.s32.totalorder %s28, 1
      %p46 = por %p44, %p45
      %p47 = scmp.ne.s32.totalorder %s36, %s37
      %p48 = scmp.eq.s32.totalorder %s28, 0
      %p49 = por %p47, %p48
      %p50 = scmp.ne.s32.totalorder %s36, %s37
      %p51 = scmp.eq.s32.totalorder %s29, 1
      %p52 = por %p50, %p51
      %p54 = scmp.ne.s32.totalorder %s37, %s53
      %p55 = scmp.eq.s32.totalorder %s29, 0
      %p56 = por %p54, %p55
      %s58 = sadd.s32 %s57, 1
      %p61 = scmp.eq.s32.totalorder %s23, 1
      %p62 = scmp.ne.s32.totalorder %s57, %s59
      %p63 = scmp.eq.s32.totalorder %s23, 0
      %p64 = por %p62, %p63
      %p65 = scmp.ne.s32.totalorder %s57, %s59
      %p66 = scmp.eq.s32.totalorder %s28, 1
      %p67 = por %p65, %p66
      %p68 = scmp.ne.s32.totalorder %s59, %s60
      %p69 = scmp.eq.s32.totalorder %s28, 0
      %p70 = por %p68, %p69
      %p71 = scmp.ne.s32.totalorder %s59, %s60
      %p72 = scmp.eq.s32.totalorder %s29, 1
      %p73 = por %p71, %p72
      %p75 = scmp.ne.s32.totalorder %s60, %s74
      %p76 = scmp.eq.s32.totalorder %s29, 0
      %p77 = por %p75, %p76
      %s79 = sadd.s32 %s78, 1
      %p82 = scmp.eq.s32.totalorder %s23, 1
      %p83 = scmp.ne.s32.totalorder %s78, %s80
      %p84 = scmp.eq.s32.totalorder %s23, 0
      %p85 = por %p83, %p84
      %p86 = scmp.ne.s32.totalorder %s78, %s80
      %p87 = scmp.eq.s32.totalorder %s28, 1
      %p88 = por %p86, %p87
      %p89 = scmp.ne.s32.totalorder %s80, %s81
      %p90 = scmp.eq.s32.totalorder %s28, 0
      %p91 = por %p89, %p90
      %p92 = scmp.ne.s32.totalorder %s80, %s81
      %p93 = scmp.eq.s32.totalorder %s29, 1
      %p94 = por %p92, %p93
      %p96 = scmp.ne.s32.totalorder %s81, %s95
      %p97 = scmp.eq.s32.totalorder %s29, 0
      %p98 = por %p96, %p97
      %s100 = sadd.s32 %s99, 1
      %p103 = scmp.eq.s32.totalorder %s23, 1
      %p104 = scmp.ne.s32.totalorder %s99, %s101
      %p105 = scmp.eq.s32.totalorder %s23, 0
      %p106 = por %p104, %p105
      %p107 = scmp.ne.s32.totalorder %s99, %s101
      %p108 = scmp.eq.s32.totalorder %s28, 1
      %p109 = por %p107, %p108
      %p110 = scmp.ne.s32.totalorder %s101, %s102
      %p111 = scmp.eq.s32.totalorder %s28, 0
      %p112 = por %p110, %p111
      %p113 = scmp.ne.s32.totalorder %s101, %s102
      %p114 = scmp.eq.s32.totalorder %s29, 1
      %p115 = por %p113, %p114
      %p117 = scmp.ne.s32.totalorder %s102, %s116
      %p118 = scmp.eq.s32.totalorder %s29, 0
      %p119 = por %p117, %p118
      %s121 = sadd.s32 %s120, 1
      %p124 = scmp.eq.s32.totalorder %s23, 1
      %p125 = scmp.ne.s32.totalorder %s120, %s122
      %p126 = scmp.eq.s32.totalorder %s23, 0
      %p127 = por %p125, %p126
      %p128 = scmp.ne.s32.totalorder %s120, %s122
      %p129 = scmp.eq.s32.totalorder %s28, 1
      %p130 = por %p128, %p129
      %p131 = scmp.ne.s32.totalorder %s122, %s123
      %p132 = scmp.eq.s32.totalorder %s28, 0
      %p133 = por %p131, %p132
      %p134 = scmp.ne.s32.totalorder %s122, %s123
      %p135 = scmp.eq.s32.totalorder %s29, 1
      %p136 = por %p134, %p135
      %p138 = scmp.ne.s32.totalorder %s123, %s137
      %p139 = scmp.eq.s32.totalorder %s29, 0
      %p140 = por %p138, %p139
      %s142 = sadd.s32 %s141, 1
      %p145 = scmp.eq.s32.totalorder %s23, 1
      %p146 = scmp.ne.s32.totalorder %s141, %s143
      %p147 = scmp.eq.s32.totalorder %s23, 0
      %p148 = por %p146, %p147
      %p149 = scmp.ne.s32.totalorder %s141, %s143
      %p150 = scmp.eq.s32.totalorder %s28, 1
      %p151 = por %p149, %p150
      %p152 = scmp.ne.s32.totalorder %s143, %s144
      %p153 = scmp.eq.s32.totalorder %s28, 0
      %p154 = por %p152, %p153
      %p155 = scmp.ne.s32.totalorder %s143, %s144
      %p156 = scmp.eq.s32.totalorder %s29, 1
      %p157 = por %p155, %p156
      %p159 = scmp.ne.s32.totalorder %s144, %s158
      %p160 = scmp.eq.s32.totalorder %s29, 0
      %p161 = por %p159, %p160
      %s163 = sadd.s32 %s162, 1
      %p166 = scmp.eq.s32.totalorder %s23, 1
      %p167 = scmp.ne.s32.totalorder %s162, %s164
      %p168 = scmp.eq.s32.totalorder %s23, 0
      %p169 = por %p167, %p168
      %p170 = scmp.ne.s32.totalorder %s162, %s164
      %p171 = scmp.eq.s32.totalorder %s28, 1
      %p172 = por %p170, %p171
      %p173 = scmp.ne.s32.totalorder %s164, %s165
      %p174 = scmp.eq.s32.totalorder %s28, 0
      %p175 = por %p173, %p174
      %p176 = scmp.ne.s32.totalorder %s164, %s165
      %p177 = scmp.eq.s32.totalorder %s29, 1
      %p178 = por %p176, %p177
      %p180 = scmp.ne.s32.totalorder %s165, %s179
      %p181 = scmp.eq.s32.totalorder %s29, 0
      %p182 = por %p180, %p181
      %s184 = sadd.s32 %s183, 1
      %p187 = scmp.eq.s32.totalorder %s23, 1
      %p188 = scmp.ne.s32.totalorder %s183, %s185
      %p189 = scmp.eq.s32.totalorder %s23, 0
      %p190 = por %p188, %p189
      %p191 = scmp.ne.s32.totalorder %s183, %s185
      %p192 = scmp.eq.s32.totalorder %s28, 1
      %p193 = por %p191, %p192
      %p194 = scmp.ne.s32.totalorder %s185, %s186
      %p195 = scmp.eq.s32.totalorder %s28, 0
      %p196 = por %p194, %p195
      %p197 = scmp.ne.s32.totalorder %s185, %s186
      %p198 = scmp.eq.s32.totalorder %s29, 1
      %p199 = por %p197, %p198
      %p201 = scmp.ne.s32.totalorder %s186, %s200
      %p202 = scmp.eq.s32.totalorder %s29, 0
      %p203 = por %p201, %p202
      %s205 = sadd.s32 %s204, 1
      %p208 = scmp.eq.s32.totalorder %s23, 1
      %p209 = scmp.ne.s32.totalorder %s204, %s206
      %p210 = scmp.eq.s32.totalorder %s23, 0
      %p211 = por %p209, %p210
      %p212 = scmp.ne.s32.totalorder %s204, %s206
      %p213 = scmp.eq.s32.totalorder %s28, 1
      %p214 = por %p212, %p213
      %p215 = scmp.ne.s32.totalorder %s206, %s207
      %p216 = scmp.eq.s32.totalorder %s28, 0
      %p217 = por %p215, %p216
      %p218 = scmp.ne.s32.totalorder %s206, %s207
      %p219 = scmp.eq.s32.totalorder %s29, 1
      %p220 = por %p218, %p219
      %p222 = scmp.ne.s32.totalorder %s207, %s221
      %p223 = scmp.eq.s32.totalorder %s29, 0
      %p224 = por %p222, %p223
      %s225 = ssub.s32 %s23, %s30
      %p226 = scmp.eq.s32.totalorder %s225, 0
      %s228 = sadd.s32 %s227, 1
      %s229 = scalar_select %p226, %s227, %s228
      %p232 = pneg %p226
      %p233 = scmp.eq.s32.totalorder %s23, 1
      %p234 = por %p232, %p233
      %p235 = scmp.ne.s32.totalorder %s227, %s230
      %p236 = scmp.eq.s32.totalorder %s23, 0
      %p237 = por %p235, %p236
      %p238 = scmp.ne.s32.totalorder %s227, %s230
      %p239 = scmp.eq.s32.totalorder %s28, 1
      %p240 = por %p238, %p239
      %p241 = scmp.ne.s32.totalorder %s230, %s231
      %p242 = scmp.eq.s32.totalorder %s28, 0
      %p243 = por %p241, %p242
      %p244 = scmp.ne.s32.totalorder %s230, %s231
      %p245 = scmp.eq.s32.totalorder %s29, 1
      %p246 = por %p244, %p245
      %p248 = scmp.ne.s32.totalorder %s231, %s247
      %p249 = scmp.eq.s32.totalorder %s29, 0
      %p250 = por %p248, %p249
      %p251 = scmp.le.s32.totalorder 1, %s23
      %p252 = scmp.lt.s32.totalorder %s23, 3
      %p253 = pnand %p251, %p252
      %p254 = pneg %p253
      // Predicated region
      $region9: #{tpu_custom_call.1} parent=5 // pred_check
        _
      $region10: #{tpu_custom_call.1} parent=5 // pred_check_branch
        %256 = sbr.rel (%p253) target = $region12
      $region11: #{tpu_custom_call.1} parent=5 // pred_region
        %s257 = ssub.s32 %s23, 1
        // Predicated region
        $region13: #{tpu_custom_call.1} parent=11 // pred_check
          %p258 = pneg %p70
        $region14: #{tpu_custom_call.1} parent=11 // pred_check_branch
          %260 = sbr.rel (%p258) target = $region16
        $region15: #{tpu_custom_call.1} parent=11 // pred_region
          %s262 = ssub.s32 1024, 1024
          %263 = vsyncadd [#allocation7], %s262
          %s264 = sshll.u32 [#allocation6], 4
          %s265 = int_to_ptr.vmem [resolvable:$true] %s264
          %270 = dma.hbm_to_vmem [thread:$0]  %s1, 1024, %s265, [#allocation7], 64, 64, 4
        $region16: #{tpu_custom_call.1} parent=11 // pred_fallthru
          _
        // Predicated region
        $region17: #{tpu_custom_call.1} parent=11 // pred_check
          %p271 = pneg %p91
        $region18: #{tpu_custom_call.1} parent=11 // pred_check_branch
          %273 = sbr.rel (%p271) target = $region20
        $region19: #{tpu_custom_call.1} parent=11 // pred_region
          _
        $region20: #{tpu_custom_call.1} parent=11 // pred_fallthru
          _
        // Predicated region
        $region21: #{tpu_custom_call.1} parent=11 // pred_check
          %p274 = pneg %p112
        $region22: #{tpu_custom_call.1} parent=11 // pred_check_branch
          %276 = sbr.rel (%p274) target = $region24
        $region23: #{tpu_custom_call.1} parent=11 // pred_region
          %s278 = ssub.s32 9216, 9216
          %279 = vsyncadd [#allocation7], %s278
          %s280 = sshll.u32 [#allocation8], 4
          %s281 = int_to_ptr.vmem [resolvable:$true] %s280
          %286 = dma.hbm_to_vmem [thread:$0]  %s3, 9216, %s281, [#allocation7], 64, 64, 4
        $region24: #{tpu_custom_call.1} parent=11 // pred_fallthru
          _
        // Predicated region
        $region25: #{tpu_custom_call.1} parent=11 // pred_check
          %p287 = pneg %p133
        $region26: #{tpu_custom_call.1} parent=11 // pred_check_branch
          %289 = sbr.rel (%p287) target = $region28
        $region27: #{tpu_custom_call.1} parent=11 // pred_region
          _
        $region28: #{tpu_custom_call.1} parent=11 // pred_fallthru
          _
        // Predicated region
        $region29: #{tpu_custom_call.1} parent=11 // pred_check
          %p290 = pneg %p154
        $region30: #{tpu_custom_call.1} parent=11 // pred_check_branch
          %292 = sbr.rel (%p290) target = $region32
        $region31: #{tpu_custom_call.1} parent=11 // pred_region
          %s294 = ssub.s32 1024, 1024
          %295 = vsyncadd [#allocation10], %s294
          %s296 = sshll.u32 [#allocation9], 4
          %s297 = int_to_ptr.vmem [resolvable:$true] %s296
          %302 = dma.hbm_to_vmem [thread:$0]  %s5, 1024, %s297, [#allocation10], 64, 64, 4
        $region32: #{tpu_custom_call.1} parent=11 // pred_fallthru
          _
        // Predicated region
        $region33: #{tpu_custom_call.1} parent=11 // pred_check
          %p303 = pneg %p175
        $region34: #{tpu_custom_call.1} parent=11 // pred_check_branch
          %305 = sbr.rel (%p303) target = $region36
        $region35: #{tpu_custom_call.1} parent=11 // pred_region
          _
        $region36: #{tpu_custom_call.1} parent=11 // pred_fallthru
          _
        // Predicated region
        $region37: #{tpu_custom_call.1} parent=11 // pred_check
          %p306 = pneg %p196
        $region38: #{tpu_custom_call.1} parent=11 // pred_check_branch
          %308 = sbr.rel (%p306) target = $region40
        $region39: #{tpu_custom_call.1} parent=11 // pred_region
          %s310 = ssub.s32 1024, 1024
          %311 = vsyncadd [#allocation10], %s310
          %s312 = sshll.u32 [#allocation11], 4
          %s313 = int_to_ptr.vmem [resolvable:$true] %s312
          %318 = dma.hbm_to_vmem [thread:$0]  %s7, 1024, %s313, [#allocation10], 64, 64, 4
        $region40: #{tpu_custom_call.1} parent=11 // pred_fallthru
          _
        // Predicated region
        $region41: #{tpu_custom_call.1} parent=11 // pred_check
          %p319 = pneg %p217
        $region42: #{tpu_custom_call.1} parent=11 // pred_check_branch
          %321 = sbr.rel (%p319) target = $region44
        $region43: #{tpu_custom_call.1} parent=11 // pred_region
          _
        $region44: #{tpu_custom_call.1} parent=11 // pred_fallthru
          _
      $region12: #{tpu_custom_call.1} parent=5 // pred_fallthru
        _
      %p322 = scmp.lt.s32.totalorder %s23, 2
      // Predicated region
      $region45: #{tpu_custom_call.1} parent=5 // pred_check
        %p323 = pneg %p322
      $region46: #{tpu_custom_call.1} parent=5 // pred_check_branch
        %325 = sbr.rel (%p323) target = $region48
      $region47: #{tpu_custom_call.1} parent=5 // pred_region
        // Predicated region
        $region49: #{tpu_custom_call.1} parent=47 // pred_check
          %p326 = pneg %p43
        $region50: #{tpu_custom_call.1} parent=47 // pred_check_branch
          %328 = sbr.rel (%p326) target = $region52
        $region51: #{tpu_custom_call.1} parent=47 // pred_region
          %s329 = sand.u32 %s33, 1
          %s330 = scalar_lea.sflag [#allocation4], %s329
          %s331 = sand.u32 %s33, 1
          %s332 = smul.addr %s331, 128
          %s333 = scalar_lea.vmem [#allocation3], %s332
          %s335 = ssub.s32 2048, 2048
          %336 = vsyncadd %s330, %s335
          %s337 = smul.addr %s23, 32
          %s338 = smul.addr %s337, 64
          %s339 = scalar_lea.hbm %s0, %s338
          %s340 = sshll.u32 %s333, 4
          %s341 = int_to_ptr.vmem [resolvable:$true] %s340
          %346 = dma.hbm_to_vmem [thread:$0]  %s339, 2048, %s341, %s330, 64, 64, 4
        $region52: #{tpu_custom_call.1} parent=47 // pred_fallthru
          _
      $region48: #{tpu_custom_call.1} parent=5 // pred_fallthru
        _
      %p347 = scmp.le.s32.totalorder 1, %s23
      %p348 = scmp.lt.s32.totalorder %s23, 3
      %p349 = pnand %p347, %p348
      %p350 = pneg %p349
      // Predicated region
      $region53: #{tpu_custom_call.1} parent=5 // pred_check
        _
      $region54: #{tpu_custom_call.1} parent=5 // pred_check_branch
        %352 = sbr.rel (%p349) target = $region56
      $region55: #{tpu_custom_call.1} parent=5 // pred_region
        %s353 = ssub.s32 %s23, 1
        %s354 = sand.u32 %s36, 1
        %s355 = scalar_lea.sflag [#allocation4], %s354
        %s356 = sand.u32 %s36, 1
        %s357 = smul.addr %s356, 128
        %s358 = scalar_lea.vmem [#allocation3], %s357
        // Predicated region
        $region57: #{tpu_custom_call.1} parent=55 // pred_check
          %p359 = pneg %p49
        $region58: #{tpu_custom_call.1} parent=55 // pred_check_branch
          %361 = sbr.rel (%p359) target = $region60
        $region59: #{tpu_custom_call.1} parent=55 // pred_region
          %362 = dma.done %s355, 2048
        $region60: #{tpu_custom_call.1} parent=55 // pred_fallthru
          _
        // Predicated region
        $region61: #{tpu_custom_call.1} parent=55 // pred_check
          %p363 = pneg %p70
        $region62: #{tpu_custom_call.1} parent=55 // pred_check_branch
          %365 = sbr.rel (%p363) target = $region64
        $region63: #{tpu_custom_call.1} parent=55 // pred_region
          %366 = dma.done [#allocation7], 1024
        $region64: #{tpu_custom_call.1} parent=55 // pred_fallthru
          _
        // Predicated region
        $region65: #{tpu_custom_call.1} parent=55 // pred_check
          %p367 = pneg %p112
        $region66: #{tpu_custom_call.1} parent=55 // pred_check_branch
          %369 = sbr.rel (%p367) target = $region68
        $region67: #{tpu_custom_call.1} parent=55 // pred_region
          %370 = dma.done [#allocation7], 9216
        $region68: #{tpu_custom_call.1} parent=55 // pred_fallthru
          _
        // Predicated region
        $region69: #{tpu_custom_call.1} parent=55 // pred_check
          %p371 = pneg %p154
        $region70: #{tpu_custom_call.1} parent=55 // pred_check_branch
          %373 = sbr.rel (%p371) target = $region72
        $region71: #{tpu_custom_call.1} parent=55 // pred_region
          %374 = dma.done [#allocation10], 1024
        $region72: #{tpu_custom_call.1} parent=55 // pred_fallthru
          _
        // Predicated region
        $region73: #{tpu_custom_call.1} parent=55 // pred_check
          %p375 = pneg %p196
        $region74: #{tpu_custom_call.1} parent=55 // pred_check_branch
          %377 = sbr.rel (%p375) target = $region76
        $region75: #{tpu_custom_call.1} parent=55 // pred_region
          %378 = dma.done [#allocation10], 1024
        $region76: #{tpu_custom_call.1} parent=55 // pred_fallthru
          _
        %s379 = sand.u32 %s36, 1
        %s380 = scalar_lea.sflag [#allocation4], %s379
        %s381 = sand.u32 %s36, 1
        %s382 = smul.addr %s381, 128
        %s383 = scalar_lea.vmem [#allocation3], %s382
        %p384 = pneg %p49
        %p385 = pneg %p46
        %p386 = pneg %p70
        %p387 = pneg %p67
        %p388 = pneg %p91
        %p389 = pneg %p88
        %p390 = pneg %p112
        %p391 = pneg %p109
        %p392 = pneg %p133
        %p393 = pneg %p130
        %p394 = pneg %p154
        %p395 = pneg %p151
        %p396 = pneg %p175
        %p397 = pneg %p172
        %p398 = pneg %p196
        %p399 = pneg %p193
        %p400 = pneg %p217
        %p401 = pneg %p214
        %p402 = pneg %p243
        %p403 = pneg %p240
        %s404 = sand.u32 %s230, 1
        %s405 = scalar_lea.sflag [#allocation5], %s404
        %s406 = sand.u32 %s230, 1
        %s407 = smul.addr %s406, 128
        %s408 = scalar_lea.vmem [#allocation12], %s407
        %v410 = vld [vmem:[%s358] sm:$0xf]
        %v411 = vld [vmem:[%s358 + $0x4] sm:$0xf]
        %v412 = vld [vmem:[%s358 + $0x8] sm:$0xf]
        %v413 = vld [vmem:[%s358 + $0xc] sm:$0xf]
        %v414 = vld [vmem:[%s358 + $0x10] sm:$0xf]
        %v415 = vld [vmem:[%s358 + $0x14] sm:$0xf]
        %v416 = vld [vmem:[%s358 + $0x18] sm:$0xf]
        %v417 = vld [vmem:[%s358 + $0x1c] sm:$0xf]
        %v418 = vld [vmem:[%s358 + $0x20] sm:$0xf]
        %v419 = vld [vmem:[%s358 + $0x24] sm:$0xf]
        %v420 = vld [vmem:[%s358 + $0x28] sm:$0xf]
        %v421 = vld [vmem:[%s358 + $0x2c] sm:$0xf]
        %v422 = vld [vmem:[%s358 + $0x30] sm:$0xf]
        %v423 = vld [vmem:[%s358 + $0x34] sm:$0xf]
        %v424 = vld [vmem:[%s358 + $0x38] sm:$0xf]
        %v425 = vld [vmem:[%s358 + $0x3c] sm:$0xf]
        %v426 = vld [vmem:[%s358 + $0x40] sm:$0xf]
        %v427 = vld [vmem:[%s358 + $0x44] sm:$0xf]
        %v428 = vld [vmem:[%s358 + $0x48] sm:$0xf]
        %v429 = vld [vmem:[%s358 + $0x4c] sm:$0xf]
        %v430 = vld [vmem:[%s358 + $0x50] sm:$0xf]
        %v431 = vld [vmem:[%s358 + $0x54] sm:$0xf]
        %v432 = vld [vmem:[%s358 + $0x58] sm:$0xf]
        %v433 = vld [vmem:[%s358 + $0x5c] sm:$0xf]
        %v434 = vld [vmem:[%s358 + $0x60] sm:$0xf]
        %v435 = vld [vmem:[%s358 + $0x64] sm:$0xf]
        %v436 = vld [vmem:[%s358 + $0x68] sm:$0xf]
        %v437 = vld [vmem:[%s358 + $0x6c] sm:$0xf]
        %v438 = vld [vmem:[%s358 + $0x70] sm:$0xf]
        %v439 = vld [vmem:[%s358 + $0x74] sm:$0xf]
        %v440 = vld [vmem:[%s358 + $0x78] sm:$0xf]
        %v441 = vld [vmem:[%s358 + $0x7c] sm:$0xf]
        %v442 = vld [vmem:[#allocation6] sm:$0xf]
        %v443 = vld [vmem:[#allocation6 + $0x4] sm:$0xf]
        %v444 = vld [vmem:[#allocation6 + $0x8] sm:$0xf]
        %v445 = vld [vmem:[#allocation6 + $0xc] sm:$0xf]
        %v446 = vld [vmem:[#allocation6 + $0x10] sm:$0xf]
        %v447 = vld [vmem:[#allocation6 + $0x14] sm:$0xf]
        %v448 = vld [vmem:[#allocation6 + $0x18] sm:$0xf]
        %v449 = vld [vmem:[#allocation6 + $0x1c] sm:$0xf]
        %v450 = vld [vmem:[#allocation6 + $0x20] sm:$0xf]
        %v451 = vld [vmem:[#allocation6 + $0x24] sm:$0xf]
        %v452 = vld [vmem:[#allocation6 + $0x28] sm:$0xf]
        %v453 = vld [vmem:[#allocation6 + $0x2c] sm:$0xf]
        %v454 = vld [vmem:[#allocation6 + $0x30] sm:$0xf]
        %v455 = vld [vmem:[#allocation6 + $0x34] sm:$0xf]
        %v456 = vld [vmem:[#allocation6 + $0x38] sm:$0xf]
        %v457 = vld [vmem:[#allocation6 + $0x3c] sm:$0xf]
        %v458 = vld [vmem:[%s2] sm:$0x1]
        %v460 = vlaneseq
        %v461 = vshrl.u32 %v460, 7
        %v462 = vsub.s32 0, %v461
        %v463 = vrot.slane %v458, %v462
        %v497 = vunpack.c.l.b16 %v410
        %v498 = vunpack.c.l.b16 %v411
        %v499 = vunpack.c.l.b16 %v412
        %v500 = vunpack.c.l.b16 %v413
        %v501 = vunpack.c.l.b16 %v414
        %v502 = vunpack.c.l.b16 %v415
        %v503 = vunpack.c.l.b16 %v416
        %v504 = vunpack.c.l.b16 %v417
        %v505 = vunpack.c.l.b16 %v418
        %v506 = vunpack.c.l.b16 %v419
        %v507 = vunpack.c.l.b16 %v420
        %v508 = vunpack.c.l.b16 %v421
        %v509 = vunpack.c.l.b16 %v422
        %v510 = vunpack.c.l.b16 %v423
        %v511 = vunpack.c.l.b16 %v424
        %v512 = vunpack.c.l.b16 %v425
        %v513 = vunpack.c.l.b16 %v426
        %v514 = vunpack.c.l.b16 %v427
        %v515 = vunpack.c.l.b16 %v428
        %v516 = vunpack.c.l.b16 %v429
        %v517 = vunpack.c.l.b16 %v430
        %v518 = vunpack.c.l.b16 %v431
        %v519 = vunpack.c.l.b16 %v432
        %v520 = vunpack.c.l.b16 %v433
        %v521 = vunpack.c.l.b16 %v434
        %v522 = vunpack.c.l.b16 %v435
        %v523 = vunpack.c.l.b16 %v436
        %v524 = vunpack.c.l.b16 %v437
        %v525 = vunpack.c.l.b16 %v438
        %v526 = vunpack.c.l.b16 %v439
        %v527 = vunpack.c.l.b16 %v440
        %v528 = vunpack.c.l.b16 %v441
        %v529 = vpack.c.b16 %v498, %v497
        %v530 = vpack.c.b16 %v500, %v499
        %v531 = vpack.c.b16 %v502, %v501
        %v532 = vpack.c.b16 %v504, %v503
        %v533 = vpack.c.b16 %v506, %v505
        %v534 = vpack.c.b16 %v508, %v507
        %v535 = vpack.c.b16 %v510, %v509
        %v536 = vpack.c.b16 %v512, %v511
        %v537 = vpack.c.b16 %v514, %v513
        %v538 = vpack.c.b16 %v516, %v515
        %v539 = vpack.c.b16 %v518, %v517
        %v540 = vpack.c.b16 %v520, %v519
        %v541 = vpack.c.b16 %v522, %v521
        %v542 = vpack.c.b16 %v524, %v523
        %v543 = vpack.c.b16 %v526, %v525
        %v544 = vpack.c.b16 %v528, %v527
        %v577 = vunpack.c.l.b16 %v442
        %v578 = vunpack.c.l.b16 %v443
        %v579 = vunpack.c.l.b16 %v444
        %v580 = vunpack.c.l.b16 %v445
        %v581 = vunpack.c.l.b16 %v446
        %v582 = vunpack.c.l.b16 %v447
        %v583 = vunpack.c.l.b16 %v448
        %v584 = vunpack.c.l.b16 %v449
        %v585 = vunpack.c.l.b16 %v450
        %v586 = vunpack.c.l.b16 %v451
        %v587 = vunpack.c.l.b16 %v452
        %v588 = vunpack.c.l.b16 %v453
        %v589 = vunpack.c.l.b16 %v454
        %v590 = vunpack.c.l.b16 %v455
        %v591 = vunpack.c.l.b16 %v456
        %v592 = vunpack.c.l.b16 %v457
        %v593 = vpack.c.b16 %v578, %v577
        %v594 = vpack.c.b16 %v580, %v579
        %v595 = vpack.c.b16 %v582, %v581
        %v596 = vpack.c.b16 %v584, %v583
        %v597 = vpack.c.b16 %v586, %v585
        %v598 = vpack.c.b16 %v588, %v587
        %v599 = vpack.c.b16 %v590, %v589
        %v600 = vpack.c.b16 %v592, %v591
        %609 = vmatprep.subr.bf16.mxu0 0
        %610 = vmatpush1.bf16.msra.mxu0 %v600
        %611 = vmatprep.subr.bf16.mxu0 0
        %612 = vmatpush1.bf16.msra.mxu0 %v599
        %613 = vmatprep.subr.bf16.mxu0 0
        %614 = vmatpush1.bf16.msra.mxu0 %v598
        %615 = vmatprep.subr.bf16.mxu0 0
        %616 = vmatpush1.bf16.msra.mxu0 %v597
        %617 = vmatprep.subr.bf16.mxu0 0
        %618 = vmatpush1.bf16.msra.mxu0 %v596
        %619 = vmatprep.subr.bf16.mxu0 0
        %620 = vmatpush1.bf16.msra.mxu0 %v595
        %621 = vmatprep.subr.bf16.mxu0 0
        %622 = vmatpush1.bf16.msra.mxu0 %v594
        %623 = vmatprep.subr.bf16.mxu0 0
        %624 = vmatpush1.bf16.msra.mxu0 %v593
        %625 = vmatprep.subr.bf16.mxu0 0
        %626 = vmatpush2.bf16.msra.mxu0 0
        %627 = vmatprep.subr.bf16.mxu0 0
        %628 = vmatpush2.bf16.msra.mxu0 0
        %629 = vmatprep.subr.bf16.mxu0 0
        %630 = vmatpush2.bf16.msra.mxu0 0
        %631 = vmatprep.subr.bf16.mxu0 0
        %632 = vmatpush2.bf16.msra.mxu0 0
        %633 = vmatprep.subr.bf16.mxu0 0
        %634 = vmatpush2.bf16.msra.mxu0 0
        %635 = vmatprep.subr.bf16.mxu0 0
        %636 = vmatpush2.bf16.msra.mxu0 0
        %637 = vmatprep.subr.bf16.mxu0 0
        %638 = vmatpush2.bf16.msra.mxu0 0
        %639 = vmatprep.subr.bf16.mxu0 0
        %640 = vmatpush2.bf16.msra.mxu0 0
        %641 = vmatprep.mubr.bf16.mxu0 0
        %642 = vmatmul.mubr.bf16.gmra.mxu0 %v529
        %v643 = vpop.f32.mrf.mxu0
        %v644 = vadd.f32 %v463, %v643
        %v645 = vpop.f32.mrf.mxu0
        %v646 = vpop.f32.mrf.mxu0
        %v647 = vadd.f32 %v463, %v646
        %v648 = vpop.f32.mrf.mxu0
        %649 = vmatprep.mubr.bf16.mxu0 0
        %650 = vmatmul.mubr.bf16.gmra.mxu0 %v530
        %v651 = vpop.f32.mrf.mxu0
        %v652 = vadd.f32 %v463, %v651
        %v653 = vpop.f32.mrf.mxu0
        %v654 = vpop.f32.mrf.mxu0
        %v655 = vadd.f32 %v463, %v654
        %v656 = vpop.f32.mrf.mxu0
        %657 = vmatprep.mubr.bf16.mxu0 0
        %658 = vmatmul.mubr.bf16.gmra.mxu0 %v531
        %v659 = vpop.f32.mrf.mxu0
        %v660 = vadd.f32 %v463, %v659
        %v661 = vpop.f32.mrf.mxu0
        %v662 = vpop.f32.mrf.mxu0
        %v663 = vadd.f32 %v463, %v662
        %v664 = vpop.f32.mrf.mxu0
        %665 = vmatprep.mubr.bf16.mxu0 0
        %666 = vmatmul.mubr.bf16.gmra.mxu0 %v532
        %v667 = vpop.f32.mrf.mxu0
        %v668 = vadd.f32 %v463, %v667
        %v669 = vpop.f32.mrf.mxu0
        %v670 = vpop.f32.mrf.mxu0
        %v671 = vadd.f32 %v463, %v670
        %v672 = vpop.f32.mrf.mxu0
        %673 = vmatprep.mubr.bf16.mxu0 0
        %674 = vmatmul.mubr.bf16.gmra.mxu0 %v533
        %v675 = vpop.f32.mrf.mxu0
        %v676 = vadd.f32 %v463, %v675
        %v677 = vpop.f32.mrf.mxu0
        %v678 = vpop.f32.mrf.mxu0
        %v679 = vadd.f32 %v463, %v678
        %v680 = vpop.f32.mrf.mxu0
        %681 = vmatprep.mubr.bf16.mxu0 0
        %682 = vmatmul.mubr.bf16.gmra.mxu0 %v534
        %v683 = vpop.f32.mrf.mxu0
        %v684 = vadd.f32 %v463, %v683
        %v685 = vpop.f32.mrf.mxu0
        %v686 = vpop.f32.mrf.mxu0
        %v687 = vadd.f32 %v463, %v686
        %v688 = vpop.f32.mrf.mxu0
        %689 = vmatprep.mubr.bf16.mxu0 0
        %690 = vmatmul.mubr.bf16.gmra.mxu0 %v535
        %v691 = vpop.f32.mrf.mxu0
        %v692 = vadd.f32 %v463, %v691
        %v693 = vpop.f32.mrf.mxu0
        %v694 = vpop.f32.mrf.mxu0
        %v695 = vadd.f32 %v463, %v694
        %v696 = vpop.f32.mrf.mxu0
        %697 = vmatprep.mubr.bf16.mxu0 0
        %698 = vmatmul.mubr.bf16.gmra.mxu0 %v536
        %v699 = vpop.f32.mrf.mxu0
        %v700 = vadd.f32 %v463, %v699
        %v701 = vpop.f32.mrf.mxu0
        %v702 = vpop.f32.mrf.mxu0
        %v703 = vadd.f32 %v463, %v702
        %v704 = vpop.f32.mrf.mxu0
        %705 = vmatprep.mubr.bf16.mxu0 0
        %706 = vmatmul.mubr.bf16.gmra.mxu0 %v537
        %v707 = vpop.f32.mrf.mxu0
        %v708 = vadd.f32 %v463, %v707
        %v709 = vpop.f32.mrf.mxu0
        %v710 = vpop.f32.mrf.mxu0
        %v711 = vadd.f32 %v463, %v710
        %v712 = vpop.f32.mrf.mxu0
        %713 = vmatprep.mubr.bf16.mxu0 0
        %714 = vmatmul.mubr.bf16.gmra.mxu0 %v538
        %v715 = vpop.f32.mrf.mxu0
        %v716 = vadd.f32 %v463, %v715
        %v717 = vpop.f32.mrf.mxu0
        %v718 = vpop.f32.mrf.mxu0
        %v719 = vadd.f32 %v463, %v718
        %v720 = vpop.f32.mrf.mxu0
        %721 = vmatprep.mubr.bf16.mxu0 0
        %722 = vmatmul.mubr.bf16.gmra.mxu0 %v539
        %v723 = vpop.f32.mrf.mxu0
        %v724 = vadd.f32 %v463, %v723
        %v725 = vpop.f32.mrf.mxu0
        %v726 = vpop.f32.mrf.mxu0
        %v727 = vadd.f32 %v463, %v726
        %v728 = vpop.f32.mrf.mxu0
        %729 = vmatprep.mubr.bf16.mxu0 0
        %730 = vmatmul.mubr.bf16.gmra.mxu0 %v540
        %v731 = vpop.f32.mrf.mxu0
        %v732 = vadd.f32 %v463, %v731
        %v733 = vpop.f32.mrf.mxu0
        %v734 = vpop.f32.mrf.mxu0
        %v735 = vadd.f32 %v463, %v734
        %v736 = vpop.f32.mrf.mxu0
        %737 = vmatprep.mubr.bf16.mxu0 0
        %738 = vmatmul.mubr.bf16.gmra.mxu0 %v541
        %v739 = vpop.f32.mrf.mxu0
        %v740 = vadd.f32 %v463, %v739
        %v741 = vpop.f32.mrf.mxu0
        %v742 = vpop.f32.mrf.mxu0
        %v743 = vadd.f32 %v463, %v742
        %v744 = vpop.f32.mrf.mxu0
        %745 = vmatprep.mubr.bf16.mxu0 0
        %746 = vmatmul.mubr.bf16.gmra.mxu0 %v542
        %v747 = vpop.f32.mrf.mxu0
        %v748 = vadd.f32 %v463, %v747
        %v749 = vpop.f32.mrf.mxu0
        %v750 = vpop.f32.mrf.mxu0
        %v751 = vadd.f32 %v463, %v750
        %v752 = vpop.f32.mrf.mxu0
        %753 = vmatprep.mubr.bf16.mxu0 0
        %754 = vmatmul.mubr.bf16.gmra.mxu0 %v543
        %v755 = vpop.f32.mrf.mxu0
        %v756 = vadd.f32 %v463, %v755
        %v757 = vpop.f32.mrf.mxu0
        %v758 = vpop.f32.mrf.mxu0
        %v759 = vadd.f32 %v463, %v758
        %v760 = vpop.f32.mrf.mxu0
        %761 = vmatprep.mubr.bf16.mxu0 0
        %762 = vmatmul.mubr.bf16.gmra.mxu0 %v544
        %v763 = vpop.f32.mrf.mxu0
        %v764 = vadd.f32 %v463, %v763
        %v765 = vpop.f32.mrf.mxu0
        %v766 = vpop.f32.mrf.mxu0
        %v767 = vadd.f32 %v463, %v766
        %v768 = vpop.f32.mrf.mxu0
        %769 = vdwg.mxu0
        %v770 = vmax.f32 %v644, 0.0
        %v771 = vmax.f32 %v647, 0.0
        %v772 = vmax.f32 %v652, 0.0
        %v773 = vmax.f32 %v655, 0.0
        %v774 = vmax.f32 %v660, 0.0
        %v775 = vmax.f32 %v663, 0.0
        %v776 = vmax.f32 %v668, 0.0
        %v777 = vmax.f32 %v671, 0.0
        %v778 = vmax.f32 %v676, 0.0
        %v779 = vmax.f32 %v679, 0.0
        %v780 = vmax.f32 %v684, 0.0
        %v781 = vmax.f32 %v687, 0.0
        %v782 = vmax.f32 %v692, 0.0
        %v783 = vmax.f32 %v695, 0.0
        %v784 = vmax.f32 %v700, 0.0
        %v785 = vmax.f32 %v703, 0.0
        %v786 = vmax.f32 %v708, 0.0
        %v787 = vmax.f32 %v711, 0.0
        %v788 = vmax.f32 %v716, 0.0
        %v789 = vmax.f32 %v719, 0.0
        %v790 = vmax.f32 %v724, 0.0
        %v791 = vmax.f32 %v727, 0.0
        %v792 = vmax.f32 %v732, 0.0
        %v793 = vmax.f32 %v735, 0.0
        %v794 = vmax.f32 %v740, 0.0
        %v795 = vmax.f32 %v743, 0.0
        %v796 = vmax.f32 %v748, 0.0
        %v797 = vmax.f32 %v751, 0.0
        %v798 = vmax.f32 %v756, 0.0
        %v799 = vmax.f32 %v759, 0.0
        %v800 = vmax.f32 %v764, 0.0
        %v801 = vmax.f32 %v767, 0.0
        %802 = vst [vmem:[#allocation2] sm:$0xff] 0.0
        %803 = vst [vmem:[#allocation2 + $0x8] sm:$0xff] 0.0
        %804 = vst [vmem:[#allocation2 + $0x10] sm:$0x3] 0.0
        %805 = vst [vmem:[#allocation2 + $0x18] sm:$0xff] 0.0
        %806 = vst [vmem:[#allocation2 + $0x20] sm:$0xff] 0.0
        %807 = vst [vmem:[#allocation2 + $0x28] sm:$0x3] 0.0
        %808 = vst [vmem:[#allocation2 + $0x30] sm:$0xff] 0.0
        %809 = vst [vmem:[#allocation2 + $0x38] sm:$0xff] 0.0
        %810 = vst [vmem:[#allocation2 + $0x40] sm:$0x3] 0.0
        %811 = vst [vmem:[#allocation2 + $0x48] sm:$0xff] 0.0
        %812 = vst [vmem:[#allocation2 + $0x50] sm:$0xff] 0.0
        %813 = vst [vmem:[#allocation2 + $0x58] sm:$0x3] 0.0
        %814 = vst [vmem:[#allocation2 + $0x60] sm:$0xff] 0.0
        %815 = vst [vmem:[#allocation2 + $0x68] sm:$0xff] 0.0
        %816 = vst [vmem:[#allocation2 + $0x70] sm:$0x3] 0.0
        %817 = vst [vmem:[#allocation2 + $0x78] sm:$0xff] 0.0
        %818 = vst [vmem:[#allocation2 + $0x80] sm:$0xff] 0.0
        %819 = vst [vmem:[#allocation2 + $0x88] sm:$0x3] 0.0
        %820 = vst [vmem:[#allocation2 + $0x90] sm:$0xff] 0.0
        %821 = vst [vmem:[#allocation2 + $0x98] sm:$0xff] 0.0
        %822 = vst [vmem:[#allocation2 + $0xa0] sm:$0x3] 0.0
        %823 = vst [vmem:[#allocation2 + $0xa8] sm:$0xff] 0.0
        %824 = vst [vmem:[#allocation2 + $0xb0] sm:$0xff] 0.0
        %825 = vst [vmem:[#allocation2 + $0xb8] sm:$0x3] 0.0
        %826 = vst [vmem:[#allocation2 + $0xc0] sm:$0xff] 0.0
        %827 = vst [vmem:[#allocation2 + $0xc8] sm:$0xff] 0.0
        %828 = vst [vmem:[#allocation2 + $0xd0] sm:$0x3] 0.0
        %829 = vst [vmem:[#allocation2 + $0xd8] sm:$0xff] 0.0
        %830 = vst [vmem:[#allocation2 + $0xe0] sm:$0xff] 0.0
        %831 = vst [vmem:[#allocation2 + $0xe8] sm:$0x3] 0.0
        %832 = vst [vmem:[#allocation2 + $0xf0] sm:$0xff] 0.0
        %833 = vst [vmem:[#allocation2 + $0xf8] sm:$0xff] 0.0
        %834 = vst [vmem:[#allocation2 + $0x100] sm:$0x3] 0.0
        %835 = vst [vmem:[#allocation2 + $0x108] sm:$0xff] 0.0
        %836 = vst [vmem:[#allocation2 + $0x110] sm:$0xff] 0.0
        %837 = vst [vmem:[#allocation2 + $0x118] sm:$0x3] 0.0
        %838 = vst [vmem:[#allocation2 + $0x120] sm:$0xff] 0.0
        %839 = vst [vmem:[#allocation2 + $0x128] sm:$0xff] 0.0
        %840 = vst [vmem:[#allocation2 + $0x130] sm:$0x3] 0.0
        %841 = vst [vmem:[#allocation2 + $0x138] sm:$0xff] 0.0
        %842 = vst [vmem:[#allocation2 + $0x140] sm:$0xff] 0.0
        %843 = vst [vmem:[#allocation2 + $0x148] sm:$0x3] 0.0
        %844 = vst [vmem:[#allocation2 + $0x150] sm:$0xff] 0.0
        %845 = vst [vmem:[#allocation2 + $0x158] sm:$0xff] 0.0
        %846 = vst [vmem:[#allocation2 + $0x160] sm:$0x3] 0.0
        %847 = vst [vmem:[#allocation2 + $0x168] sm:$0xff] 0.0
        %848 = vst [vmem:[#allocation2 + $0x170] sm:$0xff] 0.0
        %849 = vst [vmem:[#allocation2 + $0x178] sm:$0x3] 0.0
        %850 = vst [vmem:[#allocation2 + $0x180] sm:$0xff] 0.0
        %851 = vst [vmem:[#allocation2 + $0x188] sm:$0xff] 0.0
        %852 = vst [vmem:[#allocation2 + $0x190] sm:$0x3] 0.0
        %853 = vst [vmem:[#allocation2 + $0x198] sm:$0xff] 0.0
        %854 = vst [vmem:[#allocation2 + $0x1a0] sm:$0xff] 0.0
        %855 = vst [vmem:[#allocation2 + $0x1a8] sm:$0x3] 0.0
        %s856 = scalar_lea.vmem [#allocation2], 24
        %857 = vst [vmem:[%s856 + $0x1] sm:$0xff] %v770
        %858 = vst [vmem:[%s856 + $0x9] sm:$0xff] %v771
        %859 = vst [vmem:[%s856 + $0x19] sm:$0xff] %v772
        %860 = vst [vmem:[%s856 + $0x21] sm:$0xff] %v773
        %861 = vst [vmem:[%s856 + $0x31] sm:$0xff] %v774
        %862 = vst [vmem:[%s856 + $0x39] sm:$0xff] %v775
        %863 = vst [vmem:[%s856 + $0x49] sm:$0xff] %v776
        %864 = vst [vmem:[%s856 + $0x51] sm:$0xff] %v777
        %865 = vst [vmem:[%s856 + $0x61] sm:$0xff] %v778
        %866 = vst [vmem:[%s856 + $0x69] sm:$0xff] %v779
        %867 = vst [vmem:[%s856 + $0x79] sm:$0xff] %v780
        %868 = vst [vmem:[%s856 + $0x81] sm:$0xff] %v781
        %869 = vst [vmem:[%s856 + $0x91] sm:$0xff] %v782
        %870 = vst [vmem:[%s856 + $0x99] sm:$0xff] %v783
        %871 = vst [vmem:[%s856 + $0xa9] sm:$0xff] %v784
        %872 = vst [vmem:[%s856 + $0xb1] sm:$0xff] %v785
        %873 = vst [vmem:[%s856 + $0xc1] sm:$0xff] %v786
        %874 = vst [vmem:[%s856 + $0xc9] sm:$0xff] %v787
        %875 = vst [vmem:[%s856 + $0xd9] sm:$0xff] %v788
        %876 = vst [vmem:[%s856 + $0xe1] sm:$0xff] %v789
        %877 = vst [vmem:[%s856 + $0xf1] sm:$0xff] %v790
        %878 = vst [vmem:[%s856 + $0xf9] sm:$0xff] %v791
        %879 = vst [vmem:[%s856 + $0x109] sm:$0xff] %v792
        %880 = vst [vmem:[%s856 + $0x111] sm:$0xff] %v793
        %881 = vst [vmem:[%s856 + $0x121] sm:$0xff] %v794
        %882 = vst [vmem:[%s856 + $0x129] sm:$0xff] %v795
        %883 = vst [vmem:[%s856 + $0x139] sm:$0xff] %v796
        %884 = vst [vmem:[%s856 + $0x141] sm:$0xff] %v797
        %885 = vst [vmem:[%s856 + $0x151] sm:$0xff] %v798
        %886 = vst [vmem:[%s856 + $0x159] sm:$0xff] %v799
        %887 = vst [vmem:[%s856 + $0x169] sm:$0xff] %v800
        %888 = vst [vmem:[%s856 + $0x171] sm:$0xff] %v801
        %v889 = vld [vmem:[#allocation2] sm:$0xff]
        %v890 = vld [vmem:[#allocation2 + $0x8] sm:$0xff]
        %v891 = vld [vmem:[#allocation2 + $0x18] sm:$0xff]
        %v892 = vld [vmem:[#allocation2 + $0x20] sm:$0xff]
        %v893 = vld [vmem:[#allocation2 + $0x30] sm:$0xff]
        %v894 = vld [vmem:[#allocation2 + $0x38] sm:$0xff]
        %v895 = vld [vmem:[#allocation2 + $0x48] sm:$0xff]
        %v896 = vld [vmem:[#allocation2 + $0x50] sm:$0xff]
        %v897 = vld [vmem:[#allocation2 + $0x60] sm:$0xff]
        %v898 = vld [vmem:[#allocation2 + $0x68] sm:$0xff]
        %v899 = vld [vmem:[#allocation2 + $0x78] sm:$0xff]
        %v900 = vld [vmem:[#allocation2 + $0x80] sm:$0xff]
        %v901 = vld [vmem:[#allocation2 + $0x90] sm:$0xff]
        %v902 = vld [vmem:[#allocation2 + $0x98] sm:$0xff]
        %v903 = vld [vmem:[#allocation2 + $0xa8] sm:$0xff]
        %v904 = vld [vmem:[#allocation2 + $0xb0] sm:$0xff]
        %v905 = vld [vmem:[#allocation2 + $0xc0] sm:$0xff]
        %v906 = vld [vmem:[#allocation2 + $0xc8] sm:$0xff]
        %v907 = vld [vmem:[#allocation2 + $0xd8] sm:$0xff]
        %v908 = vld [vmem:[#allocation2 + $0xe0] sm:$0xff]
        %v909 = vld [vmem:[#allocation2 + $0xf0] sm:$0xff]
        %v910 = vld [vmem:[#allocation2 + $0xf8] sm:$0xff]
        %v911 = vld [vmem:[#allocation2 + $0x108] sm:$0xff]
        %v912 = vld [vmem:[#allocation2 + $0x110] sm:$0xff]
        %v913 = vld [vmem:[#allocation2 + $0x120] sm:$0xff]
        %v914 = vld [vmem:[#allocation2 + $0x128] sm:$0xff]
        %v915 = vld [vmem:[#allocation2 + $0x138] sm:$0xff]
        %v916 = vld [vmem:[#allocation2 + $0x140] sm:$0xff]
        %v917 = vld [vmem:[#allocation2 + $0x150] sm:$0xff]
        %v918 = vld [vmem:[#allocation2 + $0x158] sm:$0xff]
        %v919 = vld [vmem:[#allocation2 + $0x168] sm:$0xff]
        %v920 = vld [vmem:[#allocation2 + $0x170] sm:$0xff]
        %v921 = vpack.c.bf16 %v890, %v889
        %v922 = vpack.c.bf16 %v892, %v891
        %v923 = vpack.c.bf16 %v894, %v893
        %v924 = vpack.c.bf16 %v896, %v895
        %v925 = vpack.c.bf16 %v898, %v897
        %v926 = vpack.c.bf16 %v900, %v899
        %v927 = vpack.c.bf16 %v902, %v901
        %v928 = vpack.c.bf16 %v904, %v903
        %v929 = vpack.c.bf16 %v906, %v905
        %v930 = vpack.c.bf16 %v908, %v907
        %v931 = vpack.c.bf16 %v910, %v909
        %v932 = vpack.c.bf16 %v912, %v911
        %v933 = vpack.c.bf16 %v914, %v913
        %v934 = vpack.c.bf16 %v916, %v915
        %v935 = vpack.c.bf16 %v918, %v917
        %v936 = vpack.c.bf16 %v920, %v919
        %v937 = vld [vmem:[#allocation8] sm:$0xf]
        %v938 = vld [vmem:[#allocation8 + $0x4] sm:$0xf]
        %v939 = vld [vmem:[#allocation8 + $0x8] sm:$0xf]
        %v940 = vld [vmem:[#allocation8 + $0xc] sm:$0xf]
        %v941 = vld [vmem:[#allocation8 + $0x10] sm:$0xf]
        %v942 = vld [vmem:[#allocation8 + $0x14] sm:$0xf]
        %v943 = vld [vmem:[#allocation8 + $0x18] sm:$0xf]
        %v944 = vld [vmem:[#allocation8 + $0x1c] sm:$0xf]
        %v945 = vld [vmem:[#allocation8 + $0x20] sm:$0xf]
        %v946 = vld [vmem:[#allocation8 + $0x24] sm:$0xf]
        %v947 = vld [vmem:[#allocation8 + $0x28] sm:$0xf]
        %v948 = vld [vmem:[#allocation8 + $0x2c] sm:$0xf]
        %v949 = vld [vmem:[#allocation8 + $0x30] sm:$0xf]
        %v950 = vld [vmem:[#allocation8 + $0x34] sm:$0xf]
        %v951 = vld [vmem:[#allocation8 + $0x38] sm:$0xf]
        %v952 = vld [vmem:[#allocation8 + $0x3c] sm:$0xf]
        %v953 = vld [vmem:[#allocation2 + $0x1] sm:$0xff]
        %v954 = vld [vmem:[#allocation2 + $0x9] sm:$0xff]
        %v955 = vld [vmem:[#allocation2 + $0x19] sm:$0xff]
        %v956 = vld [vmem:[#allocation2 + $0x21] sm:$0xff]
        %v957 = vld [vmem:[#allocation2 + $0x31] sm:$0xff]
        %v958 = vld [vmem:[#allocation2 + $0x39] sm:$0xff]
        %v959 = vld [vmem:[#allocation2 + $0x49] sm:$0xff]
        %v960 = vld [vmem:[#allocation2 + $0x51] sm:$0xff]
        %v961 = vld [vmem:[#allocation2 + $0x61] sm:$0xff]
        %v962 = vld [vmem:[#allocation2 + $0x69] sm:$0xff]
        %v963 = vld [vmem:[#allocation2 + $0x79] sm:$0xff]
        %v964 = vld [vmem:[#allocation2 + $0x81] sm:$0xff]
        %v965 = vld [vmem:[#allocation2 + $0x91] sm:$0xff]
        %v966 = vld [vmem:[#allocation2 + $0x99] sm:$0xff]
        %v967 = vld [vmem:[#allocation2 + $0xa9] sm:$0xff]
        %v968 = vld [vmem:[#allocation2 + $0xb1] sm:$0xff]
        %v969 = vld [vmem:[#allocation2 + $0xc1] sm:$0xff]
        %v970 = vld [vmem:[#allocation2 + $0xc9] sm:$0xff]
        %v971 = vld [vmem:[#allocation2 + $0xd9] sm:$0xff]
        %v972 = vld [vmem:[#allocation2 + $0xe1] sm:$0xff]
        %v973 = vld [vmem:[#allocation2 + $0xf1] sm:$0xff]
        %v974 = vld [vmem:[#allocation2 + $0xf9] sm:$0xff]
        %v975 = vld [vmem:[#allocation2 + $0x109] sm:$0xff]
        %v976 = vld [vmem:[#allocation2 + $0x111] sm:$0xff]
        %v977 = vld [vmem:[#allocation2 + $0x121] sm:$0xff]
        %v978 = vld [vmem:[#allocation2 + $0x129] sm:$0xff]
        %v979 = vld [vmem:[#allocation2 + $0x139] sm:$0xff]
        %v980 = vld [vmem:[#allocation2 + $0x141] sm:$0xff]
        %v981 = vld [vmem:[#allocation2 + $0x151] sm:$0xff]
        %v982 = vld [vmem:[#allocation2 + $0x159] sm:$0xff]
        %v983 = vld [vmem:[#allocation2 + $0x169] sm:$0xff]
        %v984 = vld [vmem:[#allocation2 + $0x171] sm:$0xff]
        %v985 = vpack.c.bf16 %v954, %v953
        %v986 = vpack.c.bf16 %v956, %v955
        %v987 = vpack.c.bf16 %v958, %v957
        %v988 = vpack.c.bf16 %v960, %v959
        %v989 = vpack.c.bf16 %v962, %v961
        %v990 = vpack.c.bf16 %v964, %v963
        %v991 = vpack.c.bf16 %v966, %v965
        %v992 = vpack.c.bf16 %v968, %v967
        %v993 = vpack.c.bf16 %v970, %v969
        %v994 = vpack.c.bf16 %v972, %v971
        %v995 = vpack.c.bf16 %v974, %v973
        %v996 = vpack.c.bf16 %v976, %v975
        %v997 = vpack.c.bf16 %v978, %v977
        %v998 = vpack.c.bf16 %v980, %v979
        %v999 = vpack.c.bf16 %v982, %v981
        %v1000 = vpack.c.bf16 %v984, %v983
        %s1001 = scalar_lea.vmem [#allocation8], 64
        %v1002 = vld [vmem:[%s1001] sm:$0xf]
        %v1003 = vld [vmem:[%s1001 + $0x4] sm:$0xf]
        %v1004 = vld [vmem:[%s1001 + $0x8] sm:$0xf]
        %v1005 = vld [vmem:[%s1001 + $0xc] sm:$0xf]
        %v1006 = vld [vmem:[%s1001 + $0x10] sm:$0xf]
        %v1007 = vld [vmem:[%s1001 + $0x14] sm:$0xf]
        %v1008 = vld [vmem:[%s1001 + $0x18] sm:$0xf]
        %v1009 = vld [vmem:[%s1001 + $0x1c] sm:$0xf]
        %v1010 = vld [vmem:[%s1001 + $0x20] sm:$0xf]
        %v1011 = vld [vmem:[%s1001 + $0x24] sm:$0xf]
        %v1012 = vld [vmem:[%s1001 + $0x28] sm:$0xf]
        %v1013 = vld [vmem:[%s1001 + $0x2c] sm:$0xf]
        %v1014 = vld [vmem:[%s1001 + $0x30] sm:$0xf]
        %v1015 = vld [vmem:[%s1001 + $0x34] sm:$0xf]
        %v1016 = vld [vmem:[%s1001 + $0x38] sm:$0xf]
        %v1017 = vld [vmem:[%s1001 + $0x3c] sm:$0xf]
        %v1034 = vunpack.c.l.b16 %v1002
        %v1035 = vunpack.c.l.b16 %v1003
        %v1036 = vunpack.c.l.b16 %v1004
        %v1037 = vunpack.c.l.b16 %v1005
        %v1038 = vunpack.c.l.b16 %v1006
        %v1039 = vunpack.c.l.b16 %v1007
        %v1040 = vunpack.c.l.b16 %v1008
        %v1041 = vunpack.c.l.b16 %v1009
        %v1042 = vunpack.c.l.b16 %v1010
        %v1043 = vunpack.c.l.b16 %v1011
        %v1044 = vunpack.c.l.b16 %v1012
        %v1045 = vunpack.c.l.b16 %v1013
        %v1046 = vunpack.c.l.b16 %v1014
        %v1047 = vunpack.c.l.b16 %v1015
        %v1048 = vunpack.c.l.b16 %v1016
        %v1049 = vunpack.c.l.b16 %v1017
        %v1050 = vpack.c.b16 %v1035, %v1034
        %v1051 = vpack.c.b16 %v1037, %v1036
        %v1052 = vpack.c.b16 %v1039, %v1038
        %v1053 = vpack.c.b16 %v1041, %v1040
        %v1054 = vpack.c.b16 %v1043, %v1042
        %v1055 = vpack.c.b16 %v1045, %v1044
        %v1056 = vpack.c.b16 %v1047, %v1046
        %v1057 = vpack.c.b16 %v1049, %v1048
        %1066 = vmatprep.subr.bf16.mxu0 0
        %1067 = vmatpush1.bf16.msra.mxu0 %v1057
        %1068 = vmatprep.subr.bf16.mxu0 0
        %1069 = vmatpush1.bf16.msra.mxu0 %v1056
        %1070 = vmatprep.subr.bf16.mxu0 0
        %1071 = vmatpush1.bf16.msra.mxu0 %v1055
        %1072 = vmatprep.subr.bf16.mxu0 0
        %1073 = vmatpush1.bf16.msra.mxu0 %v1054
        %1074 = vmatprep.subr.bf16.mxu0 0
        %1075 = vmatpush1.bf16.msra.mxu0 %v1053
        %1076 = vmatprep.subr.bf16.mxu0 0
        %1077 = vmatpush1.bf16.msra.mxu0 %v1052
        %1078 = vmatprep.subr.bf16.mxu0 0
        %1079 = vmatpush1.bf16.msra.mxu0 %v1051
        %1080 = vmatprep.subr.bf16.mxu0 0
        %1081 = vmatpush1.bf16.msra.mxu0 %v1050
        %1082 = vmatprep.subr.bf16.mxu0 0
        %1083 = vmatpush2.bf16.msra.mxu0 0
        %1084 = vmatprep.subr.bf16.mxu0 0
        %1085 = vmatpush2.bf16.msra.mxu0 0
        %1086 = vmatprep.subr.bf16.mxu0 0
        %1087 = vmatpush2.bf16.msra.mxu0 0
        %1088 = vmatprep.subr.bf16.mxu0 0
        %1089 = vmatpush2.bf16.msra.mxu0 0
        %1090 = vmatprep.subr.bf16.mxu0 0
        %1091 = vmatpush2.bf16.msra.mxu0 0
        %1092 = vmatprep.subr.bf16.mxu0 0
        %1093 = vmatpush2.bf16.msra.mxu0 0
        %1094 = vmatprep.subr.bf16.mxu0 0
        %1095 = vmatpush2.bf16.msra.mxu0 0
        %1096 = vmatprep.subr.bf16.mxu0 0
        %1097 = vmatpush2.bf16.msra.mxu0 0
        %1098 = vmatprep.mubr.bf16.mxu0 0
        %1099 = vmatmul.mubr.bf16.gmra.mxu0 %v985
        %v1100 = vpop.f32.mrf.mxu0
        %v1101 = vadd.f32 0.0, %v1100
        %v1102 = vpop.f32.mrf.mxu0
        %v1103 = vpop.f32.mrf.mxu0
        %v1104 = vadd.f32 0.0, %v1103
        %v1105 = vpop.f32.mrf.mxu0
        %1106 = vmatprep.mubr.bf16.mxu0 0
        %1107 = vmatmul.mubr.bf16.gmra.mxu0 %v986
        %v1108 = vpop.f32.mrf.mxu0
        %v1109 = vadd.f32 0.0, %v1108
        %v1110 = vpop.f32.mrf.mxu0
        %v1111 = vpop.f32.mrf.mxu0
        %v1112 = vadd.f32 0.0, %v1111
        %v1113 = vpop.f32.mrf.mxu0
        %1114 = vmatprep.mubr.bf16.mxu0 0
        %1115 = vmatmul.mubr.bf16.gmra.mxu0 %v987
        %v1116 = vpop.f32.mrf.mxu0
        %v1117 = vadd.f32 0.0, %v1116
        %v1118 = vpop.f32.mrf.mxu0
        %v1119 = vpop.f32.mrf.mxu0
        %v1120 = vadd.f32 0.0, %v1119
        %v1121 = vpop.f32.mrf.mxu0
        %1122 = vmatprep.mubr.bf16.mxu0 0
        %1123 = vmatmul.mubr.bf16.gmra.mxu0 %v988
        %v1124 = vpop.f32.mrf.mxu0
        %v1125 = vadd.f32 0.0, %v1124
        %v1126 = vpop.f32.mrf.mxu0
        %v1127 = vpop.f32.mrf.mxu0
        %v1128 = vadd.f32 0.0, %v1127
        %v1129 = vpop.f32.mrf.mxu0
        %1130 = vmatprep.mubr.bf16.mxu0 0
        %1131 = vmatmul.mubr.bf16.gmra.mxu0 %v989
        %v1132 = vpop.f32.mrf.mxu0
        %v1133 = vadd.f32 0.0, %v1132
        %v1134 = vpop.f32.mrf.mxu0
        %v1135 = vpop.f32.mrf.mxu0
        %v1136 = vadd.f32 0.0, %v1135
        %v1137 = vpop.f32.mrf.mxu0
        %1138 = vmatprep.mubr.bf16.mxu0 0
        %1139 = vmatmul.mubr.bf16.gmra.mxu0 %v990
        %v1140 = vpop.f32.mrf.mxu0
        %v1141 = vadd.f32 0.0, %v1140
        %v1142 = vpop.f32.mrf.mxu0
        %v1143 = vpop.f32.mrf.mxu0
        %v1144 = vadd.f32 0.0, %v1143
        %v1145 = vpop.f32.mrf.mxu0
        %1146 = vmatprep.mubr.bf16.mxu0 0
        %1147 = vmatmul.mubr.bf16.gmra.mxu0 %v991
        %v1148 = vpop.f32.mrf.mxu0
        %v1149 = vadd.f32 0.0, %v1148
        %v1150 = vpop.f32.mrf.mxu0
        %v1151 = vpop.f32.mrf.mxu0
        %v1152 = vadd.f32 0.0, %v1151
        %v1153 = vpop.f32.mrf.mxu0
        %1154 = vmatprep.mubr.bf16.mxu0 0
        %1155 = vmatmul.mubr.bf16.gmra.mxu0 %v992
        %v1156 = vpop.f32.mrf.mxu0
        %v1157 = vadd.f32 0.0, %v1156
        %v1158 = vpop.f32.mrf.mxu0
        %v1159 = vpop.f32.mrf.mxu0
        %v1160 = vadd.f32 0.0, %v1159
        %v1161 = vpop.f32.mrf.mxu0
        %1162 = vmatprep.mubr.bf16.mxu0 0
        %1163 = vmatmul.mubr.bf16.gmra.mxu0 %v993
        %v1164 = vpop.f32.mrf.mxu0
        %v1165 = vadd.f32 0.0, %v1164
        %v1166 = vpop.f32.mrf.mxu0
        %v1167 = vpop.f32.mrf.mxu0
        %v1168 = vadd.f32 0.0, %v1167
        %v1169 = vpop.f32.mrf.mxu0
        %1170 = vmatprep.mubr.bf16.mxu0 0
        %1171 = vmatmul.mubr.bf16.gmra.mxu0 %v994
        %v1172 = vpop.f32.mrf.mxu0
        %v1173 = vadd.f32 0.0, %v1172
        %v1174 = vpop.f32.mrf.mxu0
        %v1175 = vpop.f32.mrf.mxu0
        %v1176 = vadd.f32 0.0, %v1175
        %v1177 = vpop.f32.mrf.mxu0
        %1178 = vmatprep.mubr.bf16.mxu0 0
        %1179 = vmatmul.mubr.bf16.gmra.mxu0 %v995
        %v1180 = vpop.f32.mrf.mxu0
        %v1181 = vadd.f32 0.0, %v1180
        %v1182 = vpop.f32.mrf.mxu0
        %v1183 = vpop.f32.mrf.mxu0
        %v1184 = vadd.f32 0.0, %v1183
        %v1185 = vpop.f32.mrf.mxu0
        %1186 = vmatprep.mubr.bf16.mxu0 0
        %1187 = vmatmul.mubr.bf16.gmra.mxu0 %v996
        %v1188 = vpop.f32.mrf.mxu0
        %v1189 = vadd.f32 0.0, %v1188
        %v1190 = vpop.f32.mrf.mxu0
        %v1191 = vpop.f32.mrf.mxu0
        %v1192 = vadd.f32 0.0, %v1191
        %v1193 = vpop.f32.mrf.mxu0
        %1194 = vmatprep.mubr.bf16.mxu0 0
        %1195 = vmatmul.mubr.bf16.gmra.mxu0 %v997
        %v1196 = vpop.f32.mrf.mxu0
        %v1197 = vadd.f32 0.0, %v1196
        %v1198 = vpop.f32.mrf.mxu0
        %v1199 = vpop.f32.mrf.mxu0
        %v1200 = vadd.f32 0.0, %v1199
        %v1201 = vpop.f32.mrf.mxu0
        %1202 = vmatprep.mubr.bf16.mxu0 0
        %1203 = vmatmul.mubr.bf16.gmra.mxu0 %v998
        %v1204 = vpop.f32.mrf.mxu0
        %v1205 = vadd.f32 0.0, %v1204
        %v1206 = vpop.f32.mrf.mxu0
        %v1207 = vpop.f32.mrf.mxu0
        %v1208 = vadd.f32 0.0, %v1207
        %v1209 = vpop.f32.mrf.mxu0
        %1210 = vmatprep.mubr.bf16.mxu0 0
        %1211 = vmatmul.mubr.bf16.gmra.mxu0 %v999
        %v1212 = vpop.f32.mrf.mxu0
        %v1213 = vadd.f32 0.0, %v1212
        %v1214 = vpop.f32.mrf.mxu0
        %v1215 = vpop.f32.mrf.mxu0
        %v1216 = vadd.f32 0.0, %v1215
        %v1217 = vpop.f32.mrf.mxu0
        %1218 = vmatprep.mubr.bf16.mxu0 0
        %1219 = vmatmul.mubr.bf16.gmra.mxu0 %v1000
        %v1220 = vpop.f32.mrf.mxu0
        %v1221 = vadd.f32 0.0, %v1220
        %v1222 = vpop.f32.mrf.mxu0
        %v1223 = vpop.f32.mrf.mxu0
        %v1224 = vadd.f32 0.0, %v1223
        %v1225 = vpop.f32.mrf.mxu0
        %1226 = vdwg.mxu0
        %v1243 = vunpack.c.l.b16 %v937
        %v1244 = vunpack.c.l.b16 %v938
        %v1245 = vunpack.c.l.b16 %v939
        %v1246 = vunpack.c.l.b16 %v940
        %v1247 = vunpack.c.l.b16 %v941
        %v1248 = vunpack.c.l.b16 %v942
        %v1249 = vunpack.c.l.b16 %v943
        %v1250 = vunpack.c.l.b16 %v944
        %v1251 = vunpack.c.l.b16 %v945
        %v1252 = vunpack.c.l.b16 %v946
        %v1253 = vunpack.c.l.b16 %v947
        %v1254 = vunpack.c.l.b16 %v948
        %v1255 = vunpack.c.l.b16 %v949
        %v1256 = vunpack.c.l.b16 %v950
        %v1257 = vunpack.c.l.b16 %v951
        %v1258 = vunpack.c.l.b16 %v952
        %v1259 = vpack.c.b16 %v1244, %v1243
        %v1260 = vpack.c.b16 %v1246, %v1245
        %v1261 = vpack.c.b16 %v1248, %v1247
        %v1262 = vpack.c.b16 %v1250, %v1249
        %v1263 = vpack.c.b16 %v1252, %v1251
        %v1264 = vpack.c.b16 %v1254, %v1253
        %v1265 = vpack.c.b16 %v1256, %v1255
        %v1266 = vpack.c.b16 %v1258, %v1257
        %1275 = vmatprep.subr.bf16.mxu0 0
        %1276 = vmatpush1.bf16.msra.mxu0 %v1266
        %1277 = vmatprep.subr.bf16.mxu0 0
        %1278 = vmatpush1.bf16.msra.mxu0 %v1265
        %1279 = vmatprep.subr.bf16.mxu0 0
        %1280 = vmatpush1.bf16.msra.mxu0 %v1264
        %1281 = vmatprep.subr.bf16.mxu0 0
        %1282 = vmatpush1.bf16.msra.mxu0 %v1263
        %1283 = vmatprep.subr.bf16.mxu0 0
        %1284 = vmatpush1.bf16.msra.mxu0 %v1262
        %1285 = vmatprep.subr.bf16.mxu0 0
        %1286 = vmatpush1.bf16.msra.mxu0 %v1261
        %1287 = vmatprep.subr.bf16.mxu0 0
        %1288 = vmatpush1.bf16.msra.mxu0 %v1260
        %1289 = vmatprep.subr.bf16.mxu0 0
        %1290 = vmatpush1.bf16.msra.mxu0 %v1259
        %1291 = vmatprep.subr.bf16.mxu0 0
        %1292 = vmatpush2.bf16.msra.mxu0 0
        %1293 = vmatprep.subr.bf16.mxu0 0
        %1294 = vmatpush2.bf16.msra.mxu0 0
        %1295 = vmatprep.subr.bf16.mxu0 0
        %1296 = vmatpush2.bf16.msra.mxu0 0
        %1297 = vmatprep.subr.bf16.mxu0 0
        %1298 = vmatpush2.bf16.msra.mxu0 0
        %1299 = vmatprep.subr.bf16.mxu0 0
        %1300 = vmatpush2.bf16.msra.mxu0 0
        %1301 = vmatprep.subr.bf16.mxu0 0
        %1302 = vmatpush2.bf16.msra.mxu0 0
        %1303 = vmatprep.subr.bf16.mxu0 0
        %1304 = vmatpush2.bf16.msra.mxu0 0
        %1305 = vmatprep.subr.bf16.mxu0 0
        %1306 = vmatpush2.bf16.msra.mxu0 0
        %1307 = vmatprep.mubr.bf16.mxu0 0
        %1308 = vmatmul.mubr.bf16.gmra.mxu0 %v921
        %v1309 = vpop.f32.mrf.mxu0
        %v1310 = vadd.f32 %v1101, %v1309
        %v1311 = vpop.f32.mrf.mxu0
        %v1312 = vpop.f32.mrf.mxu0
        %v1313 = vadd.f32 %v1104, %v1312
        %v1314 = vpop.f32.mrf.mxu0
        %1315 = vmatprep.mubr.bf16.mxu0 0
        %1316 = vmatmul.mubr.bf16.gmra.mxu0 %v922
        %v1317 = vpop.f32.mrf.mxu0
        %v1318 = vadd.f32 %v1109, %v1317
        %v1319 = vpop.f32.mrf.mxu0
        %v1320 = vpop.f32.mrf.mxu0
        %v1321 = vadd.f32 %v1112, %v1320
        %v1322 = vpop.f32.mrf.mxu0
        %1323 = vmatprep.mubr.bf16.mxu0 0
        %1324 = vmatmul.mubr.bf16.gmra.mxu0 %v923
        %v1325 = vpop.f32.mrf.mxu0
        %v1326 = vadd.f32 %v1117, %v1325
        %v1327 = vpop.f32.mrf.mxu0
        %v1328 = vpop.f32.mrf.mxu0
        %v1329 = vadd.f32 %v1120, %v1328
        %v1330 = vpop.f32.mrf.mxu0
        %1331 = vmatprep.mubr.bf16.mxu0 0
        %1332 = vmatmul.mubr.bf16.gmra.mxu0 %v924
        %v1333 = vpop.f32.mrf.mxu0
        %v1334 = vadd.f32 %v1125, %v1333
        %v1335 = vpop.f32.mrf.mxu0
        %v1336 = vpop.f32.mrf.mxu0
        %v1337 = vadd.f32 %v1128, %v1336
        %v1338 = vpop.f32.mrf.mxu0
        %1339 = vmatprep.mubr.bf16.mxu0 0
        %1340 = vmatmul.mubr.bf16.gmra.mxu0 %v925
        %v1341 = vpop.f32.mrf.mxu0
        %v1342 = vadd.f32 %v1133, %v1341
        %v1343 = vpop.f32.mrf.mxu0
        %v1344 = vpop.f32.mrf.mxu0
        %v1345 = vadd.f32 %v1136, %v1344
        %v1346 = vpop.f32.mrf.mxu0
        %1347 = vmatprep.mubr.bf16.mxu0 0
        %1348 = vmatmul.mubr.bf16.gmra.mxu0 %v926
        %v1349 = vpop.f32.mrf.mxu0
        %v1350 = vadd.f32 %v1141, %v1349
        %v1351 = vpop.f32.mrf.mxu0
        %v1352 = vpop.f32.mrf.mxu0
        %v1353 = vadd.f32 %v1144, %v1352
        %v1354 = vpop.f32.mrf.mxu0
        %1355 = vmatprep.mubr.bf16.mxu0 0
        %1356 = vmatmul.mubr.bf16.gmra.mxu0 %v927
        %v1357 = vpop.f32.mrf.mxu0
        %v1358 = vadd.f32 %v1149, %v1357
        %v1359 = vpop.f32.mrf.mxu0
        %v1360 = vpop.f32.mrf.mxu0
        %v1361 = vadd.f32 %v1152, %v1360
        %v1362 = vpop.f32.mrf.mxu0
        %1363 = vmatprep.mubr.bf16.mxu0 0
        %1364 = vmatmul.mubr.bf16.gmra.mxu0 %v928
        %v1365 = vpop.f32.mrf.mxu0
        %v1366 = vadd.f32 %v1157, %v1365
        %v1367 = vpop.f32.mrf.mxu0
        %v1368 = vpop.f32.mrf.mxu0
        %v1369 = vadd.f32 %v1160, %v1368
        %v1370 = vpop.f32.mrf.mxu0
        %1371 = vmatprep.mubr.bf16.mxu0 0
        %1372 = vmatmul.mubr.bf16.gmra.mxu0 %v929
        %v1373 = vpop.f32.mrf.mxu0
        %v1374 = vadd.f32 %v1165, %v1373
        %v1375 = vpop.f32.mrf.mxu0
        %v1376 = vpop.f32.mrf.mxu0
        %v1377 = vadd.f32 %v1168, %v1376
        %v1378 = vpop.f32.mrf.mxu0
        %1379 = vmatprep.mubr.bf16.mxu0 0
        %1380 = vmatmul.mubr.bf16.gmra.mxu0 %v930
        %v1381 = vpop.f32.mrf.mxu0
        %v1382 = vadd.f32 %v1173, %v1381
        %v1383 = vpop.f32.mrf.mxu0
        %v1384 = vpop.f32.mrf.mxu0
        %v1385 = vadd.f32 %v1176, %v1384
        %v1386 = vpop.f32.mrf.mxu0
        %1387 = vmatprep.mubr.bf16.mxu0 0
        %1388 = vmatmul.mubr.bf16.gmra.mxu0 %v931
        %v1389 = vpop.f32.mrf.mxu0
        %v1390 = vadd.f32 %v1181, %v1389
        %v1391 = vpop.f32.mrf.mxu0
        %v1392 = vpop.f32.mrf.mxu0
        %v1393 = vadd.f32 %v1184, %v1392
        %v1394 = vpop.f32.mrf.mxu0
        %1395 = vmatprep.mubr.bf16.mxu0 0
        %1396 = vmatmul.mubr.bf16.gmra.mxu0 %v932
        %v1397 = vpop.f32.mrf.mxu0
        %v1398 = vadd.f32 %v1189, %v1397
        %v1399 = vpop.f32.mrf.mxu0
        %v1400 = vpop.f32.mrf.mxu0
        %v1401 = vadd.f32 %v1192, %v1400
        %v1402 = vpop.f32.mrf.mxu0
        %1403 = vmatprep.mubr.bf16.mxu0 0
        %1404 = vmatmul.mubr.bf16.gmra.mxu0 %v933
        %v1405 = vpop.f32.mrf.mxu0
        %v1406 = vadd.f32 %v1197, %v1405
        %v1407 = vpop.f32.mrf.mxu0
        %v1408 = vpop.f32.mrf.mxu0
        %v1409 = vadd.f32 %v1200, %v1408
        %v1410 = vpop.f32.mrf.mxu0
        %1411 = vmatprep.mubr.bf16.mxu0 0
        %1412 = vmatmul.mubr.bf16.gmra.mxu0 %v934
        %v1413 = vpop.f32.mrf.mxu0
        %v1414 = vadd.f32 %v1205, %v1413
        %v1415 = vpop.f32.mrf.mxu0
        %v1416 = vpop.f32.mrf.mxu0
        %v1417 = vadd.f32 %v1208, %v1416
        %v1418 = vpop.f32.mrf.mxu0
        %1419 = vmatprep.mubr.bf16.mxu0 0
        %1420 = vmatmul.mubr.bf16.gmra.mxu0 %v935
        %v1421 = vpop.f32.mrf.mxu0
        %v1422 = vadd.f32 %v1213, %v1421
        %v1423 = vpop.f32.mrf.mxu0
        %v1424 = vpop.f32.mrf.mxu0
        %v1425 = vadd.f32 %v1216, %v1424
        %v1426 = vpop.f32.mrf.mxu0
        %1427 = vmatprep.mubr.bf16.mxu0 0
        %1428 = vmatmul.mubr.bf16.gmra.mxu0 %v936
        %v1429 = vpop.f32.mrf.mxu0
        %v1430 = vadd.f32 %v1221, %v1429
        %v1431 = vpop.f32.mrf.mxu0
        %v1432 = vpop.f32.mrf.mxu0
        %v1433 = vadd.f32 %v1224, %v1432
        %v1434 = vpop.f32.mrf.mxu0
        %1435 = vdwg.mxu0
        %v1436 = vld [vmem:[#allocation2 + $0x2] sm:$0xff]
        %v1437 = vld [vmem:[#allocation2 + $0xa] sm:$0xff]
        %v1438 = vld [vmem:[#allocation2 + $0x1a] sm:$0xff]
        %v1439 = vld [vmem:[#allocation2 + $0x22] sm:$0xff]
        %v1440 = vld [vmem:[#allocation2 + $0x32] sm:$0xff]
        %v1441 = vld [vmem:[#allocation2 + $0x3a] sm:$0xff]
        %v1442 = vld [vmem:[#allocation2 + $0x4a] sm:$0xff]
        %v1443 = vld [vmem:[#allocation2 + $0x52] sm:$0xff]
        %v1444 = vld [vmem:[#allocation2 + $0x62] sm:$0xff]
        %v1445 = vld [vmem:[#allocation2 + $0x6a] sm:$0xff]
        %v1446 = vld [vmem:[#allocation2 + $0x7a] sm:$0xff]
        %v1447 = vld [vmem:[#allocation2 + $0x82] sm:$0xff]
        %v1448 = vld [vmem:[#allocation2 + $0x92] sm:$0xff]
        %v1449 = vld [vmem:[#allocation2 + $0x9a] sm:$0xff]
        %v1450 = vld [vmem:[#allocation2 + $0xaa] sm:$0xff]
        %v1451 = vld [vmem:[#allocation2 + $0xb2] sm:$0xff]
        %v1452 = vld [vmem:[#allocation2 + $0xc2] sm:$0xff]
        %v1453 = vld [vmem:[#allocation2 + $0xca] sm:$0xff]
        %v1454 = vld [vmem:[#allocation2 + $0xda] sm:$0xff]
        %v1455 = vld [vmem:[#allocation2 + $0xe2] sm:$0xff]
        %v1456 = vld [vmem:[#allocation2 + $0xf2] sm:$0xff]
        %v1457 = vld [vmem:[#allocation2 + $0xfa] sm:$0xff]
        %v1458 = vld [vmem:[#allocation2 + $0x10a] sm:$0xff]
        %v1459 = vld [vmem:[#allocation2 + $0x112] sm:$0xff]
        %v1460 = vld [vmem:[#allocation2 + $0x122] sm:$0xff]
        %v1461 = vld [vmem:[#allocation2 + $0x12a] sm:$0xff]
        %v1462 = vld [vmem:[#allocation2 + $0x13a] sm:$0xff]
        %v1463 = vld [vmem:[#allocation2 + $0x142] sm:$0xff]
        %v1464 = vld [vmem:[#allocation2 + $0x152] sm:$0xff]
        %v1465 = vld [vmem:[#allocation2 + $0x15a] sm:$0xff]
        %v1466 = vld [vmem:[#allocation2 + $0x16a] sm:$0xff]
        %v1467 = vld [vmem:[#allocation2 + $0x172] sm:$0xff]
        %v1468 = vpack.c.bf16 %v1437, %v1436
        %v1469 = vpack.c.bf16 %v1439, %v1438
        %v1470 = vpack.c.bf16 %v1441, %v1440
        %v1471 = vpack.c.bf16 %v1443, %v1442
        %v1472 = vpack.c.bf16 %v1445, %v1444
        %v1473 = vpack.c.bf16 %v1447, %v1446
        %v1474 = vpack.c.bf16 %v1449, %v1448
        %v1475 = vpack.c.bf16 %v1451, %v1450
        %v1476 = vpack.c.bf16 %v1453, %v1452
        %v1477 = vpack.c.bf16 %v1455, %v1454
        %v1478 = vpack.c.bf16 %v1457, %v1456
        %v1479 = vpack.c.bf16 %v1459, %v1458
        %v1480 = vpack.c.bf16 %v1461, %v1460
        %v1481 = vpack.c.bf16 %v1463, %v1462
        %v1482 = vpack.c.bf16 %v1465, %v1464
        %v1483 = vpack.c.bf16 %v1467, %v1466
        %s1484 = scalar_lea.vmem [#allocation8], 128
        %v1485 = vld [vmem:[%s1484] sm:$0xf]
        %v1486 = vld [vmem:[%s1484 + $0x4] sm:$0xf]
        %v1487 = vld [vmem:[%s1484 + $0x8] sm:$0xf]
        %v1488 = vld [vmem:[%s1484 + $0xc] sm:$0xf]
        %v1489 = vld [vmem:[%s1484 + $0x10] sm:$0xf]
        %v1490 = vld [vmem:[%s1484 + $0x14] sm:$0xf]
        %v1491 = vld [vmem:[%s1484 + $0x18] sm:$0xf]
        %v1492 = vld [vmem:[%s1484 + $0x1c] sm:$0xf]
        %v1493 = vld [vmem:[%s1484 + $0x20] sm:$0xf]
        %v1494 = vld [vmem:[%s1484 + $0x24] sm:$0xf]
        %v1495 = vld [vmem:[%s1484 + $0x28] sm:$0xf]
        %v1496 = vld [vmem:[%s1484 + $0x2c] sm:$0xf]
        %v1497 = vld [vmem:[%s1484 + $0x30] sm:$0xf]
        %v1498 = vld [vmem:[%s1484 + $0x34] sm:$0xf]
        %v1499 = vld [vmem:[%s1484 + $0x38] sm:$0xf]
        %v1500 = vld [vmem:[%s1484 + $0x3c] sm:$0xf]
        %v1517 = vunpack.c.l.b16 %v1485
        %v1518 = vunpack.c.l.b16 %v1486
        %v1519 = vunpack.c.l.b16 %v1487
        %v1520 = vunpack.c.l.b16 %v1488
        %v1521 = vunpack.c.l.b16 %v1489
        %v1522 = vunpack.c.l.b16 %v1490
        %v1523 = vunpack.c.l.b16 %v1491
        %v1524 = vunpack.c.l.b16 %v1492
        %v1525 = vunpack.c.l.b16 %v1493
        %v1526 = vunpack.c.l.b16 %v1494
        %v1527 = vunpack.c.l.b16 %v1495
        %v1528 = vunpack.c.l.b16 %v1496
        %v1529 = vunpack.c.l.b16 %v1497
        %v1530 = vunpack.c.l.b16 %v1498
        %v1531 = vunpack.c.l.b16 %v1499
        %v1532 = vunpack.c.l.b16 %v1500
        %v1533 = vpack.c.b16 %v1518, %v1517
        %v1534 = vpack.c.b16 %v1520, %v1519
        %v1535 = vpack.c.b16 %v1522, %v1521
        %v1536 = vpack.c.b16 %v1524, %v1523
        %v1537 = vpack.c.b16 %v1526, %v1525
        %v1538 = vpack.c.b16 %v1528, %v1527
        %v1539 = vpack.c.b16 %v1530, %v1529
        %v1540 = vpack.c.b16 %v1532, %v1531
        %1549 = vmatprep.subr.bf16.mxu0 0
        %1550 = vmatpush1.bf16.msra.mxu0 %v1540
        %1551 = vmatprep.subr.bf16.mxu0 0
        %1552 = vmatpush1.bf16.msra.mxu0 %v1539
        %1553 = vmatprep.subr.bf16.mxu0 0
        %1554 = vmatpush1.bf16.msra.mxu0 %v1538
        %1555 = vmatprep.subr.bf16.mxu0 0
        %1556 = vmatpush1.bf16.msra.mxu0 %v1537
        %1557 = vmatprep.subr.bf16.mxu0 0
        %1558 = vmatpush1.bf16.msra.mxu0 %v1536
        %1559 = vmatprep.subr.bf16.mxu0 0
        %1560 = vmatpush1.bf16.msra.mxu0 %v1535
        %1561 = vmatprep.subr.bf16.mxu0 0
        %1562 = vmatpush1.bf16.msra.mxu0 %v1534
        %1563 = vmatprep.subr.bf16.mxu0 0
        %1564 = vmatpush1.bf16.msra.mxu0 %v1533
        %1565 = vmatprep.subr.bf16.mxu0 0
        %1566 = vmatpush2.bf16.msra.mxu0 0
        %1567 = vmatprep.subr.bf16.mxu0 0
        %1568 = vmatpush2.bf16.msra.mxu0 0
        %1569 = vmatprep.subr.bf16.mxu0 0
        %1570 = vmatpush2.bf16.msra.mxu0 0
        %1571 = vmatprep.subr.bf16.mxu0 0
        %1572 = vmatpush2.bf16.msra.mxu0 0
        %1573 = vmatprep.subr.bf16.mxu0 0
        %1574 = vmatpush2.bf16.msra.mxu0 0
        %1575 = vmatprep.subr.bf16.mxu0 0
        %1576 = vmatpush2.bf16.msra.mxu0 0
        %1577 = vmatprep.subr.bf16.mxu0 0
        %1578 = vmatpush2.bf16.msra.mxu0 0
        %1579 = vmatprep.subr.bf16.mxu0 0
        %1580 = vmatpush2.bf16.msra.mxu0 0
        %1581 = vmatprep.mubr.bf16.mxu0 0
        %1582 = vmatmul.mubr.bf16.gmra.mxu0 %v1468
        %v1583 = vpop.f32.mrf.mxu0
        %v1584 = vadd.f32 0.0, %v1583
        %v1585 = vpop.f32.mrf.mxu0
        %v1586 = vpop.f32.mrf.mxu0
        %v1587 = vadd.f32 0.0, %v1586
        %v1588 = vpop.f32.mrf.mxu0
        %1589 = vmatprep.mubr.bf16.mxu0 0
        %1590 = vmatmul.mubr.bf16.gmra.mxu0 %v1469
        %v1591 = vpop.f32.mrf.mxu0
        %v1592 = vadd.f32 0.0, %v1591
        %v1593 = vpop.f32.mrf.mxu0
        %v1594 = vpop.f32.mrf.mxu0
        %v1595 = vadd.f32 0.0, %v1594
        %v1596 = vpop.f32.mrf.mxu0
        %1597 = vmatprep.mubr.bf16.mxu0 0
        %1598 = vmatmul.mubr.bf16.gmra.mxu0 %v1470
        %v1599 = vpop.f32.mrf.mxu0
        %v1600 = vadd.f32 0.0, %v1599
        %v1601 = vpop.f32.mrf.mxu0
        %v1602 = vpop.f32.mrf.mxu0
        %v1603 = vadd.f32 0.0, %v1602
        %v1604 = vpop.f32.mrf.mxu0
        %1605 = vmatprep.mubr.bf16.mxu0 0
        %1606 = vmatmul.mubr.bf16.gmra.mxu0 %v1471
        %v1607 = vpop.f32.mrf.mxu0
        %v1608 = vadd.f32 0.0, %v1607
        %v1609 = vpop.f32.mrf.mxu0
        %v1610 = vpop.f32.mrf.mxu0
        %v1611 = vadd.f32 0.0, %v1610
        %v1612 = vpop.f32.mrf.mxu0
        %1613 = vmatprep.mubr.bf16.mxu0 0
        %1614 = vmatmul.mubr.bf16.gmra.mxu0 %v1472
        %v1615 = vpop.f32.mrf.mxu0
        %v1616 = vadd.f32 0.0, %v1615
        %v1617 = vpop.f32.mrf.mxu0
        %v1618 = vpop.f32.mrf.mxu0
        %v1619 = vadd.f32 0.0, %v1618
        %v1620 = vpop.f32.mrf.mxu0
        %1621 = vmatprep.mubr.bf16.mxu0 0
        %1622 = vmatmul.mubr.bf16.gmra.mxu0 %v1473
        %v1623 = vpop.f32.mrf.mxu0
        %v1624 = vadd.f32 0.0, %v1623
        %v1625 = vpop.f32.mrf.mxu0
        %v1626 = vpop.f32.mrf.mxu0
        %v1627 = vadd.f32 0.0, %v1626
        %v1628 = vpop.f32.mrf.mxu0
        %1629 = vmatprep.mubr.bf16.mxu0 0
        %1630 = vmatmul.mubr.bf16.gmra.mxu0 %v1474
        %v1631 = vpop.f32.mrf.mxu0
        %v1632 = vadd.f32 0.0, %v1631
        %v1633 = vpop.f32.mrf.mxu0
        %v1634 = vpop.f32.mrf.mxu0
        %v1635 = vadd.f32 0.0, %v1634
        %v1636 = vpop.f32.mrf.mxu0
        %1637 = vmatprep.mubr.bf16.mxu0 0
        %1638 = vmatmul.mubr.bf16.gmra.mxu0 %v1475
        %v1639 = vpop.f32.mrf.mxu0
        %v1640 = vadd.f32 0.0, %v1639
        %v1641 = vpop.f32.mrf.mxu0
        %v1642 = vpop.f32.mrf.mxu0
        %v1643 = vadd.f32 0.0, %v1642
        %v1644 = vpop.f32.mrf.mxu0
        %1645 = vmatprep.mubr.bf16.mxu0 0
        %1646 = vmatmul.mubr.bf16.gmra.mxu0 %v1476
        %v1647 = vpop.f32.mrf.mxu0
        %v1648 = vadd.f32 0.0, %v1647
        %v1649 = vpop.f32.mrf.mxu0
        %v1650 = vpop.f32.mrf.mxu0
        %v1651 = vadd.f32 0.0, %v1650
        %v1652 = vpop.f32.mrf.mxu0
        %1653 = vmatprep.mubr.bf16.mxu0 0
        %1654 = vmatmul.mubr.bf16.gmra.mxu0 %v1477
        %v1655 = vpop.f32.mrf.mxu0
        %v1656 = vadd.f32 0.0, %v1655
        %v1657 = vpop.f32.mrf.mxu0
        %v1658 = vpop.f32.mrf.mxu0
        %v1659 = vadd.f32 0.0, %v1658
        %v1660 = vpop.f32.mrf.mxu0
        %1661 = vmatprep.mubr.bf16.mxu0 0
        %1662 = vmatmul.mubr.bf16.gmra.mxu0 %v1478
        %v1663 = vpop.f32.mrf.mxu0
        %v1664 = vadd.f32 0.0, %v1663
        %v1665 = vpop.f32.mrf.mxu0
        %v1666 = vpop.f32.mrf.mxu0
        %v1667 = vadd.f32 0.0, %v1666
        %v1668 = vpop.f32.mrf.mxu0
        %1669 = vmatprep.mubr.bf16.mxu0 0
        %1670 = vmatmul.mubr.bf16.gmra.mxu0 %v1479
        %v1671 = vpop.f32.mrf.mxu0
        %v1672 = vadd.f32 0.0, %v1671
        %v1673 = vpop.f32.mrf.mxu0
        %v1674 = vpop.f32.mrf.mxu0
        %v1675 = vadd.f32 0.0, %v1674
        %v1676 = vpop.f32.mrf.mxu0
        %1677 = vmatprep.mubr.bf16.mxu0 0
        %1678 = vmatmul.mubr.bf16.gmra.mxu0 %v1480
        %v1679 = vpop.f32.mrf.mxu0
        %v1680 = vadd.f32 0.0, %v1679
        %v1681 = vpop.f32.mrf.mxu0
        %v1682 = vpop.f32.mrf.mxu0
        %v1683 = vadd.f32 0.0, %v1682
        %v1684 = vpop.f32.mrf.mxu0
        %1685 = vmatprep.mubr.bf16.mxu0 0
        %1686 = vmatmul.mubr.bf16.gmra.mxu0 %v1481
        %v1687 = vpop.f32.mrf.mxu0
        %v1688 = vadd.f32 0.0, %v1687
        %v1689 = vpop.f32.mrf.mxu0
        %v1690 = vpop.f32.mrf.mxu0
        %v1691 = vadd.f32 0.0, %v1690
        %v1692 = vpop.f32.mrf.mxu0
        %1693 = vmatprep.mubr.bf16.mxu0 0
        %1694 = vmatmul.mubr.bf16.gmra.mxu0 %v1482
        %v1695 = vpop.f32.mrf.mxu0
        %v1696 = vadd.f32 0.0, %v1695
        %v1697 = vpop.f32.mrf.mxu0
        %v1698 = vpop.f32.mrf.mxu0
        %v1699 = vadd.f32 0.0, %v1698
        %v1700 = vpop.f32.mrf.mxu0
        %1701 = vmatprep.mubr.bf16.mxu0 0
        %1702 = vmatmul.mubr.bf16.gmra.mxu0 %v1483
        %v1703 = vpop.f32.mrf.mxu0
        %v1704 = vadd.f32 0.0, %v1703
        %v1705 = vpop.f32.mrf.mxu0
        %v1706 = vpop.f32.mrf.mxu0
        %v1707 = vadd.f32 0.0, %v1706
        %v1708 = vpop.f32.mrf.mxu0
        %1709 = vdwg.mxu0
        %v1710 = vadd.f32 %v1310, %v1584
        %v1711 = vadd.f32 %v1313, %v1587
        %v1712 = vadd.f32 %v1318, %v1592
        %v1713 = vadd.f32 %v1321, %v1595
        %v1714 = vadd.f32 %v1326, %v1600
        %v1715 = vadd.f32 %v1329, %v1603
        %v1716 = vadd.f32 %v1334, %v1608
        %v1717 = vadd.f32 %v1337, %v1611
        %v1718 = vadd.f32 %v1342, %v1616
        %v1719 = vadd.f32 %v1345, %v1619
        %v1720 = vadd.f32 %v1350, %v1624
        %v1721 = vadd.f32 %v1353, %v1627
        %v1722 = vadd.f32 %v1358, %v1632
        %v1723 = vadd.f32 %v1361, %v1635
        %v1724 = vadd.f32 %v1366, %v1640
        %v1725 = vadd.f32 %v1369, %v1643
        %v1726 = vadd.f32 %v1374, %v1648
        %v1727 = vadd.f32 %v1377, %v1651
        %v1728 = vadd.f32 %v1382, %v1656
        %v1729 = vadd.f32 %v1385, %v1659
        %v1730 = vadd.f32 %v1390, %v1664
        %v1731 = vadd.f32 %v1393, %v1667
        %v1732 = vadd.f32 %v1398, %v1672
        %v1733 = vadd.f32 %v1401, %v1675
        %v1734 = vadd.f32 %v1406, %v1680
        %v1735 = vadd.f32 %v1409, %v1683
        %v1736 = vadd.f32 %v1414, %v1688
        %v1737 = vadd.f32 %v1417, %v1691
        %v1738 = vadd.f32 %v1422, %v1696
        %v1739 = vadd.f32 %v1425, %v1699
        %v1740 = vadd.f32 %v1430, %v1704
        %v1741 = vadd.f32 %v1433, %v1707
        %v1742 = vld [vmem:[%s856] sm:$0xff]
        %v1743 = vld [vmem:[%s856 + $0x8] sm:$0xff]
        %v1744 = vld [vmem:[%s856 + $0x18] sm:$0xff]
        %v1745 = vld [vmem:[%s856 + $0x20] sm:$0xff]
        %v1746 = vld [vmem:[%s856 + $0x30] sm:$0xff]
        %v1747 = vld [vmem:[%s856 + $0x38] sm:$0xff]
        %v1748 = vld [vmem:[%s856 + $0x48] sm:$0xff]
        %v1749 = vld [vmem:[%s856 + $0x50] sm:$0xff]
        %v1750 = vld [vmem:[%s856 + $0x60] sm:$0xff]
        %v1751 = vld [vmem:[%s856 + $0x68] sm:$0xff]
        %v1752 = vld [vmem:[%s856 + $0x78] sm:$0xff]
        %v1753 = vld [vmem:[%s856 + $0x80] sm:$0xff]
        %v1754 = vld [vmem:[%s856 + $0x90] sm:$0xff]
        %v1755 = vld [vmem:[%s856 + $0x98] sm:$0xff]
        %v1756 = vld [vmem:[%s856 + $0xa8] sm:$0xff]
        %v1757 = vld [vmem:[%s856 + $0xb0] sm:$0xff]
        %v1758 = vld [vmem:[%s856 + $0xc0] sm:$0xff]
        %v1759 = vld [vmem:[%s856 + $0xc8] sm:$0xff]
        %v1760 = vld [vmem:[%s856 + $0xd8] sm:$0xff]
        %v1761 = vld [vmem:[%s856 + $0xe0] sm:$0xff]
        %v1762 = vld [vmem:[%s856 + $0xf0] sm:$0xff]
        %v1763 = vld [vmem:[%s856 + $0xf8] sm:$0xff]
        %v1764 = vld [vmem:[%s856 + $0x108] sm:$0xff]
        %v1765 = vld [vmem:[%s856 + $0x110] sm:$0xff]
        %v1766 = vld [vmem:[%s856 + $0x120] sm:$0xff]
        %v1767 = vld [vmem:[%s856 + $0x128] sm:$0xff]
        %v1768 = vld [vmem:[%s856 + $0x138] sm:$0xff]
        %v1769 = vld [vmem:[%s856 + $0x140] sm:$0xff]
        %v1770 = vld [vmem:[%s856 + $0x150] sm:$0xff]
        %v1771 = vld [vmem:[%s856 + $0x158] sm:$0xff]
        %v1772 = vld [vmem:[%s856 + $0x168] sm:$0xff]
        %v1773 = vld [vmem:[%s856 + $0x170] sm:$0xff]
        %v1774 = vpack.c.bf16 %v1743, %v1742
        %v1775 = vpack.c.bf16 %v1745, %v1744
        %v1776 = vpack.c.bf16 %v1747, %v1746
        %v1777 = vpack.c.bf16 %v1749, %v1748
        %v1778 = vpack.c.bf16 %v1751, %v1750
        %v1779 = vpack.c.bf16 %v1753, %v1752
        %v1780 = vpack.c.bf16 %v1755, %v1754
        %v1781 = vpack.c.bf16 %v1757, %v1756
        %v1782 = vpack.c.bf16 %v1759, %v1758
        %v1783 = vpack.c.bf16 %v1761, %v1760
        %v1784 = vpack.c.bf16 %v1763, %v1762
        %v1785 = vpack.c.bf16 %v1765, %v1764
        %v1786 = vpack.c.bf16 %v1767, %v1766
        %v1787 = vpack.c.bf16 %v1769, %v1768
        %v1788 = vpack.c.bf16 %v1771, %v1770
        %v1789 = vpack.c.bf16 %v1773, %v1772
        %s1790 = scalar_lea.vmem [#allocation8], 192
        %v1791 = vld [vmem:[%s1790] sm:$0xf]
        %v1792 = vld [vmem:[%s1790 + $0x4] sm:$0xf]
        %v1793 = vld [vmem:[%s1790 + $0x8] sm:$0xf]
        %v1794 = vld [vmem:[%s1790 + $0xc] sm:$0xf]
        %v1795 = vld [vmem:[%s1790 + $0x10] sm:$0xf]
        %v1796 = vld [vmem:[%s1790 + $0x14] sm:$0xf]
        %v1797 = vld [vmem:[%s1790 + $0x18] sm:$0xf]
        %v1798 = vld [vmem:[%s1790 + $0x1c] sm:$0xf]
        %v1799 = vld [vmem:[%s1790 + $0x20] sm:$0xf]
        %v1800 = vld [vmem:[%s1790 + $0x24] sm:$0xf]
        %v1801 = vld [vmem:[%s1790 + $0x28] sm:$0xf]
        %v1802 = vld [vmem:[%s1790 + $0x2c] sm:$0xf]
        %v1803 = vld [vmem:[%s1790 + $0x30] sm:$0xf]
        %v1804 = vld [vmem:[%s1790 + $0x34] sm:$0xf]
        %v1805 = vld [vmem:[%s1790 + $0x38] sm:$0xf]
        %v1806 = vld [vmem:[%s1790 + $0x3c] sm:$0xf]
        %v1823 = vunpack.c.l.b16 %v1791
        %v1824 = vunpack.c.l.b16 %v1792
        %v1825 = vunpack.c.l.b16 %v1793
        %v1826 = vunpack.c.l.b16 %v1794
        %v1827 = vunpack.c.l.b16 %v1795
        %v1828 = vunpack.c.l.b16 %v1796
        %v1829 = vunpack.c.l.b16 %v1797
        %v1830 = vunpack.c.l.b16 %v1798
        %v1831 = vunpack.c.l.b16 %v1799
        %v1832 = vunpack.c.l.b16 %v1800
        %v1833 = vunpack.c.l.b16 %v1801
        %v1834 = vunpack.c.l.b16 %v1802
        %v1835 = vunpack.c.l.b16 %v1803
        %v1836 = vunpack.c.l.b16 %v1804
        %v1837 = vunpack.c.l.b16 %v1805
        %v1838 = vunpack.c.l.b16 %v1806
        %v1839 = vpack.c.b16 %v1824, %v1823
        %v1840 = vpack.c.b16 %v1826, %v1825
        %v1841 = vpack.c.b16 %v1828, %v1827
        %v1842 = vpack.c.b16 %v1830, %v1829
        %v1843 = vpack.c.b16 %v1832, %v1831
        %v1844 = vpack.c.b16 %v1834, %v1833
        %v1845 = vpack.c.b16 %v1836, %v1835
        %v1846 = vpack.c.b16 %v1838, %v1837
        %1855 = vmatprep.subr.bf16.mxu0 0
        %1856 = vmatpush1.bf16.msra.mxu0 %v1846
        %1857 = vmatprep.subr.bf16.mxu0 0
        %1858 = vmatpush1.bf16.msra.mxu0 %v1845
        %1859 = vmatprep.subr.bf16.mxu0 0
        %1860 = vmatpush1.bf16.msra.mxu0 %v1844
        %1861 = vmatprep.subr.bf16.mxu0 0
        %1862 = vmatpush1.bf16.msra.mxu0 %v1843
        %1863 = vmatprep.subr.bf16.mxu0 0
        %1864 = vmatpush1.bf16.msra.mxu0 %v1842
        %1865 = vmatprep.subr.bf16.mxu0 0
        %1866 = vmatpush1.bf16.msra.mxu0 %v1841
        %1867 = vmatprep.subr.bf16.mxu0 0
        %1868 = vmatpush1.bf16.msra.mxu0 %v1840
        %1869 = vmatprep.subr.bf16.mxu0 0
        %1870 = vmatpush1.bf16.msra.mxu0 %v1839
        %1871 = vmatprep.subr.bf16.mxu0 0
        %1872 = vmatpush2.bf16.msra.mxu0 0
        %1873 = vmatprep.subr.bf16.mxu0 0
        %1874 = vmatpush2.bf16.msra.mxu0 0
        %1875 = vmatprep.subr.bf16.mxu0 0
        %1876 = vmatpush2.bf16.msra.mxu0 0
        %1877 = vmatprep.subr.bf16.mxu0 0
        %1878 = vmatpush2.bf16.msra.mxu0 0
        %1879 = vmatprep.subr.bf16.mxu0 0
        %1880 = vmatpush2.bf16.msra.mxu0 0
        %1881 = vmatprep.subr.bf16.mxu0 0
        %1882 = vmatpush2.bf16.msra.mxu0 0
        %1883 = vmatprep.subr.bf16.mxu0 0
        %1884 = vmatpush2.bf16.msra.mxu0 0
        %1885 = vmatprep.subr.bf16.mxu0 0
        %1886 = vmatpush2.bf16.msra.mxu0 0
        %1887 = vmatprep.mubr.bf16.mxu0 0
        %1888 = vmatmul.mubr.bf16.gmra.mxu0 %v1774
        %v1889 = vpop.f32.mrf.mxu0
        %v1890 = vadd.f32 0.0, %v1889
        %v1891 = vpop.f32.mrf.mxu0
        %v1892 = vpop.f32.mrf.mxu0
        %v1893 = vadd.f32 0.0, %v1892
        %v1894 = vpop.f32.mrf.mxu0
        %1895 = vmatprep.mubr.bf16.mxu0 0
        %1896 = vmatmul.mubr.bf16.gmra.mxu0 %v1775
        %v1897 = vpop.f32.mrf.mxu0
        %v1898 = vadd.f32 0.0, %v1897
        %v1899 = vpop.f32.mrf.mxu0
        %v1900 = vpop.f32.mrf.mxu0
        %v1901 = vadd.f32 0.0, %v1900
        %v1902 = vpop.f32.mrf.mxu0
        %1903 = vmatprep.mubr.bf16.mxu0 0
        %1904 = vmatmul.mubr.bf16.gmra.mxu0 %v1776
        %v1905 = vpop.f32.mrf.mxu0
        %v1906 = vadd.f32 0.0, %v1905
        %v1907 = vpop.f32.mrf.mxu0
        %v1908 = vpop.f32.mrf.mxu0
        %v1909 = vadd.f32 0.0, %v1908
        %v1910 = vpop.f32.mrf.mxu0
        %1911 = vmatprep.mubr.bf16.mxu0 0
        %1912 = vmatmul.mubr.bf16.gmra.mxu0 %v1777
        %v1913 = vpop.f32.mrf.mxu0
        %v1914 = vadd.f32 0.0, %v1913
        %v1915 = vpop.f32.mrf.mxu0
        %v1916 = vpop.f32.mrf.mxu0
        %v1917 = vadd.f32 0.0, %v1916
        %v1918 = vpop.f32.mrf.mxu0
        %1919 = vmatprep.mubr.bf16.mxu0 0
        %1920 = vmatmul.mubr.bf16.gmra.mxu0 %v1778
        %v1921 = vpop.f32.mrf.mxu0
        %v1922 = vadd.f32 0.0, %v1921
        %v1923 = vpop.f32.mrf.mxu0
        %v1924 = vpop.f32.mrf.mxu0
        %v1925 = vadd.f32 0.0, %v1924
        %v1926 = vpop.f32.mrf.mxu0
        %1927 = vmatprep.mubr.bf16.mxu0 0
        %1928 = vmatmul.mubr.bf16.gmra.mxu0 %v1779
        %v1929 = vpop.f32.mrf.mxu0
        %v1930 = vadd.f32 0.0, %v1929
        %v1931 = vpop.f32.mrf.mxu0
        %v1932 = vpop.f32.mrf.mxu0
        %v1933 = vadd.f32 0.0, %v1932
        %v1934 = vpop.f32.mrf.mxu0
        %1935 = vmatprep.mubr.bf16.mxu0 0
        %1936 = vmatmul.mubr.bf16.gmra.mxu0 %v1780
        %v1937 = vpop.f32.mrf.mxu0
        %v1938 = vadd.f32 0.0, %v1937
        %v1939 = vpop.f32.mrf.mxu0
        %v1940 = vpop.f32.mrf.mxu0
        %v1941 = vadd.f32 0.0, %v1940
        %v1942 = vpop.f32.mrf.mxu0
        %1943 = vmatprep.mubr.bf16.mxu0 0
        %1944 = vmatmul.mubr.bf16.gmra.mxu0 %v1781
        %v1945 = vpop.f32.mrf.mxu0
        %v1946 = vadd.f32 0.0, %v1945
        %v1947 = vpop.f32.mrf.mxu0
        %v1948 = vpop.f32.mrf.mxu0
        %v1949 = vadd.f32 0.0, %v1948
        %v1950 = vpop.f32.mrf.mxu0
        %1951 = vmatprep.mubr.bf16.mxu0 0
        %1952 = vmatmul.mubr.bf16.gmra.mxu0 %v1782
        %v1953 = vpop.f32.mrf.mxu0
        %v1954 = vadd.f32 0.0, %v1953
        %v1955 = vpop.f32.mrf.mxu0
        %v1956 = vpop.f32.mrf.mxu0
        %v1957 = vadd.f32 0.0, %v1956
        %v1958 = vpop.f32.mrf.mxu0
        %1959 = vmatprep.mubr.bf16.mxu0 0
        %1960 = vmatmul.mubr.bf16.gmra.mxu0 %v1783
        %v1961 = vpop.f32.mrf.mxu0
        %v1962 = vadd.f32 0.0, %v1961
        %v1963 = vpop.f32.mrf.mxu0
        %v1964 = vpop.f32.mrf.mxu0
        %v1965 = vadd.f32 0.0, %v1964
        %v1966 = vpop.f32.mrf.mxu0
        %1967 = vmatprep.mubr.bf16.mxu0 0
        %1968 = vmatmul.mubr.bf16.gmra.mxu0 %v1784
        %v1969 = vpop.f32.mrf.mxu0
        %v1970 = vadd.f32 0.0, %v1969
        %v1971 = vpop.f32.mrf.mxu0
        %v1972 = vpop.f32.mrf.mxu0
        %v1973 = vadd.f32 0.0, %v1972
        %v1974 = vpop.f32.mrf.mxu0
        %1975 = vmatprep.mubr.bf16.mxu0 0
        %1976 = vmatmul.mubr.bf16.gmra.mxu0 %v1785
        %v1977 = vpop.f32.mrf.mxu0
        %v1978 = vadd.f32 0.0, %v1977
        %v1979 = vpop.f32.mrf.mxu0
        %v1980 = vpop.f32.mrf.mxu0
        %v1981 = vadd.f32 0.0, %v1980
        %v1982 = vpop.f32.mrf.mxu0
        %1983 = vmatprep.mubr.bf16.mxu0 0
        %1984 = vmatmul.mubr.bf16.gmra.mxu0 %v1786
        %v1985 = vpop.f32.mrf.mxu0
        %v1986 = vadd.f32 0.0, %v1985
        %v1987 = vpop.f32.mrf.mxu0
        %v1988 = vpop.f32.mrf.mxu0
        %v1989 = vadd.f32 0.0, %v1988
        %v1990 = vpop.f32.mrf.mxu0
        %1991 = vmatprep.mubr.bf16.mxu0 0
        %1992 = vmatmul.mubr.bf16.gmra.mxu0 %v1787
        %v1993 = vpop.f32.mrf.mxu0
        %v1994 = vadd.f32 0.0, %v1993
        %v1995 = vpop.f32.mrf.mxu0
        %v1996 = vpop.f32.mrf.mxu0
        %v1997 = vadd.f32 0.0, %v1996
        %v1998 = vpop.f32.mrf.mxu0
        %1999 = vmatprep.mubr.bf16.mxu0 0
        %2000 = vmatmul.mubr.bf16.gmra.mxu0 %v1788
        %v2001 = vpop.f32.mrf.mxu0
        %v2002 = vadd.f32 0.0, %v2001
        %v2003 = vpop.f32.mrf.mxu0
        %v2004 = vpop.f32.mrf.mxu0
        %v2005 = vadd.f32 0.0, %v2004
        %v2006 = vpop.f32.mrf.mxu0
        %2007 = vmatprep.mubr.bf16.mxu0 0
        %2008 = vmatmul.mubr.bf16.gmra.mxu0 %v1789
        %v2009 = vpop.f32.mrf.mxu0
        %v2010 = vadd.f32 0.0, %v2009
        %v2011 = vpop.f32.mrf.mxu0
        %v2012 = vpop.f32.mrf.mxu0
        %v2013 = vadd.f32 0.0, %v2012
        %v2014 = vpop.f32.mrf.mxu0
        %2015 = vdwg.mxu0
        %v2016 = vadd.f32 %v1710, %v1890
        %v2017 = vadd.f32 %v1711, %v1893
        %v2018 = vadd.f32 %v1712, %v1898
        %v2019 = vadd.f32 %v1713, %v1901
        %v2020 = vadd.f32 %v1714, %v1906
        %v2021 = vadd.f32 %v1715, %v1909
        %v2022 = vadd.f32 %v1716, %v1914
        %v2023 = vadd.f32 %v1717, %v1917
        %v2024 = vadd.f32 %v1718, %v1922
        %v2025 = vadd.f32 %v1719, %v1925
        %v2026 = vadd.f32 %v1720, %v1930
        %v2027 = vadd.f32 %v1721, %v1933
        %v2028 = vadd.f32 %v1722, %v1938
        %v2029 = vadd.f32 %v1723, %v1941
        %v2030 = vadd.f32 %v1724, %v1946
        %v2031 = vadd.f32 %v1725, %v1949
        %v2032 = vadd.f32 %v1726, %v1954
        %v2033 = vadd.f32 %v1727, %v1957
        %v2034 = vadd.f32 %v1728, %v1962
        %v2035 = vadd.f32 %v1729, %v1965
        %v2036 = vadd.f32 %v1730, %v1970
        %v2037 = vadd.f32 %v1731, %v1973
        %v2038 = vadd.f32 %v1732, %v1978
        %v2039 = vadd.f32 %v1733, %v1981
        %v2040 = vadd.f32 %v1734, %v1986
        %v2041 = vadd.f32 %v1735, %v1989
        %v2042 = vadd.f32 %v1736, %v1994
        %v2043 = vadd.f32 %v1737, %v1997
        %v2044 = vadd.f32 %v1738, %v2002
        %v2045 = vadd.f32 %v1739, %v2005
        %v2046 = vadd.f32 %v1740, %v2010
        %v2047 = vadd.f32 %v1741, %v2013
        %v2048 = vld [vmem:[%s856 + $0x1] sm:$0xff]
        %v2049 = vld [vmem:[%s856 + $0x9] sm:$0xff]
        %v2050 = vld [vmem:[%s856 + $0x19] sm:$0xff]
        %v2051 = vld [vmem:[%s856 + $0x21] sm:$0xff]
        %v2052 = vld [vmem:[%s856 + $0x31] sm:$0xff]
        %v2053 = vld [vmem:[%s856 + $0x39] sm:$0xff]
        %v2054 = vld [vmem:[%s856 + $0x49] sm:$0xff]
        %v2055 = vld [vmem:[%s856 + $0x51] sm:$0xff]
        %v2056 = vld [vmem:[%s856 + $0x61] sm:$0xff]
        %v2057 = vld [vmem:[%s856 + $0x69] sm:$0xff]
        %v2058 = vld [vmem:[%s856 + $0x79] sm:$0xff]
        %v2059 = vld [vmem:[%s856 + $0x81] sm:$0xff]
        %v2060 = vld [vmem:[%s856 + $0x91] sm:$0xff]
        %v2061 = vld [vmem:[%s856 + $0x99] sm:$0xff]
        %v2062 = vld [vmem:[%s856 + $0xa9] sm:$0xff]
        %v2063 = vld [vmem:[%s856 + $0xb1] sm:$0xff]
        %v2064 = vld [vmem:[%s856 + $0xc1] sm:$0xff]
        %v2065 = vld [vmem:[%s856 + $0xc9] sm:$0xff]
        %v2066 = vld [vmem:[%s856 + $0xd9] sm:$0xff]
        %v2067 = vld [vmem:[%s856 + $0xe1] sm:$0xff]
        %v2068 = vld [vmem:[%s856 + $0xf1] sm:$0xff]
        %v2069 = vld [vmem:[%s856 + $0xf9] sm:$0xff]
        %v2070 = vld [vmem:[%s856 + $0x109] sm:$0xff]
        %v2071 = vld [vmem:[%s856 + $0x111] sm:$0xff]
        %v2072 = vld [vmem:[%s856 + $0x121] sm:$0xff]
        %v2073 = vld [vmem:[%s856 + $0x129] sm:$0xff]
        %v2074 = vld [vmem:[%s856 + $0x139] sm:$0xff]
        %v2075 = vld [vmem:[%s856 + $0x141] sm:$0xff]
        %v2076 = vld [vmem:[%s856 + $0x151] sm:$0xff]
        %v2077 = vld [vmem:[%s856 + $0x159] sm:$0xff]
        %v2078 = vld [vmem:[%s856 + $0x169] sm:$0xff]
        %v2079 = vld [vmem:[%s856 + $0x171] sm:$0xff]
        %v2080 = vpack.c.bf16 %v2049, %v2048
        %v2081 = vpack.c.bf16 %v2051, %v2050
        %v2082 = vpack.c.bf16 %v2053, %v2052
        %v2083 = vpack.c.bf16 %v2055, %v2054
        %v2084 = vpack.c.bf16 %v2057, %v2056
        %v2085 = vpack.c.bf16 %v2059, %v2058
        %v2086 = vpack.c.bf16 %v2061, %v2060
        %v2087 = vpack.c.bf16 %v2063, %v2062
        %v2088 = vpack.c.bf16 %v2065, %v2064
        %v2089 = vpack.c.bf16 %v2067, %v2066
        %v2090 = vpack.c.bf16 %v2069, %v2068
        %v2091 = vpack.c.bf16 %v2071, %v2070
        %v2092 = vpack.c.bf16 %v2073, %v2072
        %v2093 = vpack.c.bf16 %v2075, %v2074
        %v2094 = vpack.c.bf16 %v2077, %v2076
        %v2095 = vpack.c.bf16 %v2079, %v2078
        %s2096 = scalar_lea.vmem [#allocation8], 256
        %v2097 = vld [vmem:[%s2096] sm:$0xf]
        %v2098 = vld [vmem:[%s2096 + $0x4] sm:$0xf]
        %v2099 = vld [vmem:[%s2096 + $0x8] sm:$0xf]
        %v2100 = vld [vmem:[%s2096 + $0xc] sm:$0xf]
        %v2101 = vld [vmem:[%s2096 + $0x10] sm:$0xf]
        %v2102 = vld [vmem:[%s2096 + $0x14] sm:$0xf]
        %v2103 = vld [vmem:[%s2096 + $0x18] sm:$0xf]
        %v2104 = vld [vmem:[%s2096 + $0x1c] sm:$0xf]
        %v2105 = vld [vmem:[%s2096 + $0x20] sm:$0xf]
        %v2106 = vld [vmem:[%s2096 + $0x24] sm:$0xf]
        %v2107 = vld [vmem:[%s2096 + $0x28] sm:$0xf]
        %v2108 = vld [vmem:[%s2096 + $0x2c] sm:$0xf]
        %v2109 = vld [vmem:[%s2096 + $0x30] sm:$0xf]
        %v2110 = vld [vmem:[%s2096 + $0x34] sm:$0xf]
        %v2111 = vld [vmem:[%s2096 + $0x38] sm:$0xf]
        %v2112 = vld [vmem:[%s2096 + $0x3c] sm:$0xf]
        %v2129 = vunpack.c.l.b16 %v2097
        %v2130 = vunpack.c.l.b16 %v2098
        %v2131 = vunpack.c.l.b16 %v2099
        %v2132 = vunpack.c.l.b16 %v2100
        %v2133 = vunpack.c.l.b16 %v2101
        %v2134 = vunpack.c.l.b16 %v2102
        %v2135 = vunpack.c.l.b16 %v2103
        %v2136 = vunpack.c.l.b16 %v2104
        %v2137 = vunpack.c.l.b16 %v2105
        %v2138 = vunpack.c.l.b16 %v2106
        %v2139 = vunpack.c.l.b16 %v2107
        %v2140 = vunpack.c.l.b16 %v2108
        %v2141 = vunpack.c.l.b16 %v2109
        %v2142 = vunpack.c.l.b16 %v2110
        %v2143 = vunpack.c.l.b16 %v2111
        %v2144 = vunpack.c.l.b16 %v2112
        %v2145 = vpack.c.b16 %v2130, %v2129
        %v2146 = vpack.c.b16 %v2132, %v2131
        %v2147 = vpack.c.b16 %v2134, %v2133
        %v2148 = vpack.c.b16 %v2136, %v2135
        %v2149 = vpack.c.b16 %v2138, %v2137
        %v2150 = vpack.c.b16 %v2140, %v2139
        %v2151 = vpack.c.b16 %v2142, %v2141
        %v2152 = vpack.c.b16 %v2144, %v2143
        %2161 = vmatprep.subr.bf16.mxu0 0
        %2162 = vmatpush1.bf16.msra.mxu0 %v2152
        %2163 = vmatprep.subr.bf16.mxu0 0
        %2164 = vmatpush1.bf16.msra.mxu0 %v2151
        %2165 = vmatprep.subr.bf16.mxu0 0
        %2166 = vmatpush1.bf16.msra.mxu0 %v2150
        %2167 = vmatprep.subr.bf16.mxu0 0
        %2168 = vmatpush1.bf16.msra.mxu0 %v2149
        %2169 = vmatprep.subr.bf16.mxu0 0
        %2170 = vmatpush1.bf16.msra.mxu0 %v2148
        %2171 = vmatprep.subr.bf16.mxu0 0
        %2172 = vmatpush1.bf16.msra.mxu0 %v2147
        %2173 = vmatprep.subr.bf16.mxu0 0
        %2174 = vmatpush1.bf16.msra.mxu0 %v2146
        %2175 = vmatprep.subr.bf16.mxu0 0
        %2176 = vmatpush1.bf16.msra.mxu0 %v2145
        %2177 = vmatprep.subr.bf16.mxu0 0
        %2178 = vmatpush2.bf16.msra.mxu0 0
        %2179 = vmatprep.subr.bf16.mxu0 0
        %2180 = vmatpush2.bf16.msra.mxu0 0
        %2181 = vmatprep.subr.bf16.mxu0 0
        %2182 = vmatpush2.bf16.msra.mxu0 0
        %2183 = vmatprep.subr.bf16.mxu0 0
        %2184 = vmatpush2.bf16.msra.mxu0 0
        %2185 = vmatprep.subr.bf16.mxu0 0
        %2186 = vmatpush2.bf16.msra.mxu0 0
        %2187 = vmatprep.subr.bf16.mxu0 0
        %2188 = vmatpush2.bf16.msra.mxu0 0
        %2189 = vmatprep.subr.bf16.mxu0 0
        %2190 = vmatpush2.bf16.msra.mxu0 0
        %2191 = vmatprep.subr.bf16.mxu0 0
        %2192 = vmatpush2.bf16.msra.mxu0 0
        %2193 = vmatprep.mubr.bf16.mxu0 0
        %2194 = vmatmul.mubr.bf16.gmra.mxu0 %v2080
        %v2195 = vpop.f32.mrf.mxu0
        %v2196 = vadd.f32 0.0, %v2195
        %v2197 = vpop.f32.mrf.mxu0
        %v2198 = vpop.f32.mrf.mxu0
        %v2199 = vadd.f32 0.0, %v2198
        %v2200 = vpop.f32.mrf.mxu0
        %2201 = vmatprep.mubr.bf16.mxu0 0
        %2202 = vmatmul.mubr.bf16.gmra.mxu0 %v2081
        %v2203 = vpop.f32.mrf.mxu0
        %v2204 = vadd.f32 0.0, %v2203
        %v2205 = vpop.f32.mrf.mxu0
        %v2206 = vpop.f32.mrf.mxu0
        %v2207 = vadd.f32 0.0, %v2206
        %v2208 = vpop.f32.mrf.mxu0
        %2209 = vmatprep.mubr.bf16.mxu0 0
        %2210 = vmatmul.mubr.bf16.gmra.mxu0 %v2082
        %v2211 = vpop.f32.mrf.mxu0
        %v2212 = vadd.f32 0.0, %v2211
        %v2213 = vpop.f32.mrf.mxu0
        %v2214 = vpop.f32.mrf.mxu0
        %v2215 = vadd.f32 0.0, %v2214
        %v2216 = vpop.f32.mrf.mxu0
        %2217 = vmatprep.mubr.bf16.mxu0 0
        %2218 = vmatmul.mubr.bf16.gmra.mxu0 %v2083
        %v2219 = vpop.f32.mrf.mxu0
        %v2220 = vadd.f32 0.0, %v2219
        %v2221 = vpop.f32.mrf.mxu0
        %v2222 = vpop.f32.mrf.mxu0
        %v2223 = vadd.f32 0.0, %v2222
        %v2224 = vpop.f32.mrf.mxu0
        %2225 = vmatprep.mubr.bf16.mxu0 0
        %2226 = vmatmul.mubr.bf16.gmra.mxu0 %v2084
        %v2227 = vpop.f32.mrf.mxu0
        %v2228 = vadd.f32 0.0, %v2227
        %v2229 = vpop.f32.mrf.mxu0
        %v2230 = vpop.f32.mrf.mxu0
        %v2231 = vadd.f32 0.0, %v2230
        %v2232 = vpop.f32.mrf.mxu0
        %2233 = vmatprep.mubr.bf16.mxu0 0
        %2234 = vmatmul.mubr.bf16.gmra.mxu0 %v2085
        %v2235 = vpop.f32.mrf.mxu0
        %v2236 = vadd.f32 0.0, %v2235
        %v2237 = vpop.f32.mrf.mxu0
        %v2238 = vpop.f32.mrf.mxu0
        %v2239 = vadd.f32 0.0, %v2238
        %v2240 = vpop.f32.mrf.mxu0
        %2241 = vmatprep.mubr.bf16.mxu0 0
        %2242 = vmatmul.mubr.bf16.gmra.mxu0 %v2086
        %v2243 = vpop.f32.mrf.mxu0
        %v2244 = vadd.f32 0.0, %v2243
        %v2245 = vpop.f32.mrf.mxu0
        %v2246 = vpop.f32.mrf.mxu0
        %v2247 = vadd.f32 0.0, %v2246
        %v2248 = vpop.f32.mrf.mxu0
        %2249 = vmatprep.mubr.bf16.mxu0 0
        %2250 = vmatmul.mubr.bf16.gmra.mxu0 %v2087
        %v2251 = vpop.f32.mrf.mxu0
        %v2252 = vadd.f32 0.0, %v2251
        %v2253 = vpop.f32.mrf.mxu0
        %v2254 = vpop.f32.mrf.mxu0
        %v2255 = vadd.f32 0.0, %v2254
        %v2256 = vpop.f32.mrf.mxu0
        %2257 = vmatprep.mubr.bf16.mxu0 0
        %2258 = vmatmul.mubr.bf16.gmra.mxu0 %v2088
        %v2259 = vpop.f32.mrf.mxu0
        %v2260 = vadd.f32 0.0, %v2259
        %v2261 = vpop.f32.mrf.mxu0
        %v2262 = vpop.f32.mrf.mxu0
        %v2263 = vadd.f32 0.0, %v2262
        %v2264 = vpop.f32.mrf.mxu0
        %2265 = vmatprep.mubr.bf16.mxu0 0
        %2266 = vmatmul.mubr.bf16.gmra.mxu0 %v2089
        %v2267 = vpop.f32.mrf.mxu0
        %v2268 = vadd.f32 0.0, %v2267
        %v2269 = vpop.f32.mrf.mxu0
        %v2270 = vpop.f32.mrf.mxu0
        %v2271 = vadd.f32 0.0, %v2270
        %v2272 = vpop.f32.mrf.mxu0
        %2273 = vmatprep.mubr.bf16.mxu0 0
        %2274 = vmatmul.mubr.bf16.gmra.mxu0 %v2090
        %v2275 = vpop.f32.mrf.mxu0
        %v2276 = vadd.f32 0.0, %v2275
        %v2277 = vpop.f32.mrf.mxu0
        %v2278 = vpop.f32.mrf.mxu0
        %v2279 = vadd.f32 0.0, %v2278
        %v2280 = vpop.f32.mrf.mxu0
        %2281 = vmatprep.mubr.bf16.mxu0 0
        %2282 = vmatmul.mubr.bf16.gmra.mxu0 %v2091
        %v2283 = vpop.f32.mrf.mxu0
        %v2284 = vadd.f32 0.0, %v2283
        %v2285 = vpop.f32.mrf.mxu0
        %v2286 = vpop.f32.mrf.mxu0
        %v2287 = vadd.f32 0.0, %v2286
        %v2288 = vpop.f32.mrf.mxu0
        %2289 = vmatprep.mubr.bf16.mxu0 0
        %2290 = vmatmul.mubr.bf16.gmra.mxu0 %v2092
        %v2291 = vpop.f32.mrf.mxu0
        %v2292 = vadd.f32 0.0, %v2291
        %v2293 = vpop.f32.mrf.mxu0
        %v2294 = vpop.f32.mrf.mxu0
        %v2295 = vadd.f32 0.0, %v2294
        %v2296 = vpop.f32.mrf.mxu0
        %2297 = vmatprep.mubr.bf16.mxu0 0
        %2298 = vmatmul.mubr.bf16.gmra.mxu0 %v2093
        %v2299 = vpop.f32.mrf.mxu0
        %v2300 = vadd.f32 0.0, %v2299
        %v2301 = vpop.f32.mrf.mxu0
        %v2302 = vpop.f32.mrf.mxu0
        %v2303 = vadd.f32 0.0, %v2302
        %v2304 = vpop.f32.mrf.mxu0
        %2305 = vmatprep.mubr.bf16.mxu0 0
        %2306 = vmatmul.mubr.bf16.gmra.mxu0 %v2094
        %v2307 = vpop.f32.mrf.mxu0
        %v2308 = vadd.f32 0.0, %v2307
        %v2309 = vpop.f32.mrf.mxu0
        %v2310 = vpop.f32.mrf.mxu0
        %v2311 = vadd.f32 0.0, %v2310
        %v2312 = vpop.f32.mrf.mxu0
        %2313 = vmatprep.mubr.bf16.mxu0 0
        %2314 = vmatmul.mubr.bf16.gmra.mxu0 %v2095
        %v2315 = vpop.f32.mrf.mxu0
        %v2316 = vadd.f32 0.0, %v2315
        %v2317 = vpop.f32.mrf.mxu0
        %v2318 = vpop.f32.mrf.mxu0
        %v2319 = vadd.f32 0.0, %v2318
        %v2320 = vpop.f32.mrf.mxu0
        %2321 = vdwg.mxu0
        %v2322 = vadd.f32 %v2016, %v2196
        %v2323 = vadd.f32 %v2017, %v2199
        %v2324 = vadd.f32 %v2018, %v2204
        %v2325 = vadd.f32 %v2019, %v2207
        %v2326 = vadd.f32 %v2020, %v2212
        %v2327 = vadd.f32 %v2021, %v2215
        %v2328 = vadd.f32 %v2022, %v2220
        %v2329 = vadd.f32 %v2023, %v2223
        %v2330 = vadd.f32 %v2024, %v2228
        %v2331 = vadd.f32 %v2025, %v2231
        %v2332 = vadd.f32 %v2026, %v2236
        %v2333 = vadd.f32 %v2027, %v2239
        %v2334 = vadd.f32 %v2028, %v2244
        %v2335 = vadd.f32 %v2029, %v2247
        %v2336 = vadd.f32 %v2030, %v2252
        %v2337 = vadd.f32 %v2031, %v2255
        %v2338 = vadd.f32 %v2032, %v2260
        %v2339 = vadd.f32 %v2033, %v2263
        %v2340 = vadd.f32 %v2034, %v2268
        %v2341 = vadd.f32 %v2035, %v2271
        %v2342 = vadd.f32 %v2036, %v2276
        %v2343 = vadd.f32 %v2037, %v2279
        %v2344 = vadd.f32 %v2038, %v2284
        %v2345 = vadd.f32 %v2039, %v2287
        %v2346 = vadd.f32 %v2040, %v2292
        %v2347 = vadd.f32 %v2041, %v2295
        %v2348 = vadd.f32 %v2042, %v2300
        %v2349 = vadd.f32 %v2043, %v2303
        %v2350 = vadd.f32 %v2044, %v2308
        %v2351 = vadd.f32 %v2045, %v2311
        %v2352 = vadd.f32 %v2046, %v2316
        %v2353 = vadd.f32 %v2047, %v2319
        %v2354 = vld [vmem:[%s856 + $0x2] sm:$0xff]
        %v2355 = vld [vmem:[%s856 + $0xa] sm:$0xff]
        %v2356 = vld [vmem:[%s856 + $0x1a] sm:$0xff]
        %v2357 = vld [vmem:[%s856 + $0x22] sm:$0xff]
        %v2358 = vld [vmem:[%s856 + $0x32] sm:$0xff]
        %v2359 = vld [vmem:[%s856 + $0x3a] sm:$0xff]
        %v2360 = vld [vmem:[%s856 + $0x4a] sm:$0xff]
        %v2361 = vld [vmem:[%s856 + $0x52] sm:$0xff]
        %v2362 = vld [vmem:[%s856 + $0x62] sm:$0xff]
        %v2363 = vld [vmem:[%s856 + $0x6a] sm:$0xff]
        %v2364 = vld [vmem:[%s856 + $0x7a] sm:$0xff]
        %v2365 = vld [vmem:[%s856 + $0x82] sm:$0xff]
        %v2366 = vld [vmem:[%s856 + $0x92] sm:$0xff]
        %v2367 = vld [vmem:[%s856 + $0x9a] sm:$0xff]
        %v2368 = vld [vmem:[%s856 + $0xaa] sm:$0xff]
        %v2369 = vld [vmem:[%s856 + $0xb2] sm:$0xff]
        %v2370 = vld [vmem:[%s856 + $0xc2] sm:$0xff]
        %v2371 = vld [vmem:[%s856 + $0xca] sm:$0xff]
        %v2372 = vld [vmem:[%s856 + $0xda] sm:$0xff]
        %v2373 = vld [vmem:[%s856 + $0xe2] sm:$0xff]
        %v2374 = vld [vmem:[%s856 + $0xf2] sm:$0xff]
        %v2375 = vld [vmem:[%s856 + $0xfa] sm:$0xff]
        %v2376 = vld [vmem:[%s856 + $0x10a] sm:$0xff]
        %v2377 = vld [vmem:[%s856 + $0x112] sm:$0xff]
        %v2378 = vld [vmem:[%s856 + $0x122] sm:$0xff]
        %v2379 = vld [vmem:[%s856 + $0x12a] sm:$0xff]
        %v2380 = vld [vmem:[%s856 + $0x13a] sm:$0xff]
        %v2381 = vld [vmem:[%s856 + $0x142] sm:$0xff]
        %v2382 = vld [vmem:[%s856 + $0x152] sm:$0xff]
        %v2383 = vld [vmem:[%s856 + $0x15a] sm:$0xff]
        %v2384 = vld [vmem:[%s856 + $0x16a] sm:$0xff]
        %v2385 = vld [vmem:[%s856 + $0x172] sm:$0xff]
        %v2386 = vpack.c.bf16 %v2355, %v2354
        %v2387 = vpack.c.bf16 %v2357, %v2356
        %v2388 = vpack.c.bf16 %v2359, %v2358
        %v2389 = vpack.c.bf16 %v2361, %v2360
        %v2390 = vpack.c.bf16 %v2363, %v2362
        %v2391 = vpack.c.bf16 %v2365, %v2364
        %v2392 = vpack.c.bf16 %v2367, %v2366
        %v2393 = vpack.c.bf16 %v2369, %v2368
        %v2394 = vpack.c.bf16 %v2371, %v2370
        %v2395 = vpack.c.bf16 %v2373, %v2372
        %v2396 = vpack.c.bf16 %v2375, %v2374
        %v2397 = vpack.c.bf16 %v2377, %v2376
        %v2398 = vpack.c.bf16 %v2379, %v2378
        %v2399 = vpack.c.bf16 %v2381, %v2380
        %v2400 = vpack.c.bf16 %v2383, %v2382
        %v2401 = vpack.c.bf16 %v2385, %v2384
        %s2402 = scalar_lea.vmem [#allocation8], 320
        %v2403 = vld [vmem:[%s2402] sm:$0xf]
        %v2404 = vld [vmem:[%s2402 + $0x4] sm:$0xf]
        %v2405 = vld [vmem:[%s2402 + $0x8] sm:$0xf]
        %v2406 = vld [vmem:[%s2402 + $0xc] sm:$0xf]
        %v2407 = vld [vmem:[%s2402 + $0x10] sm:$0xf]
        %v2408 = vld [vmem:[%s2402 + $0x14] sm:$0xf]
        %v2409 = vld [vmem:[%s2402 + $0x18] sm:$0xf]
        %v2410 = vld [vmem:[%s2402 + $0x1c] sm:$0xf]
        %v2411 = vld [vmem:[%s2402 + $0x20] sm:$0xf]
        %v2412 = vld [vmem:[%s2402 + $0x24] sm:$0xf]
        %v2413 = vld [vmem:[%s2402 + $0x28] sm:$0xf]
        %v2414 = vld [vmem:[%s2402 + $0x2c] sm:$0xf]
        %v2415 = vld [vmem:[%s2402 + $0x30] sm:$0xf]
        %v2416 = vld [vmem:[%s2402 + $0x34] sm:$0xf]
        %v2417 = vld [vmem:[%s2402 + $0x38] sm:$0xf]
        %v2418 = vld [vmem:[%s2402 + $0x3c] sm:$0xf]
        %v2435 = vunpack.c.l.b16 %v2403
        %v2436 = vunpack.c.l.b16 %v2404
        %v2437 = vunpack.c.l.b16 %v2405
        %v2438 = vunpack.c.l.b16 %v2406
        %v2439 = vunpack.c.l.b16 %v2407
        %v2440 = vunpack.c.l.b16 %v2408
        %v2441 = vunpack.c.l.b16 %v2409
        %v2442 = vunpack.c.l.b16 %v2410
        %v2443 = vunpack.c.l.b16 %v2411
        %v2444 = vunpack.c.l.b16 %v2412
        %v2445 = vunpack.c.l.b16 %v2413
        %v2446 = vunpack.c.l.b16 %v2414
        %v2447 = vunpack.c.l.b16 %v2415
        %v2448 = vunpack.c.l.b16 %v2416
        %v2449 = vunpack.c.l.b16 %v2417
        %v2450 = vunpack.c.l.b16 %v2418
        %v2451 = vpack.c.b16 %v2436, %v2435
        %v2452 = vpack.c.b16 %v2438, %v2437
        %v2453 = vpack.c.b16 %v2440, %v2439
        %v2454 = vpack.c.b16 %v2442, %v2441
        %v2455 = vpack.c.b16 %v2444, %v2443
        %v2456 = vpack.c.b16 %v2446, %v2445
        %v2457 = vpack.c.b16 %v2448, %v2447
        %v2458 = vpack.c.b16 %v2450, %v2449
        %2467 = vmatprep.subr.bf16.mxu0 0
        %2468 = vmatpush1.bf16.msra.mxu0 %v2458
        %2469 = vmatprep.subr.bf16.mxu0 0
        %2470 = vmatpush1.bf16.msra.mxu0 %v2457
        %2471 = vmatprep.subr.bf16.mxu0 0
        %2472 = vmatpush1.bf16.msra.mxu0 %v2456
        %2473 = vmatprep.subr.bf16.mxu0 0
        %2474 = vmatpush1.bf16.msra.mxu0 %v2455
        %2475 = vmatprep.subr.bf16.mxu0 0
        %2476 = vmatpush1.bf16.msra.mxu0 %v2454
        %2477 = vmatprep.subr.bf16.mxu0 0
        %2478 = vmatpush1.bf16.msra.mxu0 %v2453
        %2479 = vmatprep.subr.bf16.mxu0 0
        %2480 = vmatpush1.bf16.msra.mxu0 %v2452
        %2481 = vmatprep.subr.bf16.mxu0 0
        %2482 = vmatpush1.bf16.msra.mxu0 %v2451
        %2483 = vmatprep.subr.bf16.mxu0 0
        %2484 = vmatpush2.bf16.msra.mxu0 0
        %2485 = vmatprep.subr.bf16.mxu0 0
        %2486 = vmatpush2.bf16.msra.mxu0 0
        %2487 = vmatprep.subr.bf16.mxu0 0
        %2488 = vmatpush2.bf16.msra.mxu0 0
        %2489 = vmatprep.subr.bf16.mxu0 0
        %2490 = vmatpush2.bf16.msra.mxu0 0
        %2491 = vmatprep.subr.bf16.mxu0 0
        %2492 = vmatpush2.bf16.msra.mxu0 0
        %2493 = vmatprep.subr.bf16.mxu0 0
        %2494 = vmatpush2.bf16.msra.mxu0 0
        %2495 = vmatprep.subr.bf16.mxu0 0
        %2496 = vmatpush2.bf16.msra.mxu0 0
        %2497 = vmatprep.subr.bf16.mxu0 0
        %2498 = vmatpush2.bf16.msra.mxu0 0
        %2499 = vmatprep.mubr.bf16.mxu0 0
        %2500 = vmatmul.mubr.bf16.gmra.mxu0 %v2386
        %v2501 = vpop.f32.mrf.mxu0
        %v2502 = vadd.f32 0.0, %v2501
        %v2503 = vpop.f32.mrf.mxu0
        %v2504 = vpop.f32.mrf.mxu0
        %v2505 = vadd.f32 0.0, %v2504
        %v2506 = vpop.f32.mrf.mxu0
        %2507 = vmatprep.mubr.bf16.mxu0 0
        %2508 = vmatmul.mubr.bf16.gmra.mxu0 %v2387
        %v2509 = vpop.f32.mrf.mxu0
        %v2510 = vadd.f32 0.0, %v2509
        %v2511 = vpop.f32.mrf.mxu0
        %v2512 = vpop.f32.mrf.mxu0
        %v2513 = vadd.f32 0.0, %v2512
        %v2514 = vpop.f32.mrf.mxu0
        %2515 = vmatprep.mubr.bf16.mxu0 0
        %2516 = vmatmul.mubr.bf16.gmra.mxu0 %v2388
        %v2517 = vpop.f32.mrf.mxu0
        %v2518 = vadd.f32 0.0, %v2517
        %v2519 = vpop.f32.mrf.mxu0
        %v2520 = vpop.f32.mrf.mxu0
        %v2521 = vadd.f32 0.0, %v2520
        %v2522 = vpop.f32.mrf.mxu0
        %2523 = vmatprep.mubr.bf16.mxu0 0
        %2524 = vmatmul.mubr.bf16.gmra.mxu0 %v2389
        %v2525 = vpop.f32.mrf.mxu0
        %v2526 = vadd.f32 0.0, %v2525
        %v2527 = vpop.f32.mrf.mxu0
        %v2528 = vpop.f32.mrf.mxu0
        %v2529 = vadd.f32 0.0, %v2528
        %v2530 = vpop.f32.mrf.mxu0
        %2531 = vmatprep.mubr.bf16.mxu0 0
        %2532 = vmatmul.mubr.bf16.gmra.mxu0 %v2390
        %v2533 = vpop.f32.mrf.mxu0
        %v2534 = vadd.f32 0.0, %v2533
        %v2535 = vpop.f32.mrf.mxu0
        %v2536 = vpop.f32.mrf.mxu0
        %v2537 = vadd.f32 0.0, %v2536
        %v2538 = vpop.f32.mrf.mxu0
        %2539 = vmatprep.mubr.bf16.mxu0 0
        %2540 = vmatmul.mubr.bf16.gmra.mxu0 %v2391
        %v2541 = vpop.f32.mrf.mxu0
        %v2542 = vadd.f32 0.0, %v2541
        %v2543 = vpop.f32.mrf.mxu0
        %v2544 = vpop.f32.mrf.mxu0
        %v2545 = vadd.f32 0.0, %v2544
        %v2546 = vpop.f32.mrf.mxu0
        %2547 = vmatprep.mubr.bf16.mxu0 0
        %2548 = vmatmul.mubr.bf16.gmra.mxu0 %v2392
        %v2549 = vpop.f32.mrf.mxu0
        %v2550 = vadd.f32 0.0, %v2549
        %v2551 = vpop.f32.mrf.mxu0
        %v2552 = vpop.f32.mrf.mxu0
        %v2553 = vadd.f32 0.0, %v2552
        %v2554 = vpop.f32.mrf.mxu0
        %2555 = vmatprep.mubr.bf16.mxu0 0
        %2556 = vmatmul.mubr.bf16.gmra.mxu0 %v2393
        %v2557 = vpop.f32.mrf.mxu0
        %v2558 = vadd.f32 0.0, %v2557
        %v2559 = vpop.f32.mrf.mxu0
        %v2560 = vpop.f32.mrf.mxu0
        %v2561 = vadd.f32 0.0, %v2560
        %v2562 = vpop.f32.mrf.mxu0
        %2563 = vmatprep.mubr.bf16.mxu0 0
        %2564 = vmatmul.mubr.bf16.gmra.mxu0 %v2394
        %v2565 = vpop.f32.mrf.mxu0
        %v2566 = vadd.f32 0.0, %v2565
        %v2567 = vpop.f32.mrf.mxu0
        %v2568 = vpop.f32.mrf.mxu0
        %v2569 = vadd.f32 0.0, %v2568
        %v2570 = vpop.f32.mrf.mxu0
        %2571 = vmatprep.mubr.bf16.mxu0 0
        %2572 = vmatmul.mubr.bf16.gmra.mxu0 %v2395
        %v2573 = vpop.f32.mrf.mxu0
        %v2574 = vadd.f32 0.0, %v2573
        %v2575 = vpop.f32.mrf.mxu0
        %v2576 = vpop.f32.mrf.mxu0
        %v2577 = vadd.f32 0.0, %v2576
        %v2578 = vpop.f32.mrf.mxu0
        %2579 = vmatprep.mubr.bf16.mxu0 0
        %2580 = vmatmul.mubr.bf16.gmra.mxu0 %v2396
        %v2581 = vpop.f32.mrf.mxu0
        %v2582 = vadd.f32 0.0, %v2581
        %v2583 = vpop.f32.mrf.mxu0
        %v2584 = vpop.f32.mrf.mxu0
        %v2585 = vadd.f32 0.0, %v2584
        %v2586 = vpop.f32.mrf.mxu0
        %2587 = vmatprep.mubr.bf16.mxu0 0
        %2588 = vmatmul.mubr.bf16.gmra.mxu0 %v2397
        %v2589 = vpop.f32.mrf.mxu0
        %v2590 = vadd.f32 0.0, %v2589
        %v2591 = vpop.f32.mrf.mxu0
        %v2592 = vpop.f32.mrf.mxu0
        %v2593 = vadd.f32 0.0, %v2592
        %v2594 = vpop.f32.mrf.mxu0
        %2595 = vmatprep.mubr.bf16.mxu0 0
        %2596 = vmatmul.mubr.bf16.gmra.mxu0 %v2398
        %v2597 = vpop.f32.mrf.mxu0
        %v2598 = vadd.f32 0.0, %v2597
        %v2599 = vpop.f32.mrf.mxu0
        %v2600 = vpop.f32.mrf.mxu0
        %v2601 = vadd.f32 0.0, %v2600
        %v2602 = vpop.f32.mrf.mxu0
        %2603 = vmatprep.mubr.bf16.mxu0 0
        %2604 = vmatmul.mubr.bf16.gmra.mxu0 %v2399
        %v2605 = vpop.f32.mrf.mxu0
        %v2606 = vadd.f32 0.0, %v2605
        %v2607 = vpop.f32.mrf.mxu0
        %v2608 = vpop.f32.mrf.mxu0
        %v2609 = vadd.f32 0.0, %v2608
        %v2610 = vpop.f32.mrf.mxu0
        %2611 = vmatprep.mubr.bf16.mxu0 0
        %2612 = vmatmul.mubr.bf16.gmra.mxu0 %v2400
        %v2613 = vpop.f32.mrf.mxu0
        %v2614 = vadd.f32 0.0, %v2613
        %v2615 = vpop.f32.mrf.mxu0
        %v2616 = vpop.f32.mrf.mxu0
        %v2617 = vadd.f32 0.0, %v2616
        %v2618 = vpop.f32.mrf.mxu0
        %2619 = vmatprep.mubr.bf16.mxu0 0
        %2620 = vmatmul.mubr.bf16.gmra.mxu0 %v2401
        %v2621 = vpop.f32.mrf.mxu0
        %v2622 = vadd.f32 0.0, %v2621
        %v2623 = vpop.f32.mrf.mxu0
        %v2624 = vpop.f32.mrf.mxu0
        %v2625 = vadd.f32 0.0, %v2624
        %v2626 = vpop.f32.mrf.mxu0
        %2627 = vdwg.mxu0
        %v2628 = vadd.f32 %v2322, %v2502
        %v2629 = vadd.f32 %v2323, %v2505
        %v2630 = vadd.f32 %v2324, %v2510
        %v2631 = vadd.f32 %v2325, %v2513
        %v2632 = vadd.f32 %v2326, %v2518
        %v2633 = vadd.f32 %v2327, %v2521
        %v2634 = vadd.f32 %v2328, %v2526
        %v2635 = vadd.f32 %v2329, %v2529
        %v2636 = vadd.f32 %v2330, %v2534
        %v2637 = vadd.f32 %v2331, %v2537
        %v2638 = vadd.f32 %v2332, %v2542
        %v2639 = vadd.f32 %v2333, %v2545
        %v2640 = vadd.f32 %v2334, %v2550
        %v2641 = vadd.f32 %v2335, %v2553
        %v2642 = vadd.f32 %v2336, %v2558
        %v2643 = vadd.f32 %v2337, %v2561
        %v2644 = vadd.f32 %v2338, %v2566
        %v2645 = vadd.f32 %v2339, %v2569
        %v2646 = vadd.f32 %v2340, %v2574
        %v2647 = vadd.f32 %v2341, %v2577
        %v2648 = vadd.f32 %v2342, %v2582
        %v2649 = vadd.f32 %v2343, %v2585
        %v2650 = vadd.f32 %v2344, %v2590
        %v2651 = vadd.f32 %v2345, %v2593
        %v2652 = vadd.f32 %v2346, %v2598
        %v2653 = vadd.f32 %v2347, %v2601
        %v2654 = vadd.f32 %v2348, %v2606
        %v2655 = vadd.f32 %v2349, %v2609
        %v2656 = vadd.f32 %v2350, %v2614
        %v2657 = vadd.f32 %v2351, %v2617
        %v2658 = vadd.f32 %v2352, %v2622
        %v2659 = vadd.f32 %v2353, %v2625
        %s2660 = scalar_lea.vmem [#allocation2], 48
        %v2661 = vld [vmem:[%s2660] sm:$0xff]
        %v2662 = vld [vmem:[%s2660 + $0x8] sm:$0xff]
        %v2663 = vld [vmem:[%s2660 + $0x18] sm:$0xff]
        %v2664 = vld [vmem:[%s2660 + $0x20] sm:$0xff]
        %v2665 = vld [vmem:[%s2660 + $0x30] sm:$0xff]
        %v2666 = vld [vmem:[%s2660 + $0x38] sm:$0xff]
        %v2667 = vld [vmem:[%s2660 + $0x48] sm:$0xff]
        %v2668 = vld [vmem:[%s2660 + $0x50] sm:$0xff]
        %v2669 = vld [vmem:[%s2660 + $0x60] sm:$0xff]
        %v2670 = vld [vmem:[%s2660 + $0x68] sm:$0xff]
        %v2671 = vld [vmem:[%s2660 + $0x78] sm:$0xff]
        %v2672 = vld [vmem:[%s2660 + $0x80] sm:$0xff]
        %v2673 = vld [vmem:[%s2660 + $0x90] sm:$0xff]
        %v2674 = vld [vmem:[%s2660 + $0x98] sm:$0xff]
        %v2675 = vld [vmem:[%s2660 + $0xa8] sm:$0xff]
        %v2676 = vld [vmem:[%s2660 + $0xb0] sm:$0xff]
        %v2677 = vld [vmem:[%s2660 + $0xc0] sm:$0xff]
        %v2678 = vld [vmem:[%s2660 + $0xc8] sm:$0xff]
        %v2679 = vld [vmem:[%s2660 + $0xd8] sm:$0xff]
        %v2680 = vld [vmem:[%s2660 + $0xe0] sm:$0xff]
        %v2681 = vld [vmem:[%s2660 + $0xf0] sm:$0xff]
        %v2682 = vld [vmem:[%s2660 + $0xf8] sm:$0xff]
        %v2683 = vld [vmem:[%s2660 + $0x108] sm:$0xff]
        %v2684 = vld [vmem:[%s2660 + $0x110] sm:$0xff]
        %v2685 = vld [vmem:[%s2660 + $0x120] sm:$0xff]
        %v2686 = vld [vmem:[%s2660 + $0x128] sm:$0xff]
        %v2687 = vld [vmem:[%s2660 + $0x138] sm:$0xff]
        %v2688 = vld [vmem:[%s2660 + $0x140] sm:$0xff]
        %v2689 = vld [vmem:[%s2660 + $0x150] sm:$0xff]
        %v2690 = vld [vmem:[%s2660 + $0x158] sm:$0xff]
        %v2691 = vld [vmem:[%s2660 + $0x168] sm:$0xff]
        %v2692 = vld [vmem:[%s2660 + $0x170] sm:$0xff]
        %v2693 = vpack.c.bf16 %v2662, %v2661
        %v2694 = vpack.c.bf16 %v2664, %v2663
        %v2695 = vpack.c.bf16 %v2666, %v2665
        %v2696 = vpack.c.bf16 %v2668, %v2667
        %v2697 = vpack.c.bf16 %v2670, %v2669
        %v2698 = vpack.c.bf16 %v2672, %v2671
        %v2699 = vpack.c.bf16 %v2674, %v2673
        %v2700 = vpack.c.bf16 %v2676, %v2675
        %v2701 = vpack.c.bf16 %v2678, %v2677
        %v2702 = vpack.c.bf16 %v2680, %v2679
        %v2703 = vpack.c.bf16 %v2682, %v2681
        %v2704 = vpack.c.bf16 %v2684, %v2683
        %v2705 = vpack.c.bf16 %v2686, %v2685
        %v2706 = vpack.c.bf16 %v2688, %v2687
        %v2707 = vpack.c.bf16 %v2690, %v2689
        %v2708 = vpack.c.bf16 %v2692, %v2691
        %s2709 = scalar_lea.vmem [#allocation8], 384
        %v2710 = vld [vmem:[%s2709] sm:$0xf]
        %v2711 = vld [vmem:[%s2709 + $0x4] sm:$0xf]
        %v2712 = vld [vmem:[%s2709 + $0x8] sm:$0xf]
        %v2713 = vld [vmem:[%s2709 + $0xc] sm:$0xf]
        %v2714 = vld [vmem:[%s2709 + $0x10] sm:$0xf]
        %v2715 = vld [vmem:[%s2709 + $0x14] sm:$0xf]
        %v2716 = vld [vmem:[%s2709 + $0x18] sm:$0xf]
        %v2717 = vld [vmem:[%s2709 + $0x1c] sm:$0xf]
        %v2718 = vld [vmem:[%s2709 + $0x20] sm:$0xf]
        %v2719 = vld [vmem:[%s2709 + $0x24] sm:$0xf]
        %v2720 = vld [vmem:[%s2709 + $0x28] sm:$0xf]
        %v2721 = vld [vmem:[%s2709 + $0x2c] sm:$0xf]
        %v2722 = vld [vmem:[%s2709 + $0x30] sm:$0xf]
        %v2723 = vld [vmem:[%s2709 + $0x34] sm:$0xf]
        %v2724 = vld [vmem:[%s2709 + $0x38] sm:$0xf]
        %v2725 = vld [vmem:[%s2709 + $0x3c] sm:$0xf]
        %v2742 = vunpack.c.l.b16 %v2710
        %v2743 = vunpack.c.l.b16 %v2711
        %v2744 = vunpack.c.l.b16 %v2712
        %v2745 = vunpack.c.l.b16 %v2713
        %v2746 = vunpack.c.l.b16 %v2714
        %v2747 = vunpack.c.l.b16 %v2715
        %v2748 = vunpack.c.l.b16 %v2716
        %v2749 = vunpack.c.l.b16 %v2717
        %v2750 = vunpack.c.l.b16 %v2718
        %v2751 = vunpack.c.l.b16 %v2719
        %v2752 = vunpack.c.l.b16 %v2720
        %v2753 = vunpack.c.l.b16 %v2721
        %v2754 = vunpack.c.l.b16 %v2722
        %v2755 = vunpack.c.l.b16 %v2723
        %v2756 = vunpack.c.l.b16 %v2724
        %v2757 = vunpack.c.l.b16 %v2725
        %v2758 = vpack.c.b16 %v2743, %v2742
        %v2759 = vpack.c.b16 %v2745, %v2744
        %v2760 = vpack.c.b16 %v2747, %v2746
        %v2761 = vpack.c.b16 %v2749, %v2748
        %v2762 = vpack.c.b16 %v2751, %v2750
        %v2763 = vpack.c.b16 %v2753, %v2752
        %v2764 = vpack.c.b16 %v2755, %v2754
        %v2765 = vpack.c.b16 %v2757, %v2756
        %2774 = vmatprep.subr.bf16.mxu0 0
        %2775 = vmatpush1.bf16.msra.mxu0 %v2765
        %2776 = vmatprep.subr.bf16.mxu0 0
        %2777 = vmatpush1.bf16.msra.mxu0 %v2764
        %2778 = vmatprep.subr.bf16.mxu0 0
        %2779 = vmatpush1.bf16.msra.mxu0 %v2763
        %2780 = vmatprep.subr.bf16.mxu0 0
        %2781 = vmatpush1.bf16.msra.mxu0 %v2762
        %2782 = vmatprep.subr.bf16.mxu0 0
        %2783 = vmatpush1.bf16.msra.mxu0 %v2761
        %2784 = vmatprep.subr.bf16.mxu0 0
        %2785 = vmatpush1.bf16.msra.mxu0 %v2760
        %2786 = vmatprep.subr.bf16.mxu0 0
        %2787 = vmatpush1.bf16.msra.mxu0 %v2759
        %2788 = vmatprep.subr.bf16.mxu0 0
        %2789 = vmatpush1.bf16.msra.mxu0 %v2758
        %2790 = vmatprep.subr.bf16.mxu0 0
        %2791 = vmatpush2.bf16.msra.mxu0 0
        %2792 = vmatprep.subr.bf16.mxu0 0
        %2793 = vmatpush2.bf16.msra.mxu0 0
        %2794 = vmatprep.subr.bf16.mxu0 0
        %2795 = vmatpush2.bf16.msra.mxu0 0
        %2796 = vmatprep.subr.bf16.mxu0 0
        %2797 = vmatpush2.bf16.msra.mxu0 0
        %2798 = vmatprep.subr.bf16.mxu0 0
        %2799 = vmatpush2.bf16.msra.mxu0 0
        %2800 = vmatprep.subr.bf16.mxu0 0
        %2801 = vmatpush2.bf16.msra.mxu0 0
        %2802 = vmatprep.subr.bf16.mxu0 0
        %2803 = vmatpush2.bf16.msra.mxu0 0
        %2804 = vmatprep.subr.bf16.mxu0 0
        %2805 = vmatpush2.bf16.msra.mxu0 0
        %2806 = vmatprep.mubr.bf16.mxu0 0
        %2807 = vmatmul.mubr.bf16.gmra.mxu0 %v2693
        %v2808 = vpop.f32.mrf.mxu0
        %v2809 = vadd.f32 0.0, %v2808
        %v2810 = vpop.f32.mrf.mxu0
        %v2811 = vpop.f32.mrf.mxu0
        %v2812 = vadd.f32 0.0, %v2811
        %v2813 = vpop.f32.mrf.mxu0
        %2814 = vmatprep.mubr.bf16.mxu0 0
        %2815 = vmatmul.mubr.bf16.gmra.mxu0 %v2694
        %v2816 = vpop.f32.mrf.mxu0
        %v2817 = vadd.f32 0.0, %v2816
        %v2818 = vpop.f32.mrf.mxu0
        %v2819 = vpop.f32.mrf.mxu0
        %v2820 = vadd.f32 0.0, %v2819
        %v2821 = vpop.f32.mrf.mxu0
        %2822 = vmatprep.mubr.bf16.mxu0 0
        %2823 = vmatmul.mubr.bf16.gmra.mxu0 %v2695
        %v2824 = vpop.f32.mrf.mxu0
        %v2825 = vadd.f32 0.0, %v2824
        %v2826 = vpop.f32.mrf.mxu0
        %v2827 = vpop.f32.mrf.mxu0
        %v2828 = vadd.f32 0.0, %v2827
        %v2829 = vpop.f32.mrf.mxu0
        %2830 = vmatprep.mubr.bf16.mxu0 0
        %2831 = vmatmul.mubr.bf16.gmra.mxu0 %v2696
        %v2832 = vpop.f32.mrf.mxu0
        %v2833 = vadd.f32 0.0, %v2832
        %v2834 = vpop.f32.mrf.mxu0
        %v2835 = vpop.f32.mrf.mxu0
        %v2836 = vadd.f32 0.0, %v2835
        %v2837 = vpop.f32.mrf.mxu0
        %2838 = vmatprep.mubr.bf16.mxu0 0
        %2839 = vmatmul.mubr.bf16.gmra.mxu0 %v2697
        %v2840 = vpop.f32.mrf.mxu0
        %v2841 = vadd.f32 0.0, %v2840
        %v2842 = vpop.f32.mrf.mxu0
        %v2843 = vpop.f32.mrf.mxu0
        %v2844 = vadd.f32 0.0, %v2843
        %v2845 = vpop.f32.mrf.mxu0
        %2846 = vmatprep.mubr.bf16.mxu0 0
        %2847 = vmatmul.mubr.bf16.gmra.mxu0 %v2698
        %v2848 = vpop.f32.mrf.mxu0
        %v2849 = vadd.f32 0.0, %v2848
        %v2850 = vpop.f32.mrf.mxu0
        %v2851 = vpop.f32.mrf.mxu0
        %v2852 = vadd.f32 0.0, %v2851
        %v2853 = vpop.f32.mrf.mxu0
        %2854 = vmatprep.mubr.bf16.mxu0 0
        %2855 = vmatmul.mubr.bf16.gmra.mxu0 %v2699
        %v2856 = vpop.f32.mrf.mxu0
        %v2857 = vadd.f32 0.0, %v2856
        %v2858 = vpop.f32.mrf.mxu0
        %v2859 = vpop.f32.mrf.mxu0
        %v2860 = vadd.f32 0.0, %v2859
        %v2861 = vpop.f32.mrf.mxu0
        %2862 = vmatprep.mubr.bf16.mxu0 0
        %2863 = vmatmul.mubr.bf16.gmra.mxu0 %v2700
        %v2864 = vpop.f32.mrf.mxu0
        %v2865 = vadd.f32 0.0, %v2864
        %v2866 = vpop.f32.mrf.mxu0
        %v2867 = vpop.f32.mrf.mxu0
        %v2868 = vadd.f32 0.0, %v2867
        %v2869 = vpop.f32.mrf.mxu0
        %2870 = vmatprep.mubr.bf16.mxu0 0
        %2871 = vmatmul.mubr.bf16.gmra.mxu0 %v2701
        %v2872 = vpop.f32.mrf.mxu0
        %v2873 = vadd.f32 0.0, %v2872
        %v2874 = vpop.f32.mrf.mxu0
        %v2875 = vpop.f32.mrf.mxu0
        %v2876 = vadd.f32 0.0, %v2875
        %v2877 = vpop.f32.mrf.mxu0
        %2878 = vmatprep.mubr.bf16.mxu0 0
        %2879 = vmatmul.mubr.bf16.gmra.mxu0 %v2702
        %v2880 = vpop.f32.mrf.mxu0
        %v2881 = vadd.f32 0.0, %v2880
        %v2882 = vpop.f32.mrf.mxu0
        %v2883 = vpop.f32.mrf.mxu0
        %v2884 = vadd.f32 0.0, %v2883
        %v2885 = vpop.f32.mrf.mxu0
        %2886 = vmatprep.mubr.bf16.mxu0 0
        %2887 = vmatmul.mubr.bf16.gmra.mxu0 %v2703
        %v2888 = vpop.f32.mrf.mxu0
        %v2889 = vadd.f32 0.0, %v2888
        %v2890 = vpop.f32.mrf.mxu0
        %v2891 = vpop.f32.mrf.mxu0
        %v2892 = vadd.f32 0.0, %v2891
        %v2893 = vpop.f32.mrf.mxu0
        %2894 = vmatprep.mubr.bf16.mxu0 0
        %2895 = vmatmul.mubr.bf16.gmra.mxu0 %v2704
        %v2896 = vpop.f32.mrf.mxu0
        %v2897 = vadd.f32 0.0, %v2896
        %v2898 = vpop.f32.mrf.mxu0
        %v2899 = vpop.f32.mrf.mxu0
        %v2900 = vadd.f32 0.0, %v2899
        %v2901 = vpop.f32.mrf.mxu0
        %2902 = vmatprep.mubr.bf16.mxu0 0
        %2903 = vmatmul.mubr.bf16.gmra.mxu0 %v2705
        %v2904 = vpop.f32.mrf.mxu0
        %v2905 = vadd.f32 0.0, %v2904
        %v2906 = vpop.f32.mrf.mxu0
        %v2907 = vpop.f32.mrf.mxu0
        %v2908 = vadd.f32 0.0, %v2907
        %v2909 = vpop.f32.mrf.mxu0
        %2910 = vmatprep.mubr.bf16.mxu0 0
        %2911 = vmatmul.mubr.bf16.gmra.mxu0 %v2706
        %v2912 = vpop.f32.mrf.mxu0
        %v2913 = vadd.f32 0.0, %v2912
        %v2914 = vpop.f32.mrf.mxu0
        %v2915 = vpop.f32.mrf.mxu0
        %v2916 = vadd.f32 0.0, %v2915
        %v2917 = vpop.f32.mrf.mxu0
        %2918 = vmatprep.mubr.bf16.mxu0 0
        %2919 = vmatmul.mubr.bf16.gmra.mxu0 %v2707
        %v2920 = vpop.f32.mrf.mxu0
        %v2921 = vadd.f32 0.0, %v2920
        %v2922 = vpop.f32.mrf.mxu0
        %v2923 = vpop.f32.mrf.mxu0
        %v2924 = vadd.f32 0.0, %v2923
        %v2925 = vpop.f32.mrf.mxu0
        %2926 = vmatprep.mubr.bf16.mxu0 0
        %2927 = vmatmul.mubr.bf16.gmra.mxu0 %v2708
        %v2928 = vpop.f32.mrf.mxu0
        %v2929 = vadd.f32 0.0, %v2928
        %v2930 = vpop.f32.mrf.mxu0
        %v2931 = vpop.f32.mrf.mxu0
        %v2932 = vadd.f32 0.0, %v2931
        %v2933 = vpop.f32.mrf.mxu0
        %2934 = vdwg.mxu0
        %v2935 = vadd.f32 %v2628, %v2809
        %v2936 = vadd.f32 %v2629, %v2812
        %v2937 = vadd.f32 %v2630, %v2817
        %v2938 = vadd.f32 %v2631, %v2820
        %v2939 = vadd.f32 %v2632, %v2825
        %v2940 = vadd.f32 %v2633, %v2828
        %v2941 = vadd.f32 %v2634, %v2833
        %v2942 = vadd.f32 %v2635, %v2836
        %v2943 = vadd.f32 %v2636, %v2841
        %v2944 = vadd.f32 %v2637, %v2844
        %v2945 = vadd.f32 %v2638, %v2849
        %v2946 = vadd.f32 %v2639, %v2852
        %v2947 = vadd.f32 %v2640, %v2857
        %v2948 = vadd.f32 %v2641, %v2860
        %v2949 = vadd.f32 %v2642, %v2865
        %v2950 = vadd.f32 %v2643, %v2868
        %v2951 = vadd.f32 %v2644, %v2873
        %v2952 = vadd.f32 %v2645, %v2876
        %v2953 = vadd.f32 %v2646, %v2881
        %v2954 = vadd.f32 %v2647, %v2884
        %v2955 = vadd.f32 %v2648, %v2889
        %v2956 = vadd.f32 %v2649, %v2892
        %v2957 = vadd.f32 %v2650, %v2897
        %v2958 = vadd.f32 %v2651, %v2900
        %v2959 = vadd.f32 %v2652, %v2905
        %v2960 = vadd.f32 %v2653, %v2908
        %v2961 = vadd.f32 %v2654, %v2913
        %v2962 = vadd.f32 %v2655, %v2916
        %v2963 = vadd.f32 %v2656, %v2921
        %v2964 = vadd.f32 %v2657, %v2924
        %v2965 = vadd.f32 %v2658, %v2929
        %v2966 = vadd.f32 %v2659, %v2932
        %v2967 = vld [vmem:[%s2660 + $0x1] sm:$0xff]
        %v2968 = vld [vmem:[%s2660 + $0x9] sm:$0xff]
        %v2969 = vld [vmem:[%s2660 + $0x19] sm:$0xff]
        %v2970 = vld [vmem:[%s2660 + $0x21] sm:$0xff]
        %v2971 = vld [vmem:[%s2660 + $0x31] sm:$0xff]
        %v2972 = vld [vmem:[%s2660 + $0x39] sm:$0xff]
        %v2973 = vld [vmem:[%s2660 + $0x49] sm:$0xff]
        %v2974 = vld [vmem:[%s2660 + $0x51] sm:$0xff]
        %v2975 = vld [vmem:[%s2660 + $0x61] sm:$0xff]
        %v2976 = vld [vmem:[%s2660 + $0x69] sm:$0xff]
        %v2977 = vld [vmem:[%s2660 + $0x79] sm:$0xff]
        %v2978 = vld [vmem:[%s2660 + $0x81] sm:$0xff]
        %v2979 = vld [vmem:[%s2660 + $0x91] sm:$0xff]
        %v2980 = vld [vmem:[%s2660 + $0x99] sm:$0xff]
        %v2981 = vld [vmem:[%s2660 + $0xa9] sm:$0xff]
        %v2982 = vld [vmem:[%s2660 + $0xb1] sm:$0xff]
        %v2983 = vld [vmem:[%s2660 + $0xc1] sm:$0xff]
        %v2984 = vld [vmem:[%s2660 + $0xc9] sm:$0xff]
        %v2985 = vld [vmem:[%s2660 + $0xd9] sm:$0xff]
        %v2986 = vld [vmem:[%s2660 + $0xe1] sm:$0xff]
        %v2987 = vld [vmem:[%s2660 + $0xf1] sm:$0xff]
        %v2988 = vld [vmem:[%s2660 + $0xf9] sm:$0xff]
        %v2989 = vld [vmem:[%s2660 + $0x109] sm:$0xff]
        %v2990 = vld [vmem:[%s2660 + $0x111] sm:$0xff]
        %v2991 = vld [vmem:[%s2660 + $0x121] sm:$0xff]
        %v2992 = vld [vmem:[%s2660 + $0x129] sm:$0xff]
        %v2993 = vld [vmem:[%s2660 + $0x139] sm:$0xff]
        %v2994 = vld [vmem:[%s2660 + $0x141] sm:$0xff]
        %v2995 = vld [vmem:[%s2660 + $0x151] sm:$0xff]
        %v2996 = vld [vmem:[%s2660 + $0x159] sm:$0xff]
        %v2997 = vld [vmem:[%s2660 + $0x169] sm:$0xff]
        %v2998 = vld [vmem:[%s2660 + $0x171] sm:$0xff]
        %v2999 = vpack.c.bf16 %v2968, %v2967
        %v3000 = vpack.c.bf16 %v2970, %v2969
        %v3001 = vpack.c.bf16 %v2972, %v2971
        %v3002 = vpack.c.bf16 %v2974, %v2973
        %v3003 = vpack.c.bf16 %v2976, %v2975
        %v3004 = vpack.c.bf16 %v2978, %v2977
        %v3005 = vpack.c.bf16 %v2980, %v2979
        %v3006 = vpack.c.bf16 %v2982, %v2981
        %v3007 = vpack.c.bf16 %v2984, %v2983
        %v3008 = vpack.c.bf16 %v2986, %v2985
        %v3009 = vpack.c.bf16 %v2988, %v2987
        %v3010 = vpack.c.bf16 %v2990, %v2989
        %v3011 = vpack.c.bf16 %v2992, %v2991
        %v3012 = vpack.c.bf16 %v2994, %v2993
        %v3013 = vpack.c.bf16 %v2996, %v2995
        %v3014 = vpack.c.bf16 %v2998, %v2997
        %s3015 = scalar_lea.vmem [#allocation8], 448
        %v3016 = vld [vmem:[%s3015] sm:$0xf]
        %v3017 = vld [vmem:[%s3015 + $0x4] sm:$0xf]
        %v3018 = vld [vmem:[%s3015 + $0x8] sm:$0xf]
        %v3019 = vld [vmem:[%s3015 + $0xc] sm:$0xf]
        %v3020 = vld [vmem:[%s3015 + $0x10] sm:$0xf]
        %v3021 = vld [vmem:[%s3015 + $0x14] sm:$0xf]
        %v3022 = vld [vmem:[%s3015 + $0x18] sm:$0xf]
        %v3023 = vld [vmem:[%s3015 + $0x1c] sm:$0xf]
        %v3024 = vld [vmem:[%s3015 + $0x20] sm:$0xf]
        %v3025 = vld [vmem:[%s3015 + $0x24] sm:$0xf]
        %v3026 = vld [vmem:[%s3015 + $0x28] sm:$0xf]
        %v3027 = vld [vmem:[%s3015 + $0x2c] sm:$0xf]
        %v3028 = vld [vmem:[%s3015 + $0x30] sm:$0xf]
        %v3029 = vld [vmem:[%s3015 + $0x34] sm:$0xf]
        %v3030 = vld [vmem:[%s3015 + $0x38] sm:$0xf]
        %v3031 = vld [vmem:[%s3015 + $0x3c] sm:$0xf]
        %v3048 = vunpack.c.l.b16 %v3016
        %v3049 = vunpack.c.l.b16 %v3017
        %v3050 = vunpack.c.l.b16 %v3018
        %v3051 = vunpack.c.l.b16 %v3019
        %v3052 = vunpack.c.l.b16 %v3020
        %v3053 = vunpack.c.l.b16 %v3021
        %v3054 = vunpack.c.l.b16 %v3022
        %v3055 = vunpack.c.l.b16 %v3023
        %v3056 = vunpack.c.l.b16 %v3024
        %v3057 = vunpack.c.l.b16 %v3025
        %v3058 = vunpack.c.l.b16 %v3026
        %v3059 = vunpack.c.l.b16 %v3027
        %v3060 = vunpack.c.l.b16 %v3028
        %v3061 = vunpack.c.l.b16 %v3029
        %v3062 = vunpack.c.l.b16 %v3030
        %v3063 = vunpack.c.l.b16 %v3031
        %v3064 = vpack.c.b16 %v3049, %v3048
        %v3065 = vpack.c.b16 %v3051, %v3050
        %v3066 = vpack.c.b16 %v3053, %v3052
        %v3067 = vpack.c.b16 %v3055, %v3054
        %v3068 = vpack.c.b16 %v3057, %v3056
        %v3069 = vpack.c.b16 %v3059, %v3058
        %v3070 = vpack.c.b16 %v3061, %v3060
        %v3071 = vpack.c.b16 %v3063, %v3062
        %3080 = vmatprep.subr.bf16.mxu0 0
        %3081 = vmatpush1.bf16.msra.mxu0 %v3071
        %3082 = vmatprep.subr.bf16.mxu0 0
        %3083 = vmatpush1.bf16.msra.mxu0 %v3070
        %3084 = vmatprep.subr.bf16.mxu0 0
        %3085 = vmatpush1.bf16.msra.mxu0 %v3069
        %3086 = vmatprep.subr.bf16.mxu0 0
        %3087 = vmatpush1.bf16.msra.mxu0 %v3068
        %3088 = vmatprep.subr.bf16.mxu0 0
        %3089 = vmatpush1.bf16.msra.mxu0 %v3067
        %3090 = vmatprep.subr.bf16.mxu0 0
        %3091 = vmatpush1.bf16.msra.mxu0 %v3066
        %3092 = vmatprep.subr.bf16.mxu0 0
        %3093 = vmatpush1.bf16.msra.mxu0 %v3065
        %3094 = vmatprep.subr.bf16.mxu0 0
        %3095 = vmatpush1.bf16.msra.mxu0 %v3064
        %3096 = vmatprep.subr.bf16.mxu0 0
        %3097 = vmatpush2.bf16.msra.mxu0 0
        %3098 = vmatprep.subr.bf16.mxu0 0
        %3099 = vmatpush2.bf16.msra.mxu0 0
        %3100 = vmatprep.subr.bf16.mxu0 0
        %3101 = vmatpush2.bf16.msra.mxu0 0
        %3102 = vmatprep.subr.bf16.mxu0 0
        %3103 = vmatpush2.bf16.msra.mxu0 0
        %3104 = vmatprep.subr.bf16.mxu0 0
        %3105 = vmatpush2.bf16.msra.mxu0 0
        %3106 = vmatprep.subr.bf16.mxu0 0
        %3107 = vmatpush2.bf16.msra.mxu0 0
        %3108 = vmatprep.subr.bf16.mxu0 0
        %3109 = vmatpush2.bf16.msra.mxu0 0
        %3110 = vmatprep.subr.bf16.mxu0 0
        %3111 = vmatpush2.bf16.msra.mxu0 0
        %3112 = vmatprep.mubr.bf16.mxu0 0
        %3113 = vmatmul.mubr.bf16.gmra.mxu0 %v2999
        %v3114 = vpop.f32.mrf.mxu0
        %v3115 = vadd.f32 0.0, %v3114
        %v3116 = vpop.f32.mrf.mxu0
        %v3117 = vpop.f32.mrf.mxu0
        %v3118 = vadd.f32 0.0, %v3117
        %v3119 = vpop.f32.mrf.mxu0
        %3120 = vmatprep.mubr.bf16.mxu0 0
        %3121 = vmatmul.mubr.bf16.gmra.mxu0 %v3000
        %v3122 = vpop.f32.mrf.mxu0
        %v3123 = vadd.f32 0.0, %v3122
        %v3124 = vpop.f32.mrf.mxu0
        %v3125 = vpop.f32.mrf.mxu0
        %v3126 = vadd.f32 0.0, %v3125
        %v3127 = vpop.f32.mrf.mxu0
        %3128 = vmatprep.mubr.bf16.mxu0 0
        %3129 = vmatmul.mubr.bf16.gmra.mxu0 %v3001
        %v3130 = vpop.f32.mrf.mxu0
        %v3131 = vadd.f32 0.0, %v3130
        %v3132 = vpop.f32.mrf.mxu0
        %v3133 = vpop.f32.mrf.mxu0
        %v3134 = vadd.f32 0.0, %v3133
        %v3135 = vpop.f32.mrf.mxu0
        %3136 = vmatprep.mubr.bf16.mxu0 0
        %3137 = vmatmul.mubr.bf16.gmra.mxu0 %v3002
        %v3138 = vpop.f32.mrf.mxu0
        %v3139 = vadd.f32 0.0, %v3138
        %v3140 = vpop.f32.mrf.mxu0
        %v3141 = vpop.f32.mrf.mxu0
        %v3142 = vadd.f32 0.0, %v3141
        %v3143 = vpop.f32.mrf.mxu0
        %3144 = vmatprep.mubr.bf16.mxu0 0
        %3145 = vmatmul.mubr.bf16.gmra.mxu0 %v3003
        %v3146 = vpop.f32.mrf.mxu0
        %v3147 = vadd.f32 0.0, %v3146
        %v3148 = vpop.f32.mrf.mxu0
        %v3149 = vpop.f32.mrf.mxu0
        %v3150 = vadd.f32 0.0, %v3149
        %v3151 = vpop.f32.mrf.mxu0
        %3152 = vmatprep.mubr.bf16.mxu0 0
        %3153 = vmatmul.mubr.bf16.gmra.mxu0 %v3004
        %v3154 = vpop.f32.mrf.mxu0
        %v3155 = vadd.f32 0.0, %v3154
        %v3156 = vpop.f32.mrf.mxu0
        %v3157 = vpop.f32.mrf.mxu0
        %v3158 = vadd.f32 0.0, %v3157
        %v3159 = vpop.f32.mrf.mxu0
        %3160 = vmatprep.mubr.bf16.mxu0 0
        %3161 = vmatmul.mubr.bf16.gmra.mxu0 %v3005
        %v3162 = vpop.f32.mrf.mxu0
        %v3163 = vadd.f32 0.0, %v3162
        %v3164 = vpop.f32.mrf.mxu0
        %v3165 = vpop.f32.mrf.mxu0
        %v3166 = vadd.f32 0.0, %v3165
        %v3167 = vpop.f32.mrf.mxu0
        %3168 = vmatprep.mubr.bf16.mxu0 0
        %3169 = vmatmul.mubr.bf16.gmra.mxu0 %v3006
        %v3170 = vpop.f32.mrf.mxu0
        %v3171 = vadd.f32 0.0, %v3170
        %v3172 = vpop.f32.mrf.mxu0
        %v3173 = vpop.f32.mrf.mxu0
        %v3174 = vadd.f32 0.0, %v3173
        %v3175 = vpop.f32.mrf.mxu0
        %3176 = vmatprep.mubr.bf16.mxu0 0
        %3177 = vmatmul.mubr.bf16.gmra.mxu0 %v3007
        %v3178 = vpop.f32.mrf.mxu0
        %v3179 = vadd.f32 0.0, %v3178
        %v3180 = vpop.f32.mrf.mxu0
        %v3181 = vpop.f32.mrf.mxu0
        %v3182 = vadd.f32 0.0, %v3181
        %v3183 = vpop.f32.mrf.mxu0
        %3184 = vmatprep.mubr.bf16.mxu0 0
        %3185 = vmatmul.mubr.bf16.gmra.mxu0 %v3008
        %v3186 = vpop.f32.mrf.mxu0
        %v3187 = vadd.f32 0.0, %v3186
        %v3188 = vpop.f32.mrf.mxu0
        %v3189 = vpop.f32.mrf.mxu0
        %v3190 = vadd.f32 0.0, %v3189
        %v3191 = vpop.f32.mrf.mxu0
        %3192 = vmatprep.mubr.bf16.mxu0 0
        %3193 = vmatmul.mubr.bf16.gmra.mxu0 %v3009
        %v3194 = vpop.f32.mrf.mxu0
        %v3195 = vadd.f32 0.0, %v3194
        %v3196 = vpop.f32.mrf.mxu0
        %v3197 = vpop.f32.mrf.mxu0
        %v3198 = vadd.f32 0.0, %v3197
        %v3199 = vpop.f32.mrf.mxu0
        %3200 = vmatprep.mubr.bf16.mxu0 0
        %3201 = vmatmul.mubr.bf16.gmra.mxu0 %v3010
        %v3202 = vpop.f32.mrf.mxu0
        %v3203 = vadd.f32 0.0, %v3202
        %v3204 = vpop.f32.mrf.mxu0
        %v3205 = vpop.f32.mrf.mxu0
        %v3206 = vadd.f32 0.0, %v3205
        %v3207 = vpop.f32.mrf.mxu0
        %3208 = vmatprep.mubr.bf16.mxu0 0
        %3209 = vmatmul.mubr.bf16.gmra.mxu0 %v3011
        %v3210 = vpop.f32.mrf.mxu0
        %v3211 = vadd.f32 0.0, %v3210
        %v3212 = vpop.f32.mrf.mxu0
        %v3213 = vpop.f32.mrf.mxu0
        %v3214 = vadd.f32 0.0, %v3213
        %v3215 = vpop.f32.mrf.mxu0
        %3216 = vmatprep.mubr.bf16.mxu0 0
        %3217 = vmatmul.mubr.bf16.gmra.mxu0 %v3012
        %v3218 = vpop.f32.mrf.mxu0
        %v3219 = vadd.f32 0.0, %v3218
        %v3220 = vpop.f32.mrf.mxu0
        %v3221 = vpop.f32.mrf.mxu0
        %v3222 = vadd.f32 0.0, %v3221
        %v3223 = vpop.f32.mrf.mxu0
        %3224 = vmatprep.mubr.bf16.mxu0 0
        %3225 = vmatmul.mubr.bf16.gmra.mxu0 %v3013
        %v3226 = vpop.f32.mrf.mxu0
        %v3227 = vadd.f32 0.0, %v3226
        %v3228 = vpop.f32.mrf.mxu0
        %v3229 = vpop.f32.mrf.mxu0
        %v3230 = vadd.f32 0.0, %v3229
        %v3231 = vpop.f32.mrf.mxu0
        %3232 = vmatprep.mubr.bf16.mxu0 0
        %3233 = vmatmul.mubr.bf16.gmra.mxu0 %v3014
        %v3234 = vpop.f32.mrf.mxu0
        %v3235 = vadd.f32 0.0, %v3234
        %v3236 = vpop.f32.mrf.mxu0
        %v3237 = vpop.f32.mrf.mxu0
        %v3238 = vadd.f32 0.0, %v3237
        %v3239 = vpop.f32.mrf.mxu0
        %3240 = vdwg.mxu0
        %v3241 = vadd.f32 %v2935, %v3115
        %v3242 = vadd.f32 %v2936, %v3118
        %v3243 = vadd.f32 %v2937, %v3123
        %v3244 = vadd.f32 %v2938, %v3126
        %v3245 = vadd.f32 %v2939, %v3131
        %v3246 = vadd.f32 %v2940, %v3134
        %v3247 = vadd.f32 %v2941, %v3139
        %v3248 = vadd.f32 %v2942, %v3142
        %v3249 = vadd.f32 %v2943, %v3147
        %v3250 = vadd.f32 %v2944, %v3150
        %v3251 = vadd.f32 %v2945, %v3155
        %v3252 = vadd.f32 %v2946, %v3158
        %v3253 = vadd.f32 %v2947, %v3163
        %v3254 = vadd.f32 %v2948, %v3166
        %v3255 = vadd.f32 %v2949, %v3171
        %v3256 = vadd.f32 %v2950, %v3174
        %v3257 = vadd.f32 %v2951, %v3179
        %v3258 = vadd.f32 %v2952, %v3182
        %v3259 = vadd.f32 %v2953, %v3187
        %v3260 = vadd.f32 %v2954, %v3190
        %v3261 = vadd.f32 %v2955, %v3195
        %v3262 = vadd.f32 %v2956, %v3198
        %v3263 = vadd.f32 %v2957, %v3203
        %v3264 = vadd.f32 %v2958, %v3206
        %v3265 = vadd.f32 %v2959, %v3211
        %v3266 = vadd.f32 %v2960, %v3214
        %v3267 = vadd.f32 %v2961, %v3219
        %v3268 = vadd.f32 %v2962, %v3222
        %v3269 = vadd.f32 %v2963, %v3227
        %v3270 = vadd.f32 %v2964, %v3230
        %v3271 = vadd.f32 %v2965, %v3235
        %v3272 = vadd.f32 %v2966, %v3238
        %v3273 = vld [vmem:[%s2660 + $0x2] sm:$0xff]
        %v3274 = vld [vmem:[%s2660 + $0xa] sm:$0xff]
        %v3275 = vld [vmem:[%s2660 + $0x1a] sm:$0xff]
        %v3276 = vld [vmem:[%s2660 + $0x22] sm:$0xff]
        %v3277 = vld [vmem:[%s2660 + $0x32] sm:$0xff]
        %v3278 = vld [vmem:[%s2660 + $0x3a] sm:$0xff]
        %v3279 = vld [vmem:[%s2660 + $0x4a] sm:$0xff]
        %v3280 = vld [vmem:[%s2660 + $0x52] sm:$0xff]
        %v3281 = vld [vmem:[%s2660 + $0x62] sm:$0xff]
        %v3282 = vld [vmem:[%s2660 + $0x6a] sm:$0xff]
        %v3283 = vld [vmem:[%s2660 + $0x7a] sm:$0xff]
        %v3284 = vld [vmem:[%s2660 + $0x82] sm:$0xff]
        %v3285 = vld [vmem:[%s2660 + $0x92] sm:$0xff]
        %v3286 = vld [vmem:[%s2660 + $0x9a] sm:$0xff]
        %v3287 = vld [vmem:[%s2660 + $0xaa] sm:$0xff]
        %v3288 = vld [vmem:[%s2660 + $0xb2] sm:$0xff]
        %v3289 = vld [vmem:[%s2660 + $0xc2] sm:$0xff]
        %v3290 = vld [vmem:[%s2660 + $0xca] sm:$0xff]
        %v3291 = vld [vmem:[%s2660 + $0xda] sm:$0xff]
        %v3292 = vld [vmem:[%s2660 + $0xe2] sm:$0xff]
        %v3293 = vld [vmem:[%s2660 + $0xf2] sm:$0xff]
        %v3294 = vld [vmem:[%s2660 + $0xfa] sm:$0xff]
        %v3295 = vld [vmem:[%s2660 + $0x10a] sm:$0xff]
        %v3296 = vld [vmem:[%s2660 + $0x112] sm:$0xff]
        %v3297 = vld [vmem:[%s2660 + $0x122] sm:$0xff]
        %v3298 = vld [vmem:[%s2660 + $0x12a] sm:$0xff]
        %v3299 = vld [vmem:[%s2660 + $0x13a] sm:$0xff]
        %v3300 = vld [vmem:[%s2660 + $0x142] sm:$0xff]
        %v3301 = vld [vmem:[%s2660 + $0x152] sm:$0xff]
        %v3302 = vld [vmem:[%s2660 + $0x15a] sm:$0xff]
        %v3303 = vld [vmem:[%s2660 + $0x16a] sm:$0xff]
        %v3304 = vld [vmem:[%s2660 + $0x172] sm:$0xff]
        %v3305 = vpack.c.bf16 %v3274, %v3273
        %v3306 = vpack.c.bf16 %v3276, %v3275
        %v3307 = vpack.c.bf16 %v3278, %v3277
        %v3308 = vpack.c.bf16 %v3280, %v3279
        %v3309 = vpack.c.bf16 %v3282, %v3281
        %v3310 = vpack.c.bf16 %v3284, %v3283
        %v3311 = vpack.c.bf16 %v3286, %v3285
        %v3312 = vpack.c.bf16 %v3288, %v3287
        %v3313 = vpack.c.bf16 %v3290, %v3289
        %v3314 = vpack.c.bf16 %v3292, %v3291
        %v3315 = vpack.c.bf16 %v3294, %v3293
        %v3316 = vpack.c.bf16 %v3296, %v3295
        %v3317 = vpack.c.bf16 %v3298, %v3297
        %v3318 = vpack.c.bf16 %v3300, %v3299
        %v3319 = vpack.c.bf16 %v3302, %v3301
        %v3320 = vpack.c.bf16 %v3304, %v3303
        %s3321 = scalar_lea.vmem [#allocation8], 512
        %v3322 = vld [vmem:[%s3321] sm:$0xf]
        %v3323 = vld [vmem:[%s3321 + $0x4] sm:$0xf]
        %v3324 = vld [vmem:[%s3321 + $0x8] sm:$0xf]
        %v3325 = vld [vmem:[%s3321 + $0xc] sm:$0xf]
        %v3326 = vld [vmem:[%s3321 + $0x10] sm:$0xf]
        %v3327 = vld [vmem:[%s3321 + $0x14] sm:$0xf]
        %v3328 = vld [vmem:[%s3321 + $0x18] sm:$0xf]
        %v3329 = vld [vmem:[%s3321 + $0x1c] sm:$0xf]
        %v3330 = vld [vmem:[%s3321 + $0x20] sm:$0xf]
        %v3331 = vld [vmem:[%s3321 + $0x24] sm:$0xf]
        %v3332 = vld [vmem:[%s3321 + $0x28] sm:$0xf]
        %v3333 = vld [vmem:[%s3321 + $0x2c] sm:$0xf]
        %v3334 = vld [vmem:[%s3321 + $0x30] sm:$0xf]
        %v3335 = vld [vmem:[%s3321 + $0x34] sm:$0xf]
        %v3336 = vld [vmem:[%s3321 + $0x38] sm:$0xf]
        %v3337 = vld [vmem:[%s3321 + $0x3c] sm:$0xf]
        %v3354 = vunpack.c.l.b16 %v3322
        %v3355 = vunpack.c.l.b16 %v3323
        %v3356 = vunpack.c.l.b16 %v3324
        %v3357 = vunpack.c.l.b16 %v3325
        %v3358 = vunpack.c.l.b16 %v3326
        %v3359 = vunpack.c.l.b16 %v3327
        %v3360 = vunpack.c.l.b16 %v3328
        %v3361 = vunpack.c.l.b16 %v3329
        %v3362 = vunpack.c.l.b16 %v3330
        %v3363 = vunpack.c.l.b16 %v3331
        %v3364 = vunpack.c.l.b16 %v3332
        %v3365 = vunpack.c.l.b16 %v3333
        %v3366 = vunpack.c.l.b16 %v3334
        %v3367 = vunpack.c.l.b16 %v3335
        %v3368 = vunpack.c.l.b16 %v3336
        %v3369 = vunpack.c.l.b16 %v3337
        %v3370 = vpack.c.b16 %v3355, %v3354
        %v3371 = vpack.c.b16 %v3357, %v3356
        %v3372 = vpack.c.b16 %v3359, %v3358
        %v3373 = vpack.c.b16 %v3361, %v3360
        %v3374 = vpack.c.b16 %v3363, %v3362
        %v3375 = vpack.c.b16 %v3365, %v3364
        %v3376 = vpack.c.b16 %v3367, %v3366
        %v3377 = vpack.c.b16 %v3369, %v3368
        %3386 = vmatprep.subr.bf16.mxu0 0
        %3387 = vmatpush1.bf16.msra.mxu0 %v3377
        %3388 = vmatprep.subr.bf16.mxu0 0
        %3389 = vmatpush1.bf16.msra.mxu0 %v3376
        %3390 = vmatprep.subr.bf16.mxu0 0
        %3391 = vmatpush1.bf16.msra.mxu0 %v3375
        %3392 = vmatprep.subr.bf16.mxu0 0
        %3393 = vmatpush1.bf16.msra.mxu0 %v3374
        %3394 = vmatprep.subr.bf16.mxu0 0
        %3395 = vmatpush1.bf16.msra.mxu0 %v3373
        %3396 = vmatprep.subr.bf16.mxu0 0
        %3397 = vmatpush1.bf16.msra.mxu0 %v3372
        %3398 = vmatprep.subr.bf16.mxu0 0
        %3399 = vmatpush1.bf16.msra.mxu0 %v3371
        %3400 = vmatprep.subr.bf16.mxu0 0
        %3401 = vmatpush1.bf16.msra.mxu0 %v3370
        %3402 = vmatprep.subr.bf16.mxu0 0
        %3403 = vmatpush2.bf16.msra.mxu0 0
        %3404 = vmatprep.subr.bf16.mxu0 0
        %3405 = vmatpush2.bf16.msra.mxu0 0
        %3406 = vmatprep.subr.bf16.mxu0 0
        %3407 = vmatpush2.bf16.msra.mxu0 0
        %3408 = vmatprep.subr.bf16.mxu0 0
        %3409 = vmatpush2.bf16.msra.mxu0 0
        %3410 = vmatprep.subr.bf16.mxu0 0
        %3411 = vmatpush2.bf16.msra.mxu0 0
        %3412 = vmatprep.subr.bf16.mxu0 0
        %3413 = vmatpush2.bf16.msra.mxu0 0
        %3414 = vmatprep.subr.bf16.mxu0 0
        %3415 = vmatpush2.bf16.msra.mxu0 0
        %3416 = vmatprep.subr.bf16.mxu0 0
        %3417 = vmatpush2.bf16.msra.mxu0 0
        %3418 = vmatprep.mubr.bf16.mxu0 0
        %3419 = vmatmul.mubr.bf16.gmra.mxu0 %v3305
        %v3420 = vpop.f32.mrf.mxu0
        %v3421 = vadd.f32 0.0, %v3420
        %v3422 = vpop.f32.mrf.mxu0
        %v3423 = vpop.f32.mrf.mxu0
        %v3424 = vadd.f32 0.0, %v3423
        %v3425 = vpop.f32.mrf.mxu0
        %3426 = vmatprep.mubr.bf16.mxu0 0
        %3427 = vmatmul.mubr.bf16.gmra.mxu0 %v3306
        %v3428 = vpop.f32.mrf.mxu0
        %v3429 = vadd.f32 0.0, %v3428
        %v3430 = vpop.f32.mrf.mxu0
        %v3431 = vpop.f32.mrf.mxu0
        %v3432 = vadd.f32 0.0, %v3431
        %v3433 = vpop.f32.mrf.mxu0
        %3434 = vmatprep.mubr.bf16.mxu0 0
        %3435 = vmatmul.mubr.bf16.gmra.mxu0 %v3307
        %v3436 = vpop.f32.mrf.mxu0
        %v3437 = vadd.f32 0.0, %v3436
        %v3438 = vpop.f32.mrf.mxu0
        %v3439 = vpop.f32.mrf.mxu0
        %v3440 = vadd.f32 0.0, %v3439
        %v3441 = vpop.f32.mrf.mxu0
        %3442 = vmatprep.mubr.bf16.mxu0 0
        %3443 = vmatmul.mubr.bf16.gmra.mxu0 %v3308
        %v3444 = vpop.f32.mrf.mxu0
        %v3445 = vadd.f32 0.0, %v3444
        %v3446 = vpop.f32.mrf.mxu0
        %v3447 = vpop.f32.mrf.mxu0
        %v3448 = vadd.f32 0.0, %v3447
        %v3449 = vpop.f32.mrf.mxu0
        %3450 = vmatprep.mubr.bf16.mxu0 0
        %3451 = vmatmul.mubr.bf16.gmra.mxu0 %v3309
        %v3452 = vpop.f32.mrf.mxu0
        %v3453 = vadd.f32 0.0, %v3452
        %v3454 = vpop.f32.mrf.mxu0
        %v3455 = vpop.f32.mrf.mxu0
        %v3456 = vadd.f32 0.0, %v3455
        %v3457 = vpop.f32.mrf.mxu0
        %3458 = vmatprep.mubr.bf16.mxu0 0
        %3459 = vmatmul.mubr.bf16.gmra.mxu0 %v3310
        %v3460 = vpop.f32.mrf.mxu0
        %v3461 = vadd.f32 0.0, %v3460
        %v3462 = vpop.f32.mrf.mxu0
        %v3463 = vpop.f32.mrf.mxu0
        %v3464 = vadd.f32 0.0, %v3463
        %v3465 = vpop.f32.mrf.mxu0
        %3466 = vmatprep.mubr.bf16.mxu0 0
        %3467 = vmatmul.mubr.bf16.gmra.mxu0 %v3311
        %v3468 = vpop.f32.mrf.mxu0
        %v3469 = vadd.f32 0.0, %v3468
        %v3470 = vpop.f32.mrf.mxu0
        %v3471 = vpop.f32.mrf.mxu0
        %v3472 = vadd.f32 0.0, %v3471
        %v3473 = vpop.f32.mrf.mxu0
        %3474 = vmatprep.mubr.bf16.mxu0 0
        %3475 = vmatmul.mubr.bf16.gmra.mxu0 %v3312
        %v3476 = vpop.f32.mrf.mxu0
        %v3477 = vadd.f32 0.0, %v3476
        %v3478 = vpop.f32.mrf.mxu0
        %v3479 = vpop.f32.mrf.mxu0
        %v3480 = vadd.f32 0.0, %v3479
        %v3481 = vpop.f32.mrf.mxu0
        %3482 = vmatprep.mubr.bf16.mxu0 0
        %3483 = vmatmul.mubr.bf16.gmra.mxu0 %v3313
        %v3484 = vpop.f32.mrf.mxu0
        %v3485 = vadd.f32 0.0, %v3484
        %v3486 = vpop.f32.mrf.mxu0
        %v3487 = vpop.f32.mrf.mxu0
        %v3488 = vadd.f32 0.0, %v3487
        %v3489 = vpop.f32.mrf.mxu0
        %3490 = vmatprep.mubr.bf16.mxu0 0
        %3491 = vmatmul.mubr.bf16.gmra.mxu0 %v3314
        %v3492 = vpop.f32.mrf.mxu0
        %v3493 = vadd.f32 0.0, %v3492
        %v3494 = vpop.f32.mrf.mxu0
        %v3495 = vpop.f32.mrf.mxu0
        %v3496 = vadd.f32 0.0, %v3495
        %v3497 = vpop.f32.mrf.mxu0
        %3498 = vmatprep.mubr.bf16.mxu0 0
        %3499 = vmatmul.mubr.bf16.gmra.mxu0 %v3315
        %v3500 = vpop.f32.mrf.mxu0
        %v3501 = vadd.f32 0.0, %v3500
        %v3502 = vpop.f32.mrf.mxu0
        %v3503 = vpop.f32.mrf.mxu0
        %v3504 = vadd.f32 0.0, %v3503
        %v3505 = vpop.f32.mrf.mxu0
        %3506 = vmatprep.mubr.bf16.mxu0 0
        %3507 = vmatmul.mubr.bf16.gmra.mxu0 %v3316
        %v3508 = vpop.f32.mrf.mxu0
        %v3509 = vadd.f32 0.0, %v3508
        %v3510 = vpop.f32.mrf.mxu0
        %v3511 = vpop.f32.mrf.mxu0
        %v3512 = vadd.f32 0.0, %v3511
        %v3513 = vpop.f32.mrf.mxu0
        %3514 = vmatprep.mubr.bf16.mxu0 0
        %3515 = vmatmul.mubr.bf16.gmra.mxu0 %v3317
        %v3516 = vpop.f32.mrf.mxu0
        %v3517 = vadd.f32 0.0, %v3516
        %v3518 = vpop.f32.mrf.mxu0
        %v3519 = vpop.f32.mrf.mxu0
        %v3520 = vadd.f32 0.0, %v3519
        %v3521 = vpop.f32.mrf.mxu0
        %3522 = vmatprep.mubr.bf16.mxu0 0
        %3523 = vmatmul.mubr.bf16.gmra.mxu0 %v3318
        %v3524 = vpop.f32.mrf.mxu0
        %v3525 = vadd.f32 0.0, %v3524
        %v3526 = vpop.f32.mrf.mxu0
        %v3527 = vpop.f32.mrf.mxu0
        %v3528 = vadd.f32 0.0, %v3527
        %v3529 = vpop.f32.mrf.mxu0
        %3530 = vmatprep.mubr.bf16.mxu0 0
        %3531 = vmatmul.mubr.bf16.gmra.mxu0 %v3319
        %v3532 = vpop.f32.mrf.mxu0
        %v3533 = vadd.f32 0.0, %v3532
        %v3534 = vpop.f32.mrf.mxu0
        %v3535 = vpop.f32.mrf.mxu0
        %v3536 = vadd.f32 0.0, %v3535
        %v3537 = vpop.f32.mrf.mxu0
        %3538 = vmatprep.mubr.bf16.mxu0 0
        %3539 = vmatmul.mubr.bf16.gmra.mxu0 %v3320
        %v3540 = vpop.f32.mrf.mxu0
        %v3541 = vadd.f32 0.0, %v3540
        %v3542 = vpop.f32.mrf.mxu0
        %v3543 = vpop.f32.mrf.mxu0
        %v3544 = vadd.f32 0.0, %v3543
        %v3545 = vpop.f32.mrf.mxu0
        %3546 = vdwg.mxu0
        %v3547 = vadd.f32 %v3241, %v3421
        %v3548 = vadd.f32 %v3242, %v3424
        %v3549 = vadd.f32 %v3243, %v3429
        %v3550 = vadd.f32 %v3244, %v3432
        %v3551 = vadd.f32 %v3245, %v3437
        %v3552 = vadd.f32 %v3246, %v3440
        %v3553 = vadd.f32 %v3247, %v3445
        %v3554 = vadd.f32 %v3248, %v3448
        %v3555 = vadd.f32 %v3249, %v3453
        %v3556 = vadd.f32 %v3250, %v3456
        %v3557 = vadd.f32 %v3251, %v3461
        %v3558 = vadd.f32 %v3252, %v3464
        %v3559 = vadd.f32 %v3253, %v3469
        %v3560 = vadd.f32 %v3254, %v3472
        %v3561 = vadd.f32 %v3255, %v3477
        %v3562 = vadd.f32 %v3256, %v3480
        %v3563 = vadd.f32 %v3257, %v3485
        %v3564 = vadd.f32 %v3258, %v3488
        %v3565 = vadd.f32 %v3259, %v3493
        %v3566 = vadd.f32 %v3260, %v3496
        %v3567 = vadd.f32 %v3261, %v3501
        %v3568 = vadd.f32 %v3262, %v3504
        %v3569 = vadd.f32 %v3263, %v3509
        %v3570 = vadd.f32 %v3264, %v3512
        %v3571 = vadd.f32 %v3265, %v3517
        %v3572 = vadd.f32 %v3266, %v3520
        %v3573 = vadd.f32 %v3267, %v3525
        %v3574 = vadd.f32 %v3268, %v3528
        %v3575 = vadd.f32 %v3269, %v3533
        %v3576 = vadd.f32 %v3270, %v3536
        %v3577 = vadd.f32 %v3271, %v3541
        %v3578 = vadd.f32 %v3272, %v3544
        %v3579 = vld [vmem:[%s4] sm:$0x1]
        %v3581 = vlaneseq
        %v3582 = vshrl.u32 %v3581, 7
        %v3583 = vsub.s32 0, %v3582
        %v3584 = vrot.slane %v3579, %v3583
        %v3586 = vadd.f32 %v3547, %v3584
        %v3587 = vadd.f32 %v3548, %v3584
        %v3588 = vadd.f32 %v3549, %v3584
        %v3589 = vadd.f32 %v3550, %v3584
        %v3590 = vadd.f32 %v3551, %v3584
        %v3591 = vadd.f32 %v3552, %v3584
        %v3592 = vadd.f32 %v3553, %v3584
        %v3593 = vadd.f32 %v3554, %v3584
        %v3594 = vadd.f32 %v3555, %v3584
        %v3595 = vadd.f32 %v3556, %v3584
        %v3596 = vadd.f32 %v3557, %v3584
        %v3597 = vadd.f32 %v3558, %v3584
        %v3598 = vadd.f32 %v3559, %v3584
        %v3599 = vadd.f32 %v3560, %v3584
        %v3600 = vadd.f32 %v3561, %v3584
        %v3601 = vadd.f32 %v3562, %v3584
        %v3602 = vadd.f32 %v3563, %v3584
        %v3603 = vadd.f32 %v3564, %v3584
        %v3604 = vadd.f32 %v3565, %v3584
        %v3605 = vadd.f32 %v3566, %v3584
        %v3606 = vadd.f32 %v3567, %v3584
        %v3607 = vadd.f32 %v3568, %v3584
        %v3608 = vadd.f32 %v3569, %v3584
        %v3609 = vadd.f32 %v3570, %v3584
        %v3610 = vadd.f32 %v3571, %v3584
        %v3611 = vadd.f32 %v3572, %v3584
        %v3612 = vadd.f32 %v3573, %v3584
        %v3613 = vadd.f32 %v3574, %v3584
        %v3614 = vadd.f32 %v3575, %v3584
        %v3615 = vadd.f32 %v3576, %v3584
        %v3616 = vadd.f32 %v3577, %v3584
        %v3617 = vadd.f32 %v3578, %v3584
        %v3618 = vmax.f32 %v3586, 0.0
        %v3619 = vmax.f32 %v3587, 0.0
        %v3620 = vmax.f32 %v3588, 0.0
        %v3621 = vmax.f32 %v3589, 0.0
        %v3622 = vmax.f32 %v3590, 0.0
        %v3623 = vmax.f32 %v3591, 0.0
        %v3624 = vmax.f32 %v3592, 0.0
        %v3625 = vmax.f32 %v3593, 0.0
        %v3626 = vmax.f32 %v3594, 0.0
        %v3627 = vmax.f32 %v3595, 0.0
        %v3628 = vmax.f32 %v3596, 0.0
        %v3629 = vmax.f32 %v3597, 0.0
        %v3630 = vmax.f32 %v3598, 0.0
        %v3631 = vmax.f32 %v3599, 0.0
        %v3632 = vmax.f32 %v3600, 0.0
        %v3633 = vmax.f32 %v3601, 0.0
        %v3634 = vmax.f32 %v3602, 0.0
        %v3635 = vmax.f32 %v3603, 0.0
        %v3636 = vmax.f32 %v3604, 0.0
        %v3637 = vmax.f32 %v3605, 0.0
        %v3638 = vmax.f32 %v3606, 0.0
        %v3639 = vmax.f32 %v3607, 0.0
        %v3640 = vmax.f32 %v3608, 0.0
        %v3641 = vmax.f32 %v3609, 0.0
        %v3642 = vmax.f32 %v3610, 0.0
        %v3643 = vmax.f32 %v3611, 0.0
        %v3644 = vmax.f32 %v3612, 0.0
        %v3645 = vmax.f32 %v3613, 0.0
        %v3646 = vmax.f32 %v3614, 0.0
        %v3647 = vmax.f32 %v3615, 0.0
        %v3648 = vmax.f32 %v3616, 0.0
        %v3649 = vmax.f32 %v3617, 0.0
        %v3650 = vpack.c.bf16 %v3619, %v3618
        %v3651 = vpack.c.bf16 %v3621, %v3620
        %v3652 = vpack.c.bf16 %v3623, %v3622
        %v3653 = vpack.c.bf16 %v3625, %v3624
        %v3654 = vpack.c.bf16 %v3627, %v3626
        %v3655 = vpack.c.bf16 %v3629, %v3628
        %v3656 = vpack.c.bf16 %v3631, %v3630
        %v3657 = vpack.c.bf16 %v3633, %v3632
        %v3658 = vpack.c.bf16 %v3635, %v3634
        %v3659 = vpack.c.bf16 %v3637, %v3636
        %v3660 = vpack.c.bf16 %v3639, %v3638
        %v3661 = vpack.c.bf16 %v3641, %v3640
        %v3662 = vpack.c.bf16 %v3643, %v3642
        %v3663 = vpack.c.bf16 %v3645, %v3644
        %v3664 = vpack.c.bf16 %v3647, %v3646
        %v3665 = vpack.c.bf16 %v3649, %v3648
        %v3666 = vld [vmem:[#allocation9] sm:$0xf]
        %v3667 = vld [vmem:[#allocation9 + $0x4] sm:$0xf]
        %v3668 = vld [vmem:[#allocation9 + $0x8] sm:$0xf]
        %v3669 = vld [vmem:[#allocation9 + $0xc] sm:$0xf]
        %v3670 = vld [vmem:[#allocation9 + $0x10] sm:$0xf]
        %v3671 = vld [vmem:[#allocation9 + $0x14] sm:$0xf]
        %v3672 = vld [vmem:[#allocation9 + $0x18] sm:$0xf]
        %v3673 = vld [vmem:[#allocation9 + $0x1c] sm:$0xf]
        %v3674 = vld [vmem:[#allocation9 + $0x20] sm:$0xf]
        %v3675 = vld [vmem:[#allocation9 + $0x24] sm:$0xf]
        %v3676 = vld [vmem:[#allocation9 + $0x28] sm:$0xf]
        %v3677 = vld [vmem:[#allocation9 + $0x2c] sm:$0xf]
        %v3678 = vld [vmem:[#allocation9 + $0x30] sm:$0xf]
        %v3679 = vld [vmem:[#allocation9 + $0x34] sm:$0xf]
        %v3680 = vld [vmem:[#allocation9 + $0x38] sm:$0xf]
        %v3681 = vld [vmem:[#allocation9 + $0x3c] sm:$0xf]
        %v3682 = vld [vmem:[%s6] sm:$0x1]
        %v3684 = vlaneseq
        %v3685 = vshrl.u32 %v3684, 7
        %v3686 = vsub.s32 0, %v3685
        %v3687 = vrot.slane %v3682, %v3686
        %v3705 = vunpack.c.l.b16 %v3666
        %v3706 = vunpack.c.l.b16 %v3667
        %v3707 = vunpack.c.l.b16 %v3668
        %v3708 = vunpack.c.l.b16 %v3669
        %v3709 = vunpack.c.l.b16 %v3670
        %v3710 = vunpack.c.l.b16 %v3671
        %v3711 = vunpack.c.l.b16 %v3672
        %v3712 = vunpack.c.l.b16 %v3673
        %v3713 = vunpack.c.l.b16 %v3674
        %v3714 = vunpack.c.l.b16 %v3675
        %v3715 = vunpack.c.l.b16 %v3676
        %v3716 = vunpack.c.l.b16 %v3677
        %v3717 = vunpack.c.l.b16 %v3678
        %v3718 = vunpack.c.l.b16 %v3679
        %v3719 = vunpack.c.l.b16 %v3680
        %v3720 = vunpack.c.l.b16 %v3681
        %v3721 = vpack.c.b16 %v3706, %v3705
        %v3722 = vpack.c.b16 %v3708, %v3707
        %v3723 = vpack.c.b16 %v3710, %v3709
        %v3724 = vpack.c.b16 %v3712, %v3711
        %v3725 = vpack.c.b16 %v3714, %v3713
        %v3726 = vpack.c.b16 %v3716, %v3715
        %v3727 = vpack.c.b16 %v3718, %v3717
        %v3728 = vpack.c.b16 %v3720, %v3719
        %3737 = vmatprep.subr.bf16.mxu0 0
        %3738 = vmatpush1.bf16.msra.mxu0 %v3728
        %3739 = vmatprep.subr.bf16.mxu0 0
        %3740 = vmatpush1.bf16.msra.mxu0 %v3727
        %3741 = vmatprep.subr.bf16.mxu0 0
        %3742 = vmatpush1.bf16.msra.mxu0 %v3726
        %3743 = vmatprep.subr.bf16.mxu0 0
        %3744 = vmatpush1.bf16.msra.mxu0 %v3725
        %3745 = vmatprep.subr.bf16.mxu0 0
        %3746 = vmatpush1.bf16.msra.mxu0 %v3724
        %3747 = vmatprep.subr.bf16.mxu0 0
        %3748 = vmatpush1.bf16.msra.mxu0 %v3723
        %3749 = vmatprep.subr.bf16.mxu0 0
        %3750 = vmatpush1.bf16.msra.mxu0 %v3722
        %3751 = vmatprep.subr.bf16.mxu0 0
        %3752 = vmatpush1.bf16.msra.mxu0 %v3721
        %3753 = vmatprep.subr.bf16.mxu0 0
        %3754 = vmatpush2.bf16.msra.mxu0 0
        %3755 = vmatprep.subr.bf16.mxu0 0
        %3756 = vmatpush2.bf16.msra.mxu0 0
        %3757 = vmatprep.subr.bf16.mxu0 0
        %3758 = vmatpush2.bf16.msra.mxu0 0
        %3759 = vmatprep.subr.bf16.mxu0 0
        %3760 = vmatpush2.bf16.msra.mxu0 0
        %3761 = vmatprep.subr.bf16.mxu0 0
        %3762 = vmatpush2.bf16.msra.mxu0 0
        %3763 = vmatprep.subr.bf16.mxu0 0
        %3764 = vmatpush2.bf16.msra.mxu0 0
        %3765 = vmatprep.subr.bf16.mxu0 0
        %3766 = vmatpush2.bf16.msra.mxu0 0
        %3767 = vmatprep.subr.bf16.mxu0 0
        %3768 = vmatpush2.bf16.msra.mxu0 0
        %3769 = vmatprep.mubr.bf16.mxu0 0
        %3770 = vmatmul.mubr.bf16.gmra.mxu0 %v3650
        %v3771 = vpop.f32.mrf.mxu0
        %v3772 = vadd.f32 %v3687, %v3771
        %v3773 = vpop.f32.mrf.mxu0
        %v3774 = vpop.f32.mrf.mxu0
        %v3775 = vadd.f32 %v3687, %v3774
        %v3776 = vpop.f32.mrf.mxu0
        %3777 = vmatprep.mubr.bf16.mxu0 0
        %3778 = vmatmul.mubr.bf16.gmra.mxu0 %v3651
        %v3779 = vpop.f32.mrf.mxu0
        %v3780 = vadd.f32 %v3687, %v3779
        %v3781 = vpop.f32.mrf.mxu0
        %v3782 = vpop.f32.mrf.mxu0
        %v3783 = vadd.f32 %v3687, %v3782
        %v3784 = vpop.f32.mrf.mxu0
        %3785 = vmatprep.mubr.bf16.mxu0 0
        %3786 = vmatmul.mubr.bf16.gmra.mxu0 %v3652
        %v3787 = vpop.f32.mrf.mxu0
        %v3788 = vadd.f32 %v3687, %v3787
        %v3789 = vpop.f32.mrf.mxu0
        %v3790 = vpop.f32.mrf.mxu0
        %v3791 = vadd.f32 %v3687, %v3790
        %v3792 = vpop.f32.mrf.mxu0
        %3793 = vmatprep.mubr.bf16.mxu0 0
        %3794 = vmatmul.mubr.bf16.gmra.mxu0 %v3653
        %v3795 = vpop.f32.mrf.mxu0
        %v3796 = vadd.f32 %v3687, %v3795
        %v3797 = vpop.f32.mrf.mxu0
        %v3798 = vpop.f32.mrf.mxu0
        %v3799 = vadd.f32 %v3687, %v3798
        %v3800 = vpop.f32.mrf.mxu0
        %3801 = vmatprep.mubr.bf16.mxu0 0
        %3802 = vmatmul.mubr.bf16.gmra.mxu0 %v3654
        %v3803 = vpop.f32.mrf.mxu0
        %v3804 = vadd.f32 %v3687, %v3803
        %v3805 = vpop.f32.mrf.mxu0
        %v3806 = vpop.f32.mrf.mxu0
        %v3807 = vadd.f32 %v3687, %v3806
        %v3808 = vpop.f32.mrf.mxu0
        %3809 = vmatprep.mubr.bf16.mxu0 0
        %3810 = vmatmul.mubr.bf16.gmra.mxu0 %v3655
        %v3811 = vpop.f32.mrf.mxu0
        %v3812 = vadd.f32 %v3687, %v3811
        %v3813 = vpop.f32.mrf.mxu0
        %v3814 = vpop.f32.mrf.mxu0
        %v3815 = vadd.f32 %v3687, %v3814
        %v3816 = vpop.f32.mrf.mxu0
        %3817 = vmatprep.mubr.bf16.mxu0 0
        %3818 = vmatmul.mubr.bf16.gmra.mxu0 %v3656
        %v3819 = vpop.f32.mrf.mxu0
        %v3820 = vadd.f32 %v3687, %v3819
        %v3821 = vpop.f32.mrf.mxu0
        %v3822 = vpop.f32.mrf.mxu0
        %v3823 = vadd.f32 %v3687, %v3822
        %v3824 = vpop.f32.mrf.mxu0
        %3825 = vmatprep.mubr.bf16.mxu0 0
        %3826 = vmatmul.mubr.bf16.gmra.mxu0 %v3657
        %v3827 = vpop.f32.mrf.mxu0
        %v3828 = vadd.f32 %v3687, %v3827
        %v3829 = vpop.f32.mrf.mxu0
        %v3830 = vpop.f32.mrf.mxu0
        %v3831 = vadd.f32 %v3687, %v3830
        %v3832 = vpop.f32.mrf.mxu0
        %3833 = vmatprep.mubr.bf16.mxu0 0
        %3834 = vmatmul.mubr.bf16.gmra.mxu0 %v3658
        %v3835 = vpop.f32.mrf.mxu0
        %v3836 = vadd.f32 %v3687, %v3835
        %v3837 = vpop.f32.mrf.mxu0
        %v3838 = vpop.f32.mrf.mxu0
        %v3839 = vadd.f32 %v3687, %v3838
        %v3840 = vpop.f32.mrf.mxu0
        %3841 = vmatprep.mubr.bf16.mxu0 0
        %3842 = vmatmul.mubr.bf16.gmra.mxu0 %v3659
        %v3843 = vpop.f32.mrf.mxu0
        %v3844 = vadd.f32 %v3687, %v3843
        %v3845 = vpop.f32.mrf.mxu0
        %v3846 = vpop.f32.mrf.mxu0
        %v3847 = vadd.f32 %v3687, %v3846
        %v3848 = vpop.f32.mrf.mxu0
        %3849 = vmatprep.mubr.bf16.mxu0 0
        %3850 = vmatmul.mubr.bf16.gmra.mxu0 %v3660
        %v3851 = vpop.f32.mrf.mxu0
        %v3852 = vadd.f32 %v3687, %v3851
        %v3853 = vpop.f32.mrf.mxu0
        %v3854 = vpop.f32.mrf.mxu0
        %v3855 = vadd.f32 %v3687, %v3854
        %v3856 = vpop.f32.mrf.mxu0
        %3857 = vmatprep.mubr.bf16.mxu0 0
        %3858 = vmatmul.mubr.bf16.gmra.mxu0 %v3661
        %v3859 = vpop.f32.mrf.mxu0
        %v3860 = vadd.f32 %v3687, %v3859
        %v3861 = vpop.f32.mrf.mxu0
        %v3862 = vpop.f32.mrf.mxu0
        %v3863 = vadd.f32 %v3687, %v3862
        %v3864 = vpop.f32.mrf.mxu0
        %3865 = vmatprep.mubr.bf16.mxu0 0
        %3866 = vmatmul.mubr.bf16.gmra.mxu0 %v3662
        %v3867 = vpop.f32.mrf.mxu0
        %v3868 = vadd.f32 %v3687, %v3867
        %v3869 = vpop.f32.mrf.mxu0
        %v3870 = vpop.f32.mrf.mxu0
        %v3871 = vadd.f32 %v3687, %v3870
        %v3872 = vpop.f32.mrf.mxu0
        %3873 = vmatprep.mubr.bf16.mxu0 0
        %3874 = vmatmul.mubr.bf16.gmra.mxu0 %v3663
        %v3875 = vpop.f32.mrf.mxu0
        %v3876 = vadd.f32 %v3687, %v3875
        %v3877 = vpop.f32.mrf.mxu0
        %v3878 = vpop.f32.mrf.mxu0
        %v3879 = vadd.f32 %v3687, %v3878
        %v3880 = vpop.f32.mrf.mxu0
        %3881 = vmatprep.mubr.bf16.mxu0 0
        %3882 = vmatmul.mubr.bf16.gmra.mxu0 %v3664
        %v3883 = vpop.f32.mrf.mxu0
        %v3884 = vadd.f32 %v3687, %v3883
        %v3885 = vpop.f32.mrf.mxu0
        %v3886 = vpop.f32.mrf.mxu0
        %v3887 = vadd.f32 %v3687, %v3886
        %v3888 = vpop.f32.mrf.mxu0
        %3889 = vmatprep.mubr.bf16.mxu0 0
        %3890 = vmatmul.mubr.bf16.gmra.mxu0 %v3665
        %v3891 = vpop.f32.mrf.mxu0
        %v3892 = vadd.f32 %v3687, %v3891
        %v3893 = vpop.f32.mrf.mxu0
        %v3894 = vpop.f32.mrf.mxu0
        %v3895 = vadd.f32 %v3687, %v3894
        %v3896 = vpop.f32.mrf.mxu0
        %3897 = vdwg.mxu0
        %v3898 = vld [vmem:[#allocation11] sm:$0xf]
        %v3899 = vld [vmem:[#allocation11 + $0x4] sm:$0xf]
        %v3900 = vld [vmem:[#allocation11 + $0x8] sm:$0xf]
        %v3901 = vld [vmem:[#allocation11 + $0xc] sm:$0xf]
        %v3902 = vld [vmem:[#allocation11 + $0x10] sm:$0xf]
        %v3903 = vld [vmem:[#allocation11 + $0x14] sm:$0xf]
        %v3904 = vld [vmem:[#allocation11 + $0x18] sm:$0xf]
        %v3905 = vld [vmem:[#allocation11 + $0x1c] sm:$0xf]
        %v3906 = vld [vmem:[#allocation11 + $0x20] sm:$0xf]
        %v3907 = vld [vmem:[#allocation11 + $0x24] sm:$0xf]
        %v3908 = vld [vmem:[#allocation11 + $0x28] sm:$0xf]
        %v3909 = vld [vmem:[#allocation11 + $0x2c] sm:$0xf]
        %v3910 = vld [vmem:[#allocation11 + $0x30] sm:$0xf]
        %v3911 = vld [vmem:[#allocation11 + $0x34] sm:$0xf]
        %v3912 = vld [vmem:[#allocation11 + $0x38] sm:$0xf]
        %v3913 = vld [vmem:[#allocation11 + $0x3c] sm:$0xf]
        %v3914 = vld [vmem:[%s8] sm:$0x1]
        %v3916 = vlaneseq
        %v3917 = vshrl.u32 %v3916, 7
        %v3918 = vsub.s32 0, %v3917
        %v3919 = vrot.slane %v3914, %v3918
        %v3937 = vunpack.c.l.b16 %v3898
        %v3938 = vunpack.c.l.b16 %v3899
        %v3939 = vunpack.c.l.b16 %v3900
        %v3940 = vunpack.c.l.b16 %v3901
        %v3941 = vunpack.c.l.b16 %v3902
        %v3942 = vunpack.c.l.b16 %v3903
        %v3943 = vunpack.c.l.b16 %v3904
        %v3944 = vunpack.c.l.b16 %v3905
        %v3945 = vunpack.c.l.b16 %v3906
        %v3946 = vunpack.c.l.b16 %v3907
        %v3947 = vunpack.c.l.b16 %v3908
        %v3948 = vunpack.c.l.b16 %v3909
        %v3949 = vunpack.c.l.b16 %v3910
        %v3950 = vunpack.c.l.b16 %v3911
        %v3951 = vunpack.c.l.b16 %v3912
        %v3952 = vunpack.c.l.b16 %v3913
        %v3953 = vpack.c.b16 %v3938, %v3937
        %v3954 = vpack.c.b16 %v3940, %v3939
        %v3955 = vpack.c.b16 %v3942, %v3941
        %v3956 = vpack.c.b16 %v3944, %v3943
        %v3957 = vpack.c.b16 %v3946, %v3945
        %v3958 = vpack.c.b16 %v3948, %v3947
        %v3959 = vpack.c.b16 %v3950, %v3949
        %v3960 = vpack.c.b16 %v3952, %v3951
        %3969 = vmatprep.subr.bf16.mxu0 0
        %3970 = vmatpush1.bf16.msra.mxu0 %v3960
        %3971 = vmatprep.subr.bf16.mxu0 0
        %3972 = vmatpush1.bf16.msra.mxu0 %v3959
        %3973 = vmatprep.subr.bf16.mxu0 0
        %3974 = vmatpush1.bf16.msra.mxu0 %v3958
        %3975 = vmatprep.subr.bf16.mxu0 0
        %3976 = vmatpush1.bf16.msra.mxu0 %v3957
        %3977 = vmatprep.subr.bf16.mxu0 0
        %3978 = vmatpush1.bf16.msra.mxu0 %v3956
        %3979 = vmatprep.subr.bf16.mxu0 0
        %3980 = vmatpush1.bf16.msra.mxu0 %v3955
        %3981 = vmatprep.subr.bf16.mxu0 0
        %3982 = vmatpush1.bf16.msra.mxu0 %v3954
        %3983 = vmatprep.subr.bf16.mxu0 0
        %3984 = vmatpush1.bf16.msra.mxu0 %v3953
        %3985 = vmatprep.subr.bf16.mxu0 0
        %3986 = vmatpush2.bf16.msra.mxu0 0
        %3987 = vmatprep.subr.bf16.mxu0 0
        %3988 = vmatpush2.bf16.msra.mxu0 0
        %3989 = vmatprep.subr.bf16.mxu0 0
        %3990 = vmatpush2.bf16.msra.mxu0 0
        %3991 = vmatprep.subr.bf16.mxu0 0
        %3992 = vmatpush2.bf16.msra.mxu0 0
        %3993 = vmatprep.subr.bf16.mxu0 0
        %3994 = vmatpush2.bf16.msra.mxu0 0
        %3995 = vmatprep.subr.bf16.mxu0 0
        %3996 = vmatpush2.bf16.msra.mxu0 0
        %3997 = vmatprep.subr.bf16.mxu0 0
        %3998 = vmatpush2.bf16.msra.mxu0 0
        %3999 = vmatprep.subr.bf16.mxu0 0
        %4000 = vmatpush2.bf16.msra.mxu0 0
        %4001 = vmatprep.mubr.bf16.mxu0 0
        %4002 = vmatmul.mubr.bf16.gmra.mxu0 %v529
        %v4003 = vpop.f32.mrf.mxu0
        %v4004 = vadd.f32 %v3919, %v4003
        %v4005 = vpop.f32.mrf.mxu0
        %v4006 = vpop.f32.mrf.mxu0
        %v4007 = vadd.f32 %v3919, %v4006
        %v4008 = vpop.f32.mrf.mxu0
        %4009 = vmatprep.mubr.bf16.mxu0 0
        %4010 = vmatmul.mubr.bf16.gmra.mxu0 %v530
        %v4011 = vpop.f32.mrf.mxu0
        %v4012 = vadd.f32 %v3919, %v4011
        %v4013 = vpop.f32.mrf.mxu0
        %v4014 = vpop.f32.mrf.mxu0
        %v4015 = vadd.f32 %v3919, %v4014
        %v4016 = vpop.f32.mrf.mxu0
        %4017 = vmatprep.mubr.bf16.mxu0 0
        %4018 = vmatmul.mubr.bf16.gmra.mxu0 %v531
        %v4019 = vpop.f32.mrf.mxu0
        %v4020 = vadd.f32 %v3919, %v4019
        %v4021 = vpop.f32.mrf.mxu0
        %v4022 = vpop.f32.mrf.mxu0
        %v4023 = vadd.f32 %v3919, %v4022
        %v4024 = vpop.f32.mrf.mxu0
        %4025 = vmatprep.mubr.bf16.mxu0 0
        %4026 = vmatmul.mubr.bf16.gmra.mxu0 %v532
        %v4027 = vpop.f32.mrf.mxu0
        %v4028 = vadd.f32 %v3919, %v4027
        %v4029 = vpop.f32.mrf.mxu0
        %v4030 = vpop.f32.mrf.mxu0
        %v4031 = vadd.f32 %v3919, %v4030
        %v4032 = vpop.f32.mrf.mxu0
        %4033 = vmatprep.mubr.bf16.mxu0 0
        %4034 = vmatmul.mubr.bf16.gmra.mxu0 %v533
        %v4035 = vpop.f32.mrf.mxu0
        %v4036 = vadd.f32 %v3919, %v4035
        %v4037 = vpop.f32.mrf.mxu0
        %v4038 = vpop.f32.mrf.mxu0
        %v4039 = vadd.f32 %v3919, %v4038
        %v4040 = vpop.f32.mrf.mxu0
        %4041 = vmatprep.mubr.bf16.mxu0 0
        %4042 = vmatmul.mubr.bf16.gmra.mxu0 %v534
        %v4043 = vpop.f32.mrf.mxu0
        %v4044 = vadd.f32 %v3919, %v4043
        %v4045 = vpop.f32.mrf.mxu0
        %v4046 = vpop.f32.mrf.mxu0
        %v4047 = vadd.f32 %v3919, %v4046
        %v4048 = vpop.f32.mrf.mxu0
        %4049 = vmatprep.mubr.bf16.mxu0 0
        %4050 = vmatmul.mubr.bf16.gmra.mxu0 %v535
        %v4051 = vpop.f32.mrf.mxu0
        %v4052 = vadd.f32 %v3919, %v4051
        %v4053 = vpop.f32.mrf.mxu0
        %v4054 = vpop.f32.mrf.mxu0
        %v4055 = vadd.f32 %v3919, %v4054
        %v4056 = vpop.f32.mrf.mxu0
        %4057 = vmatprep.mubr.bf16.mxu0 0
        %4058 = vmatmul.mubr.bf16.gmra.mxu0 %v536
        %v4059 = vpop.f32.mrf.mxu0
        %v4060 = vadd.f32 %v3919, %v4059
        %v4061 = vpop.f32.mrf.mxu0
        %v4062 = vpop.f32.mrf.mxu0
        %v4063 = vadd.f32 %v3919, %v4062
        %v4064 = vpop.f32.mrf.mxu0
        %4065 = vmatprep.mubr.bf16.mxu0 0
        %4066 = vmatmul.mubr.bf16.gmra.mxu0 %v537
        %v4067 = vpop.f32.mrf.mxu0
        %v4068 = vadd.f32 %v3919, %v4067
        %v4069 = vpop.f32.mrf.mxu0
        %v4070 = vpop.f32.mrf.mxu0
        %v4071 = vadd.f32 %v3919, %v4070
        %v4072 = vpop.f32.mrf.mxu0
        %4073 = vmatprep.mubr.bf16.mxu0 0
        %4074 = vmatmul.mubr.bf16.gmra.mxu0 %v538
        %v4075 = vpop.f32.mrf.mxu0
        %v4076 = vadd.f32 %v3919, %v4075
        %v4077 = vpop.f32.mrf.mxu0
        %v4078 = vpop.f32.mrf.mxu0
        %v4079 = vadd.f32 %v3919, %v4078
        %v4080 = vpop.f32.mrf.mxu0
        %4081 = vmatprep.mubr.bf16.mxu0 0
        %4082 = vmatmul.mubr.bf16.gmra.mxu0 %v539
        %v4083 = vpop.f32.mrf.mxu0
        %v4084 = vadd.f32 %v3919, %v4083
        %v4085 = vpop.f32.mrf.mxu0
        %v4086 = vpop.f32.mrf.mxu0
        %v4087 = vadd.f32 %v3919, %v4086
        %v4088 = vpop.f32.mrf.mxu0
        %4089 = vmatprep.mubr.bf16.mxu0 0
        %4090 = vmatmul.mubr.bf16.gmra.mxu0 %v540
        %v4091 = vpop.f32.mrf.mxu0
        %v4092 = vadd.f32 %v3919, %v4091
        %v4093 = vpop.f32.mrf.mxu0
        %v4094 = vpop.f32.mrf.mxu0
        %v4095 = vadd.f32 %v3919, %v4094
        %v4096 = vpop.f32.mrf.mxu0
        %4097 = vmatprep.mubr.bf16.mxu0 0
        %4098 = vmatmul.mubr.bf16.gmra.mxu0 %v541
        %v4099 = vpop.f32.mrf.mxu0
        %v4100 = vadd.f32 %v3919, %v4099
        %v4101 = vpop.f32.mrf.mxu0
        %v4102 = vpop.f32.mrf.mxu0
        %v4103 = vadd.f32 %v3919, %v4102
        %v4104 = vpop.f32.mrf.mxu0
        %4105 = vmatprep.mubr.bf16.mxu0 0
        %4106 = vmatmul.mubr.bf16.gmra.mxu0 %v542
        %v4107 = vpop.f32.mrf.mxu0
        %v4108 = vadd.f32 %v3919, %v4107
        %v4109 = vpop.f32.mrf.mxu0
        %v4110 = vpop.f32.mrf.mxu0
        %v4111 = vadd.f32 %v3919, %v4110
        %v4112 = vpop.f32.mrf.mxu0
        %4113 = vmatprep.mubr.bf16.mxu0 0
        %4114 = vmatmul.mubr.bf16.gmra.mxu0 %v543
        %v4115 = vpop.f32.mrf.mxu0
        %v4116 = vadd.f32 %v3919, %v4115
        %v4117 = vpop.f32.mrf.mxu0
        %v4118 = vpop.f32.mrf.mxu0
        %v4119 = vadd.f32 %v3919, %v4118
        %v4120 = vpop.f32.mrf.mxu0
        %4121 = vmatprep.mubr.bf16.mxu0 0
        %4122 = vmatmul.mubr.bf16.gmra.mxu0 %v544
        %v4123 = vpop.f32.mrf.mxu0
        %v4124 = vadd.f32 %v3919, %v4123
        %v4125 = vpop.f32.mrf.mxu0
        %v4126 = vpop.f32.mrf.mxu0
        %v4127 = vadd.f32 %v3919, %v4126
        %v4128 = vpop.f32.mrf.mxu0
        %4129 = vdwg.mxu0
        %v4130 = vadd.f32 %v3772, %v4004
        %v4131 = vadd.f32 %v3775, %v4007
        %v4132 = vadd.f32 %v3780, %v4012
        %v4133 = vadd.f32 %v3783, %v4015
        %v4134 = vadd.f32 %v3788, %v4020
        %v4135 = vadd.f32 %v3791, %v4023
        %v4136 = vadd.f32 %v3796, %v4028
        %v4137 = vadd.f32 %v3799, %v4031
        %v4138 = vadd.f32 %v3804, %v4036
        %v4139 = vadd.f32 %v3807, %v4039
        %v4140 = vadd.f32 %v3812, %v4044
        %v4141 = vadd.f32 %v3815, %v4047
        %v4142 = vadd.f32 %v3820, %v4052
        %v4143 = vadd.f32 %v3823, %v4055
        %v4144 = vadd.f32 %v3828, %v4060
        %v4145 = vadd.f32 %v3831, %v4063
        %v4146 = vadd.f32 %v3836, %v4068
        %v4147 = vadd.f32 %v3839, %v4071
        %v4148 = vadd.f32 %v3844, %v4076
        %v4149 = vadd.f32 %v3847, %v4079
        %v4150 = vadd.f32 %v3852, %v4084
        %v4151 = vadd.f32 %v3855, %v4087
        %v4152 = vadd.f32 %v3860, %v4092
        %v4153 = vadd.f32 %v3863, %v4095
        %v4154 = vadd.f32 %v3868, %v4100
        %v4155 = vadd.f32 %v3871, %v4103
        %v4156 = vadd.f32 %v3876, %v4108
        %v4157 = vadd.f32 %v3879, %v4111
        %v4158 = vadd.f32 %v3884, %v4116
        %v4159 = vadd.f32 %v3887, %v4119
        %v4160 = vadd.f32 %v3892, %v4124
        %v4161 = vadd.f32 %v3895, %v4127
        %v4162 = vmax.f32 %v4130, 0.0
        %v4163 = vmax.f32 %v4131, 0.0
        %v4164 = vmax.f32 %v4132, 0.0
        %v4165 = vmax.f32 %v4133, 0.0
        %v4166 = vmax.f32 %v4134, 0.0
        %v4167 = vmax.f32 %v4135, 0.0
        %v4168 = vmax.f32 %v4136, 0.0
        %v4169 = vmax.f32 %v4137, 0.0
        %v4170 = vmax.f32 %v4138, 0.0
        %v4171 = vmax.f32 %v4139, 0.0
        %v4172 = vmax.f32 %v4140, 0.0
        %v4173 = vmax.f32 %v4141, 0.0
        %v4174 = vmax.f32 %v4142, 0.0
        %v4175 = vmax.f32 %v4143, 0.0
        %v4176 = vmax.f32 %v4144, 0.0
        %v4177 = vmax.f32 %v4145, 0.0
        %v4178 = vmax.f32 %v4146, 0.0
        %v4179 = vmax.f32 %v4147, 0.0
        %v4180 = vmax.f32 %v4148, 0.0
        %v4181 = vmax.f32 %v4149, 0.0
        %v4182 = vmax.f32 %v4150, 0.0
        %v4183 = vmax.f32 %v4151, 0.0
        %v4184 = vmax.f32 %v4152, 0.0
        %v4185 = vmax.f32 %v4153, 0.0
        %v4186 = vmax.f32 %v4154, 0.0
        %v4187 = vmax.f32 %v4155, 0.0
        %v4188 = vmax.f32 %v4156, 0.0
        %v4189 = vmax.f32 %v4157, 0.0
        %v4190 = vmax.f32 %v4158, 0.0
        %v4191 = vmax.f32 %v4159, 0.0
        %v4192 = vmax.f32 %v4160, 0.0
        %v4193 = vmax.f32 %v4161, 0.0
        %v4194 = vpack.c.bf16 %v4163, %v4162
        %v4195 = vpack.c.bf16 %v4165, %v4164
        %v4196 = vpack.c.bf16 %v4167, %v4166
        %v4197 = vpack.c.bf16 %v4169, %v4168
        %v4198 = vpack.c.bf16 %v4171, %v4170
        %v4199 = vpack.c.bf16 %v4173, %v4172
        %v4200 = vpack.c.bf16 %v4175, %v4174
        %v4201 = vpack.c.bf16 %v4177, %v4176
        %v4202 = vpack.c.bf16 %v4179, %v4178
        %v4203 = vpack.c.bf16 %v4181, %v4180
        %v4204 = vpack.c.bf16 %v4183, %v4182
        %v4205 = vpack.c.bf16 %v4185, %v4184
        %v4206 = vpack.c.bf16 %v4187, %v4186
        %v4207 = vpack.c.bf16 %v4189, %v4188
        %v4208 = vpack.c.bf16 %v4191, %v4190
        %v4209 = vpack.c.bf16 %v4193, %v4192
        %v4226 = vunpack.c.l.b16 %v4194
        %v4227 = vunpack.c.h.b16 %v4194
        %v4228 = vunpack.c.l.b16 %v4195
        %v4229 = vunpack.c.h.b16 %v4195
        %v4230 = vunpack.c.l.b16 %v4196
        %v4231 = vunpack.c.h.b16 %v4196
        %v4232 = vunpack.c.l.b16 %v4197
        %v4233 = vunpack.c.h.b16 %v4197
        %v4234 = vunpack.c.l.b16 %v4198
        %v4235 = vunpack.c.h.b16 %v4198
        %v4236 = vunpack.c.l.b16 %v4199
        %v4237 = vunpack.c.h.b16 %v4199
        %v4238 = vunpack.c.l.b16 %v4200
        %v4239 = vunpack.c.h.b16 %v4200
        %v4240 = vunpack.c.l.b16 %v4201
        %v4241 = vunpack.c.h.b16 %v4201
        %v4242 = vunpack.c.l.b16 %v4202
        %v4243 = vunpack.c.h.b16 %v4202
        %v4244 = vunpack.c.l.b16 %v4203
        %v4245 = vunpack.c.h.b16 %v4203
        %v4246 = vunpack.c.l.b16 %v4204
        %v4247 = vunpack.c.h.b16 %v4204
        %v4248 = vunpack.c.l.b16 %v4205
        %v4249 = vunpack.c.h.b16 %v4205
        %v4250 = vunpack.c.l.b16 %v4206
        %v4251 = vunpack.c.h.b16 %v4206
        %v4252 = vunpack.c.l.b16 %v4207
        %v4253 = vunpack.c.h.b16 %v4207
        %v4254 = vunpack.c.l.b16 %v4208
        %v4255 = vunpack.c.h.b16 %v4208
        %v4256 = vunpack.c.l.b16 %v4209
        %v4257 = vunpack.c.h.b16 %v4209
        %v4258 = vpack.c.b16 %v4226, %v4226
        %v4259 = vpack.c.b16 %v4227, %v4227
        %v4260 = vpack.c.b16 %v4228, %v4228
        %v4261 = vpack.c.b16 %v4229, %v4229
        %v4262 = vpack.c.b16 %v4230, %v4230
        %v4263 = vpack.c.b16 %v4231, %v4231
        %v4264 = vpack.c.b16 %v4232, %v4232
        %v4265 = vpack.c.b16 %v4233, %v4233
        %v4266 = vpack.c.b16 %v4234, %v4234
        %v4267 = vpack.c.b16 %v4235, %v4235
        %v4268 = vpack.c.b16 %v4236, %v4236
        %v4269 = vpack.c.b16 %v4237, %v4237
        %v4270 = vpack.c.b16 %v4238, %v4238
        %v4271 = vpack.c.b16 %v4239, %v4239
        %v4272 = vpack.c.b16 %v4240, %v4240
        %v4273 = vpack.c.b16 %v4241, %v4241
        %v4274 = vpack.c.b16 %v4242, %v4242
        %v4275 = vpack.c.b16 %v4243, %v4243
        %v4276 = vpack.c.b16 %v4244, %v4244
        %v4277 = vpack.c.b16 %v4245, %v4245
        %v4278 = vpack.c.b16 %v4246, %v4246
        %v4279 = vpack.c.b16 %v4247, %v4247
        %v4280 = vpack.c.b16 %v4248, %v4248
        %v4281 = vpack.c.b16 %v4249, %v4249
        %v4282 = vpack.c.b16 %v4250, %v4250
        %v4283 = vpack.c.b16 %v4251, %v4251
        %v4284 = vpack.c.b16 %v4252, %v4252
        %v4285 = vpack.c.b16 %v4253, %v4253
        %v4286 = vpack.c.b16 %v4254, %v4254
        %v4287 = vpack.c.b16 %v4255, %v4255
        %v4288 = vpack.c.b16 %v4256, %v4256
        %v4289 = vpack.c.b16 %v4257, %v4257
        %4322 = vst [vmem:[%s408] sm:$0xf] %v4258
        %4323 = vst [vmem:[%s408 + $0x4] sm:$0xf] %v4259
        %4324 = vst [vmem:[%s408 + $0x8] sm:$0xf] %v4260
        %4325 = vst [vmem:[%s408 + $0xc] sm:$0xf] %v4261
        %4326 = vst [vmem:[%s408 + $0x10] sm:$0xf] %v4262
        %4327 = vst [vmem:[%s408 + $0x14] sm:$0xf] %v4263
        %4328 = vst [vmem:[%s408 + $0x18] sm:$0xf] %v4264
        %4329 = vst [vmem:[%s408 + $0x1c] sm:$0xf] %v4265
        %4330 = vst [vmem:[%s408 + $0x20] sm:$0xf] %v4266
        %4331 = vst [vmem:[%s408 + $0x24] sm:$0xf] %v4267
        %4332 = vst [vmem:[%s408 + $0x28] sm:$0xf] %v4268
        %4333 = vst [vmem:[%s408 + $0x2c] sm:$0xf] %v4269
        %4334 = vst [vmem:[%s408 + $0x30] sm:$0xf] %v4270
        %4335 = vst [vmem:[%s408 + $0x34] sm:$0xf] %v4271
        %4336 = vst [vmem:[%s408 + $0x38] sm:$0xf] %v4272
        %4337 = vst [vmem:[%s408 + $0x3c] sm:$0xf] %v4273
        %4338 = vst [vmem:[%s408 + $0x40] sm:$0xf] %v4274
        %4339 = vst [vmem:[%s408 + $0x44] sm:$0xf] %v4275
        %4340 = vst [vmem:[%s408 + $0x48] sm:$0xf] %v4276
        %4341 = vst [vmem:[%s408 + $0x4c] sm:$0xf] %v4277
        %4342 = vst [vmem:[%s408 + $0x50] sm:$0xf] %v4278
        %4343 = vst [vmem:[%s408 + $0x54] sm:$0xf] %v4279
        %4344 = vst [vmem:[%s408 + $0x58] sm:$0xf] %v4280
        %4345 = vst [vmem:[%s408 + $0x5c] sm:$0xf] %v4281
        %4346 = vst [vmem:[%s408 + $0x60] sm:$0xf] %v4282
        %4347 = vst [vmem:[%s408 + $0x64] sm:$0xf] %v4283
        %4348 = vst [vmem:[%s408 + $0x68] sm:$0xf] %v4284
        %4349 = vst [vmem:[%s408 + $0x6c] sm:$0xf] %v4285
        %4350 = vst [vmem:[%s408 + $0x70] sm:$0xf] %v4286
        %4351 = vst [vmem:[%s408 + $0x74] sm:$0xf] %v4287
        %4352 = vst [vmem:[%s408 + $0x78] sm:$0xf] %v4288
        %4353 = vst [vmem:[%s408 + $0x7c] sm:$0xf] %v4289
        %s4354 = sand.u32 %s230, 1
        %s4355 = scalar_lea.sflag [#allocation5], %s4354
        %s4356 = sand.u32 %s230, 1
        %s4357 = smul.addr %s4356, 128
        %s4358 = scalar_lea.vmem [#allocation12], %s4357
        // Predicated region
        $region77: #{tpu_custom_call.1} parent=55 // pred_check
          %p4359 = pneg %p240
        $region78: #{tpu_custom_call.1} parent=55 // pred_check_branch
          %4361 = sbr.rel (%p4359) target = $region80
        $region79: #{tpu_custom_call.1} parent=55 // pred_region
          %s4363 = ssub.s32 2048, 2048
          %4364 = vsyncadd %s4355, %s4363
          %s4365 = smul.addr %s28, 32
          %s4366 = smul.addr %s4365, 64
          %s4367 = scalar_lea.hbm %s9, %s4366
          %s4368 = sshll.u32 %s4358, 4
          %s4369 = int_to_ptr.vmem [resolvable:$true] %s4368
          %4374 = dma.vmem_to_hbm [thread:$0]  %s4369, 2048, %s4367, %s4355, 64, 64, 4
        $region80: #{tpu_custom_call.1} parent=55 // pred_fallthru
          _
      $region56: #{tpu_custom_call.1} parent=5 // pred_fallthru
        _
      %p4375 = scmp.le.s32.totalorder 2, %s23
      // Predicated region
      $region81: #{tpu_custom_call.1} parent=5 // pred_check
        %p4376 = pneg %p4375
      $region82: #{tpu_custom_call.1} parent=5 // pred_check_branch
        %4378 = sbr.rel (%p4376) target = $region84
      $region83: #{tpu_custom_call.1} parent=5 // pred_region
        %s4379 = ssub.s32 %s23, 2
        // Predicated region
        $region85: #{tpu_custom_call.1} parent=83 // pred_check
          %p4380 = pneg %p246
        $region86: #{tpu_custom_call.1} parent=83 // pred_check_branch
          %4382 = sbr.rel (%p4380) target = $region88
        $region87: #{tpu_custom_call.1} parent=83 // pred_region
          %s4383 = sand.u32 %s231, 1
          %s4384 = scalar_lea.sflag [#allocation5], %s4383
          %s4385 = sand.u32 %s231, 1
          %s4386 = smul.addr %s4385, 128
          %s4387 = scalar_lea.vmem [#allocation12], %s4386
          %4388 = dma.done %s4384, 2048
        $region88: #{tpu_custom_call.1} parent=83 // pred_fallthru
          _
      $region84: #{tpu_custom_call.1} parent=5 // pred_fallthru
        _
    $region6: #{tpu_custom_call.1} parent=1 // loop_footer
      %s27 = sadd.s32 1, %s23
    $region7: #{tpu_custom_call.1} parent=1 // loop_footer_branch
      %22 = sbr.rel target = $region3
    $region8: #{tpu_custom_call.1} parent=1 // loop_exit
      _
    %4389 = vsyncpa [#allocation4], 1
    %s4390 = scalar_lea.sflag [#allocation4], 1
    %4391 = vsyncpa %s4390, 1
    %4392 = vsyncpa [#allocation7], 1
    %4393 = vsyncpa [#allocation10], 1
    %4394 = vsyncpa [#allocation5], 1
    %s4395 = scalar_lea.sflag [#allocation5], 1
    %4396 = vsyncpa %s4395, 1

</llo_original>
